<compile_context>
chip_gen: v5e
topology: v5e:2x2
jax: 0.10.0
libtpu: 0.0.40
codegen_flags: <defaults>
</compile_context>

<pallas_src>
import jax
import jax.numpy as jnp
from jax.experimental import pallas as pl
from jax.experimental.pallas import tpu as pltpu

# ------------------------- small synthetic config -------------------------
B = 2            # batch (sentence pairs)
S = 8            # sequence length
H = 32           # hidden size (xlm-roberta-large uses 1024; scaled down)
NUM_HEADS = 4
DH = H // NUM_HEADS          # real head dim = 8
FFN = 64         # intermediate size
LAYERS = 2       # encoder layers (24 in the real model; scaled down)
VOCAB = 100
NUM_LABELS = 3
LN_EPS = 1e-5

# lane-padded sizes (TPU vreg lane width = 128)
HP = 128                     # padded hidden
DHP = HP // NUM_HEADS        # padded per-head slot = 32 (real values in first DH lanes)
FP = 128                     # padded FFN intermediate
VP = 128                     # padded vocab (one-hot width)


# ------------------------------ kernel helpers ------------------------------
def _gelu_tanh(x):
    c = jnp.float32(0.7978845608028654)  # sqrt(2/pi)
    return 0.5 * x * (1.0 + jnp.tanh(c * (x + 0.044715 * x * x * x)))


def _masked_layer_norm(x, gamma, beta, feat_mask, inv_n):
    """LayerNorm over the first H (real) lanes of a lane-padded (rows, HP) slab.

    Padded lanes of x are zero on entry and stay exactly zero on exit
    (gamma/beta are zero-padded and centered values are masked)."""
    mean = jnp.sum(x, axis=-1, keepdims=True) * inv_n          # pads contribute 0
    cent = (x - mean) * feat_mask
    var = jnp.sum(cent * cent, axis=-1, keepdims=True) * inv_n
    return cent * jax.lax.rsqrt(var + LN_EPS) * gamma + beta


# ------------------------------- fused kernel -------------------------------
def nut_nli_fused_kernel(ids_ref, mask_ref,
                         wemb_ref, postype_ref, embg_ref, embb_ref,
                         wq_ref, bq_ref, wk_ref, bk_ref, wv_ref, bv_ref,
                         wo_ref, bo_ref, ln1g_ref, ln1b_ref,
                         w1_ref, b1_ref, w2_ref, b2_ref, ln2g_ref, ln2b_ref,
                         wd_ref, bd_ref, wp_ref, bp_ref,
                         out_ref):
    f32 = jnp.float32
    bf16 = jnp.bfloat16
    feat_mask = (jax.lax.broadcasted_iota(jnp.int32, (1, HP), 1) < H).astype(f32)
    inv_h = f32(1.0 / H)
    scale = f32(1.0 / (DH ** 0.5))   # real head dim, not the padded slot

    # ---- embeddings: one-hot matmul gather + pos/type add + LayerNorm ----
    ids = ids_ref[...]                                               # (B*S, 1) int32
    vocab_iota = jax.lax.broadcasted_iota(jnp.int32, (B * S, VP), 1)
    onehot = (vocab_iota == ids).astype(f32)                         # (B*S, VP)
    x = jnp.dot(onehot, wemb_ref[...], preferred_element_type=f32) + postype_ref[...]
    x = _masked_layer_norm(x, embg_ref[...], embb_ref[...], feat_mask, inv_h)

    # additive attention mask, applied in f32 (1.0 = attend, 0.0 = pad)
    add_mask = (1.0 - mask_ref[...])[:, None, :] * f32(-1e9)         # (B, 1, S)

    # ---- encoder layers: static unroll, all weights resident in VMEM ----
    for l in range(LAYERS):
        xb = x.astype(bf16)                                          # (B*S, HP)
        q = jnp.dot(xb, wq_ref[l], preferred_element_type=f32) + bq_ref[l]
        k = jnp.dot(xb, wk_ref[l], preferred_element_type=f32) + bk_ref[l]
        v = jnp.dot(xb, wv_ref[l], preferred_element_type=f32) + bv_ref[l]

        q3 = q.reshape(B, S, HP)
        k3 = k.reshape(B, S, HP)
        v3 = v.reshape(B, S, HP)

        head_ctx = []
        for hh in range(NUM_HEADS):      # static; each head owns a 32-lane padded slot
            sl = slice(hh * DHP, (hh + 1) * DHP)
            qh = q3[:, :, sl].astype(bf16)                           # (B, S, DHP)
            kh = k3[:, :, sl].astype(bf16)
            vh = v3[:, :, sl].astype(bf16)
            s = jnp.einsum('bqd,bkd->bqk', qh, kh,
                           preferred_element_type=f32) * scale       # (B, S, S)
            s = s + add_mask
            s = s - jnp.max(s, axis=-1, keepdims=True)
            p = jnp.exp(s)
            p = p * pl.reciprocal(jnp.sum(p, axis=-1, keepdims=True), approx=True)
            head_ctx.append(jnp.einsum('bqk,bkd->bqd', p.astype(bf16), vh,
                                       preferred_element_type=f32))
        ctx = jnp.concatenate(head_ctx, axis=-1).reshape(B * S, HP)  # lane-dense (B*S, 128)

        attn_out = jnp.dot(ctx.astype(bf16), wo_ref[l],
                           preferred_element_type=f32) + bo_ref[l]
        h1 = _masked_layer_norm(x + attn_out, ln1g_ref[l], ln1b_ref[l], feat_mask, inv_h)

        inter = _gelu_tanh(jnp.dot(h1.astype(bf16), w1_ref[l],
                                   preferred_element_type=f32) + b1_ref[l])
        ffn = jnp.dot(inter.astype(bf16), w2_ref[l],
                      preferred_element_type=f32) + b2_ref[l]
        x = _masked_layer_norm(h1 + ffn, ln2g_ref[l], ln2b_ref[l], feat_mask, inv_h)

    # ---- classification head: CLS token, dense + tanh, out_proj, softmax(dim=1) ----
    cls = x.reshape(B, S, HP)[:, 0, :]                               # (B, HP)
    hid = jnp.tanh(jnp.dot(cls.astype(bf16), wd_ref[...],
                           preferred_element_type=f32) + bd_ref[...])
    logits = jnp.dot(hid.astype(bf16), wp_ref[...],
                     preferred_element_type=f32) + bp_ref[...]       # (B, HP)
    lane = jax.lax.broadcasted_iota(jnp.int32, (B, HP), 1)
    logits = jnp.where(lane < NUM_LABELS, logits, f32(-1e30))        # mask pad classes
    m = jnp.max(logits, axis=-1, keepdims=True)
    e = jnp.exp(logits - m)
    out_ref[...] = e / jnp.sum(e, axis=-1, keepdims=True)            # lane-dense store


# ------------------------------ pallas wrapper ------------------------------
_VMEM = pl.BlockSpec(memory_space=pltpu.MemorySpace.VMEM)


def nut_nli_forward(padded, input_ids, attention_mask):
    ids_flat = input_ids.reshape(B * S, 1).astype(jnp.int32)
    mask_f = attention_mask.astype(jnp.float32)
    args = (ids_flat, mask_f,
            padded["wemb"], padded["postype"], padded["embg"], padded["embb"],
            padded["wq"], padded["bq"], padded["wk"], padded["bk"],
            padded["wv"], padded["bv"], padded["wo"], padded["bo"],
            padded["ln1g"], padded["ln1b"],
            padded["w1"], padded["b1"], padded["w2"], padded["b2"],
            padded["ln2g"], padded["ln2b"],
            padded["wd"], padded["bd"], padded["wp"], padded["bp"])
    # Empty grid: everything (weights + activations, ~0.7 MiB) is resident in VMEM.
    # At real model scale this would become a gridded kernel (layer axis 'arbitrary',
    # a batch/seq-tile axis 'parallel' for v7x's 2 TensorCores, FFN tiled over N).
    probs_padded = pl.pallas_call(
        nut_nli_fused_kernel,
        out_shape=jax.ShapeDtypeStruct((B, HP), jnp.float32),
        in_specs=[_VMEM] * len(args),
        out_specs=_VMEM,
    )(*args)
    return probs_padded[:, :NUM_LABELS]


# ------------------------------ parameter init ------------------------------
def init_params(key):
    ks = iter(jax.random.split(key, 16 + LAYERS * 20))

    def w(shape, scale=0.02):
        return (scale * jax.random.normal(next(ks), shape)).astype(jnp.float32)

    params = {
        "word_emb": w((VOCAB, H)),
        "pos_emb": w((S, H)),
        "type_emb": w((1, H)),
        "emb_ln_g": jnp.ones((1, H), jnp.float32),
        "emb_ln_b": jnp.zeros((1, H), jnp.float32),
        "layers": [],
        "cls_dense_w": w((H, H)),
        "cls_dense_b": jnp.zeros((1, H), jnp.float32),
        "cls_out_w": w((H, NUM_LABELS)),
        "cls_out_b": jnp.zeros((1, NUM_LABELS), jnp.float32),
    }
    for _ in range(LAYERS):
        layer = (
            w((H, H)), jnp.zeros((1, H), jnp.float32),    # 0,1  Wq, bq
            w((H, H)), jnp.zeros((1, H), jnp.float32),    # 2,3  Wk, bk
            w((H, H)), jnp.zeros((1, H), jnp.float32),    # 4,5  Wv, bv
            w((H, H)), jnp.zeros((1, H), jnp.float32),    # 6,7  Wo, bo
            jnp.ones((1, H), jnp.float32), jnp.zeros((1, H), jnp.float32),   # 8,9  LN1
            w((H, FFN)), jnp.zeros((1, FFN), jnp.float32),                   # 10,11 FFN in
            w((FFN, H)), jnp.zeros((1, H), jnp.float32),                     # 12,13 FFN out
            jnp.ones((1, H), jnp.float32), jnp.zeros((1, H), jnp.float32),   # 14,15 LN2
        )
        params["layers"].append(layer)
    return params


def pad_params(params):
    """Zero-pad weights to lane-dense 128-wide layouts (per-head 32-lane slots),
    stack per-layer weights on a leading LAYERS axis, cast matmul weights to bf16."""
    bf16 = jnp.bfloat16

    def pad2(x, rows, cols):
        return jnp.pad(x, ((0, rows - x.shape[0]), (0, cols - x.shape[1])))

    def pad_head_cols_w(wm):       # (H,H) -> (HP,HP); head h's output dims -> slot h
        out = jnp.zeros((HP, HP), jnp.float32)
        for h in range(NUM_HEADS):
            out = out.at[:H, h * DHP:h * DHP + DH].set(wm[:, h * DH:(h + 1) * DH])
        return out

    def pad_head_cols_b(bm):       # (1,H) -> (1,HP)
        out = jnp.zeros((1, HP), jnp.float32)
        for h in range(NUM_HEADS):
            out = out.at[:, h * DHP:h * DHP + DH].set(bm[:, h * DH:(h + 1) * DH])
        return out

    def pad_head_rows_w(wm):       # (H,H) -> (HP,HP); head h's input dims <- slot h
        out = jnp.zeros((HP, HP), jnp.float32)
        for h in range(NUM_HEADS):
            out = out.at[h * DHP:h * DHP + DH, :H].set(wm[h * DH:(h + 1) * DH, :])
        return out

    layers = params["layers"]
    stack = lambda fn, idx: jnp.stack([fn(layer[idx]) for layer in layers])

    pos_type = params["pos_emb"] + params["type_emb"]          # (S, H)
    postype_flat = jnp.tile(pos_type, (B, 1))                  # (B*S, H)

    return {
        "wemb": pad2(params["word_emb"], VP, HP),
        "postype": pad2(postype_flat, B * S, HP),
        "embg": pad2(params["emb_ln_g"], 1, HP),
        "embb": pad2(params["emb_ln_b"], 1, HP),
        "wq": stack(pad_head_cols_w, 0).astype(bf16),
        "bq": stack(pad_head_cols_b, 1),
        "wk": stack(pad_head_cols_w, 2).astype(bf16),
        "bk": stack(pad_head_cols_b, 3),
        "wv": stack(pad_head_cols_w, 4).astype(bf16),
        "bv": stack(pad_head_cols_b, 5),
        "wo": stack(pad_head_rows_w, 6).astype(bf16),
        "bo": stack(lambda b: pad2(b, 1, HP), 7),
        "ln1g": stack(lambda g: pad2(g, 1, HP), 8),
        "ln1b": stack(lambda b: pad2(b, 1, HP), 9),
        "w1": stack(lambda wm: pad2(wm, HP, FP), 10).astype(bf16),
        "b1": stack(lambda b: pad2(b, 1, FP), 11),
        "w2": stack(lambda wm: pad2(wm, FP, HP), 12).astype(bf16),
        "b2": stack(lambda b: pad2(b, 1, HP), 13),
        "ln2g": stack(lambda g: pad2(g, 1, HP), 14),
        "ln2b": stack(lambda b: pad2(b, 1, HP), 15),
        "wd": pad2(params["cls_dense_w"], HP, HP).astype(bf16),
        "bd": pad2(params["cls_dense_b"], 1, HP),
        "wp": pad2(params["cls_out_w"], HP, HP).astype(bf16),
        "bp": pad2(params["cls_out_b"], 1, HP),
    }


# ---------------------- pure-JAX f32 reference (unpadded) ----------------------
def _layer_norm_ref(x, gamma, beta):
    mean = jnp.mean(x, axis=-1, keepdims=True)
    var = jnp.mean((x - mean) ** 2, axis=-1, keepdims=True)
    return (x - mean) * jax.lax.rsqrt(var + LN_EPS) * gamma + beta


def reference_forward(params, input_ids, attention_mask):
    pos_ids = jnp.arange(S)
    x = (params["word_emb"][input_ids]
         + params["pos_emb"][pos_ids][None, :, :]
         + params["type_emb"][0][None, None, :])
    x = _layer_norm_ref(x, params["emb_ln_g"], params["emb_ln_b"])
    mask_f = attention_mask.astype(jnp.float32)
    add_mask = (1.0 - mask_f)[:, None, :] * (-1e9)
    scale = 1.0 / (DH ** 0.5)
    for (wq, bq, wk, bk, wv, bv, wo, bo, g1, be1, w1, bb1, w2, bb2, g2, be2) in params["layers"]:
        q = x @ wq + bq
        k = x @ wk + bk
        v = x @ wv + bv
        ctxs = []
        for h in range(NUM_HEADS):
            sl = slice(h * DH, (h + 1) * DH)
            s = jnp.einsum('bqd,bkd->bqk', q[..., sl], k[..., sl]) * scale + add_mask
            p = jax.nn.softmax(s, axis=-1)
            ctxs.append(jnp.einsum('bqk,bkd->bqd', p, v[..., sl]))
        ctx = jnp.concatenate(ctxs, axis=-1)
        h1 = _layer_norm_ref(x + ctx @ wo + bo, g1, be1)
        inter = _gelu_tanh(h1 @ w1 + bb1)
        x = _layer_norm_ref(h1 + inter @ w2 + bb2, g2, be2)
    cls = x[:, 0, :]
    hid = jnp.tanh(cls @ params["cls_dense_w"] + params["cls_dense_b"])
    logits = hid @ params["cls_out_w"] + params["cls_out_b"]
    return jax.nn.softmax(logits, axis=1)


# ------------------------------------ main ------------------------------------
if __name__ == "__main__":
    key = jax.random.PRNGKey(0)
    pkey, ikey = jax.random.split(key)
    params = init_params(pkey)
    padded = pad_params(params)

    input_ids = jax.random.randint(ikey, (B, S), 0, VOCAB, dtype=jnp.int32)
    attention_mask = jnp.array(
        [[1] * S,
         [1] * (S - 2) + [0, 0]], dtype=jnp.int32)  # second pair has padding

    probs = nut_nli_forward(padded, input_ids, attention_mask)
    probs = jax.block_until_ready(probs)

    ref = reference_forward(params, input_ids, attention_mask)

    assert probs.shape == (B, NUM_LABELS)
    assert bool(jnp.all(jnp.isfinite(probs)))
    assert bool(jnp.allclose(jnp.sum(probs, axis=1), 1.0, atol=1e-4))
    # bf16 matmuls + approx reciprocal vs f32 reference -> loose tolerance
    assert bool(jnp.allclose(probs, ref, atol=5e-2))
    print("KERNEL_OK")
</pallas_src>

<mosaic_0001>
module attributes {stable_mosaic.version = 11 : i64} {
  func.func @nut_nli_fused_kernel(%arg0: memref<16x1xi32, #tpu.memory_space<vmem>>, %arg1: memref<2x8xf32, #tpu.memory_space<vmem>>, %arg2: memref<128x128xf32, #tpu.memory_space<vmem>>, %arg3: memref<16x128xf32, #tpu.memory_space<vmem>>, %arg4: memref<1x128xf32, #tpu.memory_space<vmem>>, %arg5: memref<1x128xf32, #tpu.memory_space<vmem>>, %arg6: memref<2x128x128xbf16, #tpu.memory_space<vmem>>, %arg7: memref<2x1x128xf32, #tpu.memory_space<vmem>>, %arg8: memref<2x128x128xbf16, #tpu.memory_space<vmem>>, %arg9: memref<2x1x128xf32, #tpu.memory_space<vmem>>, %arg10: memref<2x128x128xbf16, #tpu.memory_space<vmem>>, %arg11: memref<2x1x128xf32, #tpu.memory_space<vmem>>, %arg12: memref<2x128x128xbf16, #tpu.memory_space<vmem>>, %arg13: memref<2x1x128xf32, #tpu.memory_space<vmem>>, %arg14: memref<2x1x128xf32, #tpu.memory_space<vmem>>, %arg15: memref<2x1x128xf32, #tpu.memory_space<vmem>>, %arg16: memref<2x128x128xbf16, #tpu.memory_space<vmem>>, %arg17: memref<2x1x128xf32, #tpu.memory_space<vmem>>, %arg18: memref<2x128x128xbf16, #tpu.memory_space<vmem>>, %arg19: memref<2x1x128xf32, #tpu.memory_space<vmem>>, %arg20: memref<2x1x128xf32, #tpu.memory_space<vmem>>, %arg21: memref<2x1x128xf32, #tpu.memory_space<vmem>>, %arg22: memref<128x128xbf16, #tpu.memory_space<vmem>>, %arg23: memref<1x128xf32, #tpu.memory_space<vmem>>, %arg24: memref<128x128xbf16, #tpu.memory_space<vmem>>, %arg25: memref<1x128xf32, #tpu.memory_space<vmem>>, %arg26: memref<2x128xf32, #tpu.memory_space<vmem>>) attributes {dimension_semantics = [], scalar_prefetch = 0 : i64, scratch_operands = 0 : i64, tpu.core_type = #tpu.core_type<tc>} {
    %0 = tpu.iota {dimensions = array<i32: 1>} : vector<1x128xi32>
    %c32_i32 = arith.constant 32 : i32
    %1 = vector.broadcast %c32_i32 : i32 to vector<1x128xi32>
    %2 = arith.cmpi slt, %0, %1 : vector<1x128xi32>
    %3 = arith.extui %2 : vector<1x128xi1> to vector<1x128xi32>
    %4 = arith.sitofp %3 : vector<1x128xi32> to vector<1x128xf32>
    %c0 = arith.constant 0 : index
    %c0_0 = arith.constant 0 : index
    %5 = vector.load %arg0[%c0, %c0_0] : memref<16x1xi32, #tpu.memory_space<vmem>>, vector<16x1xi32>
    %6 = tpu.iota {dimensions = array<i32: 1>} : vector<16x128xi32>
    %7 = vector.broadcast %5 : vector<16x1xi32> to vector<16x128xi32>
    %8 = arith.cmpi eq, %6, %7 : vector<16x128xi32>
    %9 = arith.extui %8 : vector<16x128xi1> to vector<16x128xi32>
    %10 = arith.sitofp %9 : vector<16x128xi32> to vector<16x128xf32>
    %c0_1 = arith.constant 0 : index
    %c0_2 = arith.constant 0 : index
    %11 = vector.load %arg2[%c0_1, %c0_2] : memref<128x128xf32, #tpu.memory_space<vmem>>, vector<128x128xf32>
    %cst = arith.constant dense<0.000000e+00> : vector<16x128xf32>
    %12 = tpu.matmul %10, %11, %cst {dimension_numbers = #tpu.dot_dimension_numbers<[1], [0], [0], [1], [0, 0, 1, 1], [], []>} : vector<16x128xf32>, vector<128x128xf32>, vector<16x128xf32> -> vector<16x128xf32>
    %c0_3 = arith.constant 0 : index
    %c0_4 = arith.constant 0 : index
    %13 = vector.load %arg3[%c0_3, %c0_4] : memref<16x128xf32, #tpu.memory_space<vmem>>, vector<16x128xf32>
    %14 = arith.addf %12, %13 : vector<16x128xf32>
    %c0_5 = arith.constant 0 : index
    %c0_6 = arith.constant 0 : index
    %15 = vector.load %arg4[%c0_5, %c0_6] : memref<1x128xf32, #tpu.memory_space<vmem>>, vector<1x128xf32>
    %c0_7 = arith.constant 0 : index
    %c0_8 = arith.constant 0 : index
    %16 = vector.load %arg5[%c0_7, %c0_8] : memref<1x128xf32, #tpu.memory_space<vmem>>, vector<1x128xf32>
    %cst_9 = arith.constant dense<0.000000e+00> : vector<16xf32>
    %17 = vector.multi_reduction <add>, %14, %cst_9 [1] : vector<16x128xf32> to vector<16xf32>
    %18 = vector.shape_cast %17 : vector<16xf32> to vector<16x1xf32>
    %cst_10 = arith.constant 3.125000e-02 : f32
    %19 = vector.broadcast %cst_10 : f32 to vector<16x1xf32>
    %20 = arith.mulf %18, %19 : vector<16x1xf32>
    %21 = vector.broadcast %20 : vector<16x1xf32> to vector<16x128xf32>
    %22 = arith.subf %14, %21 : vector<16x128xf32>
    %23 = vector.broadcast %4 : vector<1x128xf32> to vector<16x128xf32>
    %24 = arith.mulf %22, %23 : vector<16x128xf32>
    %25 = arith.mulf %24, %24 : vector<16x128xf32>
    %cst_11 = arith.constant dense<0.000000e+00> : vector<16xf32>
    %26 = vector.multi_reduction <add>, %25, %cst_11 [1] : vector<16x128xf32> to vector<16xf32>
    %27 = vector.shape_cast %26 : vector<16xf32> to vector<16x1xf32>
    %cst_12 = arith.constant 3.125000e-02 : f32
    %28 = vector.broadcast %cst_12 : f32 to vector<16x1xf32>
    %29 = arith.mulf %27, %28 : vector<16x1xf32>
    %cst_13 = arith.constant 9.99999974E-6 : f32
    %30 = vector.broadcast %cst_13 : f32 to vector<16x1xf32>
    %31 = arith.addf %29, %30 : vector<16x1xf32>
    %32 = math.rsqrt %31 : vector<16x1xf32>
    %33 = vector.broadcast %32 : vector<16x1xf32> to vector<16x128xf32>
    %34 = arith.mulf %24, %33 : vector<16x128xf32>
    %35 = vector.broadcast %15 : vector<1x128xf32> to vector<16x128xf32>
    %36 = arith.mulf %34, %35 : vector<16x128xf32>
    %37 = vector.broadcast %16 : vector<1x128xf32> to vector<16x128xf32>
    %38 = arith.addf %36, %37 : vector<16x128xf32>
    %c0_14 = arith.constant 0 : index
    %c0_15 = arith.constant 0 : index
    %39 = vector.load %arg1[%c0_14, %c0_15] : memref<2x8xf32, #tpu.memory_space<vmem>>, vector<2x8xf32>
    %cst_16 = arith.constant 1.000000e+00 : f32
    %40 = vector.broadcast %cst_16 : f32 to vector<2x8xf32>
    %41 = arith.subf %40, %39 : vector<2x8xf32>
    %42 = vector.shape_cast %41 : vector<2x8xf32> to vector<2x1x8xf32>
    %cst_17 = arith.constant -1.000000e+09 : f32
    %43 = vector.broadcast %cst_17 : f32 to vector<2x1x8xf32>
    %44 = arith.mulf %42, %43 : vector<2x1x8xf32>
    %45 = arith.truncf %38 : vector<16x128xf32> to vector<16x128xbf16>
    %c0_18 = arith.constant 0 : index
    %c0_19 = arith.constant 0 : index
    %c0_20 = arith.constant 0 : index
    %46 = vector.load %arg6[%c0_18, %c0_19, %c0_20] : memref<2x128x128xbf16, #tpu.memory_space<vmem>>, vector<1x128x128xbf16>
    %47 = vector.shape_cast %46 : vector<1x128x128xbf16> to vector<128x128xbf16>
    %cst_21 = arith.constant dense<0.000000e+00> : vector<16x128xf32>
    %48 = tpu.matmul %45, %47, %cst_21 {dimension_numbers = #tpu.dot_dimension_numbers<[1], [0], [0], [1], [0, 0, 1, 1], [], []>} : vector<16x128xbf16>, vector<128x128xbf16>, vector<16x128xf32> -> vector<16x128xf32>
    %c0_22 = arith.constant 0 : index
    %c0_23 = arith.constant 0 : index
    %c0_24 = arith.constant 0 : index
    %49 = vector.load %arg7[%c0_22, %c0_23, %c0_24] : memref<2x1x128xf32, #tpu.memory_space<vmem>>, vector<1x1x128xf32>
    %50 = vector.shape_cast %49 : vector<1x1x128xf32> to vector<1x128xf32>
    %51 = vector.broadcast %50 : vector<1x128xf32> to vector<16x128xf32>
    %52 = arith.addf %48, %51 : vector<16x128xf32>
    %c0_25 = arith.constant 0 : index
    %c0_26 = arith.constant 0 : index
    %c0_27 = arith.constant 0 : index
    %53 = vector.load %arg8[%c0_25, %c0_26, %c0_27] : memref<2x128x128xbf16, #tpu.memory_space<vmem>>, vector<1x128x128xbf16>
    %54 = vector.shape_cast %53 : vector<1x128x128xbf16> to vector<128x128xbf16>
    %cst_28 = arith.constant dense<0.000000e+00> : vector<16x128xf32>
    %55 = tpu.matmul %45, %54, %cst_28 {dimension_numbers = #tpu.dot_dimension_numbers<[1], [0], [0], [1], [0, 0, 1, 1], [], []>} : vector<16x128xbf16>, vector<128x128xbf16>, vector<16x128xf32> -> vector<16x128xf32>
    %c0_29 = arith.constant 0 : index
    %c0_30 = arith.constant 0 : index
    %c0_31 = arith.constant 0 : index
    %56 = vector.load %arg9[%c0_29, %c0_30, %c0_31] : memref<2x1x128xf32, #tpu.memory_space<vmem>>, vector<1x1x128xf32>
    %57 = vector.shape_cast %56 : vector<1x1x128xf32> to vector<1x128xf32>
    %58 = vector.broadcast %57 : vector<1x128xf32> to vector<16x128xf32>
    %59 = arith.addf %55, %58 : vector<16x128xf32>
    %c0_32 = arith.constant 0 : index
    %c0_33 = arith.constant 0 : index
    %c0_34 = arith.constant 0 : index
    %60 = vector.load %arg10[%c0_32, %c0_33, %c0_34] : memref<2x128x128xbf16, #tpu.memory_space<vmem>>, vector<1x128x128xbf16>
    %61 = vector.shape_cast %60 : vector<1x128x128xbf16> to vector<128x128xbf16>
    %cst_35 = arith.constant dense<0.000000e+00> : vector<16x128xf32>
    %62 = tpu.matmul %45, %61, %cst_35 {dimension_numbers = #tpu.dot_dimension_numbers<[1], [0], [0], [1], [0, 0, 1, 1], [], []>} : vector<16x128xbf16>, vector<128x128xbf16>, vector<16x128xf32> -> vector<16x128xf32>
    %c0_36 = arith.constant 0 : index
    %c0_37 = arith.constant 0 : index
    %c0_38 = arith.constant 0 : index
    %63 = vector.load %arg11[%c0_36, %c0_37, %c0_38] : memref<2x1x128xf32, #tpu.memory_space<vmem>>, vector<1x1x128xf32>
    %64 = vector.shape_cast %63 : vector<1x1x128xf32> to vector<1x128xf32>
    %65 = vector.broadcast %64 : vector<1x128xf32> to vector<16x128xf32>
    %66 = arith.addf %62, %65 : vector<16x128xf32>
    %67 = vector.shape_cast %52 : vector<16x128xf32> to vector<2x8x128xf32>
    %68 = vector.shape_cast %59 : vector<16x128xf32> to vector<2x8x128xf32>
    %69 = vector.shape_cast %66 : vector<16x128xf32> to vector<2x8x128xf32>
    %70 = vector.extract_strided_slice %67 {offsets = [0, 0, 0], sizes = [2, 8, 32], strides = [1, 1, 1]} : vector<2x8x128xf32> to vector<2x8x32xf32>
    %71 = arith.truncf %70 : vector<2x8x32xf32> to vector<2x8x32xbf16>
    %72 = vector.extract_strided_slice %68 {offsets = [0, 0, 0], sizes = [2, 8, 32], strides = [1, 1, 1]} : vector<2x8x128xf32> to vector<2x8x32xf32>
    %73 = arith.truncf %72 : vector<2x8x32xf32> to vector<2x8x32xbf16>
    %74 = vector.extract_strided_slice %69 {offsets = [0, 0, 0], sizes = [2, 8, 32], strides = [1, 1, 1]} : vector<2x8x128xf32> to vector<2x8x32xf32>
    %75 = arith.truncf %74 : vector<2x8x32xf32> to vector<2x8x32xbf16>
    "tpu.trace_start"() <{level = 10 : i32, message = "bqd,bkd->bqk"}> : () -> ()
    %cst_39 = arith.constant dense<0.000000e+00> : vector<2x8x8xf32>
    %76 = tpu.matmul %71, %73, %cst_39 {dimension_numbers = #tpu.dot_dimension_numbers<[2], [2], [1], [1], [0, 0, 0, 1, 1, 1], [0], [0]>} : vector<2x8x32xbf16>, vector<2x8x32xbf16>, vector<2x8x8xf32> -> vector<2x8x8xf32>
    "tpu.trace_stop"() : () -> ()
    %cst_40 = arith.constant 0.353553385 : f32
    %77 = vector.broadcast %cst_40 : f32 to vector<2x8x8xf32>
    %78 = arith.mulf %76, %77 : vector<2x8x8xf32>
    %79 = vector.broadcast %44 : vector<2x1x8xf32> to vector<2x8x8xf32>
    %80 = arith.addf %78, %79 : vector<2x8x8xf32>
    %cst_41 = arith.constant dense<0xFF800000> : vector<2x8xf32>
    %81 = vector.multi_reduction <maximumf>, %80, %cst_41 [2] : vector<2x8x8xf32> to vector<2x8xf32>
    %82 = vector.shape_cast %81 : vector<2x8xf32> to vector<2x8x1xf32>
    %83 = vector.broadcast %82 : vector<2x8x1xf32> to vector<2x8x8xf32>
    %84 = arith.subf %80, %83 : vector<2x8x8xf32>
    %85 = math.exp %84 : vector<2x8x8xf32>
    %cst_42 = arith.constant dense<0.000000e+00> : vector<2x8xf32>
    %86 = vector.multi_reduction <add>, %85, %cst_42 [2] : vector<2x8x8xf32> to vector<2x8xf32>
    %87 = vector.shape_cast %86 : vector<2x8xf32> to vector<2x8x1xf32>
    %88 = tpu.reciprocal %87 {approx = true} : vector<2x8x1xf32> -> vector<2x8x1xf32>
    %89 = vector.broadcast %88 : vector<2x8x1xf32> to vector<2x8x8xf32>
    %90 = arith.mulf %85, %89 : vector<2x8x8xf32>
    %91 = arith.truncf %90 : vector<2x8x8xf32> to vector<2x8x8xbf16>
    "tpu.trace_start"() <{level = 10 : i32, message = "bqk,bkd->bqd"}> : () -> ()
    %cst_43 = arith.constant dense<0.000000e+00> : vector<2x8x32xf32>
    %92 = tpu.matmul %91, %75, %cst_43 {dimension_numbers = #tpu.dot_dimension_numbers<[2], [1], [1], [2], [0, 0, 0, 1, 1, 2], [0], [0]>} : vector<2x8x8xbf16>, vector<2x8x32xbf16>, vector<2x8x32xf32> -> vector<2x8x32xf32>
    "tpu.trace_stop"() : () -> ()
    %93 = vector.extract_strided_slice %67 {offsets = [0, 0, 32], sizes = [2, 8, 32], strides = [1, 1, 1]} : vector<2x8x128xf32> to vector<2x8x32xf32>
    %94 = arith.truncf %93 : vector<2x8x32xf32> to vector<2x8x32xbf16>
    %95 = vector.extract_strided_slice %68 {offsets = [0, 0, 32], sizes = [2, 8, 32], strides = [1, 1, 1]} : vector<2x8x128xf32> to vector<2x8x32xf32>
    %96 = arith.truncf %95 : vector<2x8x32xf32> to vector<2x8x32xbf16>
    %97 = vector.extract_strided_slice %69 {offsets = [0, 0, 32], sizes = [2, 8, 32], strides = [1, 1, 1]} : vector<2x8x128xf32> to vector<2x8x32xf32>
    %98 = arith.truncf %97 : vector<2x8x32xf32> to vector<2x8x32xbf16>
    "tpu.trace_start"() <{level = 10 : i32, message = "bqd,bkd->bqk"}> : () -> ()
    %cst_44 = arith.constant dense<0.000000e+00> : vector<2x8x8xf32>
    %99 = tpu.matmul %94, %96, %cst_44 {dimension_numbers = #tpu.dot_dimension_numbers<[2], [2], [1], [1], [0, 0, 0, 1, 1, 1], [0], [0]>} : vector<2x8x32xbf16>, vector<2x8x32xbf16>, vector<2x8x8xf32> -> vector<2x8x8xf32>
    "tpu.trace_stop"() : () -> ()
    %cst_45 = arith.constant 0.353553385 : f32
    %100 = vector.broadcast %cst_45 : f32 to vector<2x8x8xf32>
    %101 = arith.mulf %99, %100 : vector<2x8x8xf32>
    %102 = vector.broadcast %44 : vector<2x1x8xf32> to vector<2x8x8xf32>
    %103 = arith.addf %101, %102 : vector<2x8x8xf32>
    %cst_46 = arith.constant dense<0xFF800000> : vector<2x8xf32>
    %104 = vector.multi_reduction <maximumf>, %103, %cst_46 [2] : vector<2x8x8xf32> to vector<2x8xf32>
    %105 = vector.shape_cast %104 : vector<2x8xf32> to vector<2x8x1xf32>
    %106 = vector.broadcast %105 : vector<2x8x1xf32> to vector<2x8x8xf32>
    %107 = arith.subf %103, %106 : vector<2x8x8xf32>
    %108 = math.exp %107 : vector<2x8x8xf32>
    %cst_47 = arith.constant dense<0.000000e+00> : vector<2x8xf32>
    %109 = vector.multi_reduction <add>, %108, %cst_47 [2] : vector<2x8x8xf32> to vector<2x8xf32>
    %110 = vector.shape_cast %109 : vector<2x8xf32> to vector<2x8x1xf32>
    %111 = tpu.reciprocal %110 {approx = true} : vector<2x8x1xf32> -> vector<2x8x1xf32>
    %112 = vector.broadcast %111 : vector<2x8x1xf32> to vector<2x8x8xf32>
    %113 = arith.mulf %108, %112 : vector<2x8x8xf32>
    %114 = arith.truncf %113 : vector<2x8x8xf32> to vector<2x8x8xbf16>
    "tpu.trace_start"() <{level = 10 : i32, message = "bqk,bkd->bqd"}> : () -> ()
    %cst_48 = arith.constant dense<0.000000e+00> : vector<2x8x32xf32>
    %115 = tpu.matmul %114, %98, %cst_48 {dimension_numbers = #tpu.dot_dimension_numbers<[2], [1], [1], [2], [0, 0, 0, 1, 1, 2], [0], [0]>} : vector<2x8x8xbf16>, vector<2x8x32xbf16>, vector<2x8x32xf32> -> vector<2x8x32xf32>
    "tpu.trace_stop"() : () -> ()
    %116 = vector.extract_strided_slice %67 {offsets = [0, 0, 64], sizes = [2, 8, 32], strides = [1, 1, 1]} : vector<2x8x128xf32> to vector<2x8x32xf32>
    %117 = arith.truncf %116 : vector<2x8x32xf32> to vector<2x8x32xbf16>
    %118 = vector.extract_strided_slice %68 {offsets = [0, 0, 64], sizes = [2, 8, 32], strides = [1, 1, 1]} : vector<2x8x128xf32> to vector<2x8x32xf32>
    %119 = arith.truncf %118 : vector<2x8x32xf32> to vector<2x8x32xbf16>
    %120 = vector.extract_strided_slice %69 {offsets = [0, 0, 64], sizes = [2, 8, 32], strides = [1, 1, 1]} : vector<2x8x128xf32> to vector<2x8x32xf32>
    %121 = arith.truncf %120 : vector<2x8x32xf32> to vector<2x8x32xbf16>
    "tpu.trace_start"() <{level = 10 : i32, message = "bqd,bkd->bqk"}> : () -> ()
    %cst_49 = arith.constant dense<0.000000e+00> : vector<2x8x8xf32>
    %122 = tpu.matmul %117, %119, %cst_49 {dimension_numbers = #tpu.dot_dimension_numbers<[2], [2], [1], [1], [0, 0, 0, 1, 1, 1], [0], [0]>} : vector<2x8x32xbf16>, vector<2x8x32xbf16>, vector<2x8x8xf32> -> vector<2x8x8xf32>
    "tpu.trace_stop"() : () -> ()
    %cst_50 = arith.constant 0.353553385 : f32
    %123 = vector.broadcast %cst_50 : f32 to vector<2x8x8xf32>
    %124 = arith.mulf %122, %123 : vector<2x8x8xf32>
    %125 = vector.broadcast %44 : vector<2x1x8xf32> to vector<2x8x8xf32>
    %126 = arith.addf %124, %125 : vector<2x8x8xf32>
    %cst_51 = arith.constant dense<0xFF800000> : vector<2x8xf32>
    %127 = vector.multi_reduction <maximumf>, %126, %cst_51 [2] : vector<2x8x8xf32> to vector<2x8xf32>
    %128 = vector.shape_cast %127 : vector<2x8xf32> to vector<2x8x1xf32>
    %129 = vector.broadcast %128 : vector<2x8x1xf32> to vector<2x8x8xf32>
    %130 = arith.subf %126, %129 : vector<2x8x8xf32>
    %131 = math.exp %130 : vector<2x8x8xf32>
    %cst_52 = arith.constant dense<0.000000e+00> : vector<2x8xf32>
    %132 = vector.multi_reduction <add>, %131, %cst_52 [2] : vector<2x8x8xf32> to vector<2x8xf32>
    %133 = vector.shape_cast %132 : vector<2x8xf32> to vector<2x8x1xf32>
    %134 = tpu.reciprocal %133 {approx = true} : vector<2x8x1xf32> -> vector<2x8x1xf32>
    %135 = vector.broadcast %134 : vector<2x8x1xf32> to vector<2x8x8xf32>
    %136 = arith.mulf %131, %135 : vector<2x8x8xf32>
    %137 = arith.truncf %136 : vector<2x8x8xf32> to vector<2x8x8xbf16>
    "tpu.trace_start"() <{level = 10 : i32, message = "bqk,bkd->bqd"}> : () -> ()
    %cst_53 = arith.constant dense<0.000000e+00> : vector<2x8x32xf32>
    %138 = tpu.matmul %137, %121, %cst_53 {dimension_numbers = #tpu.dot_dimension_numbers<[2], [1], [1], [2], [0, 0, 0, 1, 1, 2], [0], [0]>} : vector<2x8x8xbf16>, vector<2x8x32xbf16>, vector<2x8x32xf32> -> vector<2x8x32xf32>
    "tpu.trace_stop"() : () -> ()
    %139 = vector.extract_strided_slice %67 {offsets = [0, 0, 96], sizes = [2, 8, 32], strides = [1, 1, 1]} : vector<2x8x128xf32> to vector<2x8x32xf32>
    %140 = arith.truncf %139 : vector<2x8x32xf32> to vector<2x8x32xbf16>
    %141 = vector.extract_strided_slice %68 {offsets = [0, 0, 96], sizes = [2, 8, 32], strides = [1, 1, 1]} : vector<2x8x128xf32> to vector<2x8x32xf32>
    %142 = arith.truncf %141 : vector<2x8x32xf32> to vector<2x8x32xbf16>
    %143 = vector.extract_strided_slice %69 {offsets = [0, 0, 96], sizes = [2, 8, 32], strides = [1, 1, 1]} : vector<2x8x128xf32> to vector<2x8x32xf32>
    %144 = arith.truncf %143 : vector<2x8x32xf32> to vector<2x8x32xbf16>
    "tpu.trace_start"() <{level = 10 : i32, message = "bqd,bkd->bqk"}> : () -> ()
    %cst_54 = arith.constant dense<0.000000e+00> : vector<2x8x8xf32>
    %145 = tpu.matmul %140, %142, %cst_54 {dimension_numbers = #tpu.dot_dimension_numbers<[2], [2], [1], [1], [0, 0, 0, 1, 1, 1], [0], [0]>} : vector<2x8x32xbf16>, vector<2x8x32xbf16>, vector<2x8x8xf32> -> vector<2x8x8xf32>
    "tpu.trace_stop"() : () -> ()
    %cst_55 = arith.constant 0.353553385 : f32
    %146 = vector.broadcast %cst_55 : f32 to vector<2x8x8xf32>
    %147 = arith.mulf %145, %146 : vector<2x8x8xf32>
    %148 = vector.broadcast %44 : vector<2x1x8xf32> to vector<2x8x8xf32>
    %149 = arith.addf %147, %148 : vector<2x8x8xf32>
    %cst_56 = arith.constant dense<0xFF800000> : vector<2x8xf32>
    %150 = vector.multi_reduction <maximumf>, %149, %cst_56 [2] : vector<2x8x8xf32> to vector<2x8xf32>
    %151 = vector.shape_cast %150 : vector<2x8xf32> to vector<2x8x1xf32>
    %152 = vector.broadcast %151 : vector<2x8x1xf32> to vector<2x8x8xf32>
    %153 = arith.subf %149, %152 : vector<2x8x8xf32>
    %154 = math.exp %153 : vector<2x8x8xf32>
    %cst_57 = arith.constant dense<0.000000e+00> : vector<2x8xf32>
    %155 = vector.multi_reduction <add>, %154, %cst_57 [2] : vector<2x8x8xf32> to vector<2x8xf32>
    %156 = vector.shape_cast %155 : vector<2x8xf32> to vector<2x8x1xf32>
    %157 = tpu.reciprocal %156 {approx = true} : vector<2x8x1xf32> -> vector<2x8x1xf32>
    %158 = vector.broadcast %157 : vector<2x8x1xf32> to vector<2x8x8xf32>
    %159 = arith.mulf %154, %158 : vector<2x8x8xf32>
    %160 = arith.truncf %159 : vector<2x8x8xf32> to vector<2x8x8xbf16>
    "tpu.trace_start"() <{level = 10 : i32, message = "bqk,bkd->bqd"}> : () -> ()
    %cst_58 = arith.constant dense<0.000000e+00> : vector<2x8x32xf32>
    %161 = tpu.matmul %160, %144, %cst_58 {dimension_numbers = #tpu.dot_dimension_numbers<[2], [1], [1], [2], [0, 0, 0, 1, 1, 2], [0], [0]>} : vector<2x8x8xbf16>, vector<2x8x32xbf16>, vector<2x8x32xf32> -> vector<2x8x32xf32>
    "tpu.trace_stop"() : () -> ()
    %162 = tpu.concatenate %92, %115, %138, %161 in 2 : vector<2x8x32xf32>, vector<2x8x32xf32>, vector<2x8x32xf32>, vector<2x8x32xf32> -> vector<2x8x128xf32>
    %163 = vector.shape_cast %162 : vector<2x8x128xf32> to vector<16x128xf32>
    %164 = arith.truncf %163 : vector<16x128xf32> to vector<16x128xbf16>
    %c0_59 = arith.constant 0 : index
    %c0_60 = arith.constant 0 : index
    %c0_61 = arith.constant 0 : index
    %165 = vector.load %arg12[%c0_59, %c0_60, %c0_61] : memref<2x128x128xbf16, #tpu.memory_space<vmem>>, vector<1x128x128xbf16>
    %166 = vector.shape_cast %165 : vector<1x128x128xbf16> to vector<128x128xbf16>
    %cst_62 = arith.constant dense<0.000000e+00> : vector<16x128xf32>
    %167 = tpu.matmul %164, %166, %cst_62 {dimension_numbers = #tpu.dot_dimension_numbers<[1], [0], [0], [1], [0, 0, 1, 1], [], []>} : vector<16x128xbf16>, vector<128x128xbf16>, vector<16x128xf32> -> vector<16x128xf32>
    %c0_63 = arith.constant 0 : index
    %c0_64 = arith.constant 0 : index
    %c0_65 = arith.constant 0 : index
    %168 = vector.load %arg13[%c0_63, %c0_64, %c0_65] : memref<2x1x128xf32, #tpu.memory_space<vmem>>, vector<1x1x128xf32>
    %169 = vector.shape_cast %168 : vector<1x1x128xf32> to vector<1x128xf32>
    %170 = vector.broadcast %169 : vector<1x128xf32> to vector<16x128xf32>
    %171 = arith.addf %167, %170 : vector<16x128xf32>
    %172 = arith.addf %38, %171 : vector<16x128xf32>
    %c0_66 = arith.constant 0 : index
    %c0_67 = arith.constant 0 : index
    %c0_68 = arith.constant 0 : index
    %173 = vector.load %arg14[%c0_66, %c0_67, %c0_68] : memref<2x1x128xf32, #tpu.memory_space<vmem>>, vector<1x1x128xf32>
    %174 = vector.shape_cast %173 : vector<1x1x128xf32> to vector<1x128xf32>
    %c0_69 = arith.constant 0 : index
    %c0_70 = arith.constant 0 : index
    %c0_71 = arith.constant 0 : index
    %175 = vector.load %arg15[%c0_69, %c0_70, %c0_71] : memref<2x1x128xf32, #tpu.memory_space<vmem>>, vector<1x1x128xf32>
    %176 = vector.shape_cast %175 : vector<1x1x128xf32> to vector<1x128xf32>
    %cst_72 = arith.constant dense<0.000000e+00> : vector<16xf32>
    %177 = vector.multi_reduction <add>, %172, %cst_72 [1] : vector<16x128xf32> to vector<16xf32>
    %178 = vector.shape_cast %177 : vector<16xf32> to vector<16x1xf32>
    %cst_73 = arith.constant 3.125000e-02 : f32
    %179 = vector.broadcast %cst_73 : f32 to vector<16x1xf32>
    %180 = arith.mulf %178, %179 : vector<16x1xf32>
    %181 = vector.broadcast %180 : vector<16x1xf32> to vector<16x128xf32>
    %182 = arith.subf %172, %181 : vector<16x128xf32>
    %183 = vector.broadcast %4 : vector<1x128xf32> to vector<16x128xf32>
    %184 = arith.mulf %182, %183 : vector<16x128xf32>
    %185 = arith.mulf %184, %184 : vector<16x128xf32>
    %cst_74 = arith.constant dense<0.000000e+00> : vector<16xf32>
    %186 = vector.multi_reduction <add>, %185, %cst_74 [1] : vector<16x128xf32> to vector<16xf32>
    %187 = vector.shape_cast %186 : vector<16xf32> to vector<16x1xf32>
    %cst_75 = arith.constant 3.125000e-02 : f32
    %188 = vector.broadcast %cst_75 : f32 to vector<16x1xf32>
    %189 = arith.mulf %187, %188 : vector<16x1xf32>
    %cst_76 = arith.constant 9.99999974E-6 : f32
    %190 = vector.broadcast %cst_76 : f32 to vector<16x1xf32>
    %191 = arith.addf %189, %190 : vector<16x1xf32>
    %192 = math.rsqrt %191 : vector<16x1xf32>
    %193 = vector.broadcast %192 : vector<16x1xf32> to vector<16x128xf32>
    %194 = arith.mulf %184, %193 : vector<16x128xf32>
    %195 = vector.broadcast %174 : vector<1x128xf32> to vector<16x128xf32>
    %196 = arith.mulf %194, %195 : vector<16x128xf32>
    %197 = vector.broadcast %176 : vector<1x128xf32> to vector<16x128xf32>
    %198 = arith.addf %196, %197 : vector<16x128xf32>
    %199 = arith.truncf %198 : vector<16x128xf32> to vector<16x128xbf16>
    %c0_77 = arith.constant 0 : index
    %c0_78 = arith.constant 0 : index
    %c0_79 = arith.constant 0 : index
    %200 = vector.load %arg16[%c0_77, %c0_78, %c0_79] : memref<2x128x128xbf16, #tpu.memory_space<vmem>>, vector<1x128x128xbf16>
    %201 = vector.shape_cast %200 : vector<1x128x128xbf16> to vector<128x128xbf16>
    %cst_80 = arith.constant dense<0.000000e+00> : vector<16x128xf32>
    %202 = tpu.matmul %199, %201, %cst_80 {dimension_numbers = #tpu.dot_dimension_numbers<[1], [0], [0], [1], [0, 0, 1, 1], [], []>} : vector<16x128xbf16>, vector<128x128xbf16>, vector<16x128xf32> -> vector<16x128xf32>
    %c0_81 = arith.constant 0 : index
    %c0_82 = arith.constant 0 : index
    %c0_83 = arith.constant 0 : index
    %203 = vector.load %arg17[%c0_81, %c0_82, %c0_83] : memref<2x1x128xf32, #tpu.memory_space<vmem>>, vector<1x1x128xf32>
    %204 = vector.shape_cast %203 : vector<1x1x128xf32> to vector<1x128xf32>
    %205 = vector.broadcast %204 : vector<1x128xf32> to vector<16x128xf32>
    %206 = arith.addf %202, %205 : vector<16x128xf32>
    %cst_84 = arith.constant 5.000000e-01 : f32
    %207 = vector.broadcast %cst_84 : f32 to vector<16x128xf32>
    %208 = arith.mulf %207, %206 : vector<16x128xf32>
    %cst_85 = arith.constant 4.471500e-02 : f32
    %209 = vector.broadcast %cst_85 : f32 to vector<16x128xf32>
    %210 = arith.mulf %209, %206 : vector<16x128xf32>
    %211 = arith.mulf %210, %206 : vector<16x128xf32>
    %212 = arith.mulf %211, %206 : vector<16x128xf32>
    %213 = arith.addf %206, %212 : vector<16x128xf32>
    %cst_86 = arith.constant 0.797884583 : f32
    %214 = vector.broadcast %cst_86 : f32 to vector<16x128xf32>
    %215 = arith.mulf %214, %213 : vector<16x128xf32>
    %216 = math.tanh %215 : vector<16x128xf32>
    %cst_87 = arith.constant 1.000000e+00 : f32
    %217 = vector.broadcast %cst_87 : f32 to vector<16x128xf32>
    %218 = arith.addf %217, %216 : vector<16x128xf32>
    %219 = arith.mulf %208, %218 : vector<16x128xf32>
    %220 = arith.truncf %219 : vector<16x128xf32> to vector<16x128xbf16>
    %c0_88 = arith.constant 0 : index
    %c0_89 = arith.constant 0 : index
    %c0_90 = arith.constant 0 : index
    %221 = vector.load %arg18[%c0_88, %c0_89, %c0_90] : memref<2x128x128xbf16, #tpu.memory_space<vmem>>, vector<1x128x128xbf16>
    %222 = vector.shape_cast %221 : vector<1x128x128xbf16> to vector<128x128xbf16>
    %cst_91 = arith.constant dense<0.000000e+00> : vector<16x128xf32>
    %223 = tpu.matmul %220, %222, %cst_91 {dimension_numbers = #tpu.dot_dimension_numbers<[1], [0], [0], [1], [0, 0, 1, 1], [], []>} : vector<16x128xbf16>, vector<128x128xbf16>, vector<16x128xf32> -> vector<16x128xf32>
    %c0_92 = arith.constant 0 : index
    %c0_93 = arith.constant 0 : index
    %c0_94 = arith.constant 0 : index
    %224 = vector.load %arg19[%c0_92, %c0_93, %c0_94] : memref<2x1x128xf32, #tpu.memory_space<vmem>>, vector<1x1x128xf32>
    %225 = vector.shape_cast %224 : vector<1x1x128xf32> to vector<1x128xf32>
    %226 = vector.broadcast %225 : vector<1x128xf32> to vector<16x128xf32>
    %227 = arith.addf %223, %226 : vector<16x128xf32>
    %228 = arith.addf %198, %227 : vector<16x128xf32>
    %c0_95 = arith.constant 0 : index
    %c0_96 = arith.constant 0 : index
    %c0_97 = arith.constant 0 : index
    %229 = vector.load %arg20[%c0_95, %c0_96, %c0_97] : memref<2x1x128xf32, #tpu.memory_space<vmem>>, vector<1x1x128xf32>
    %230 = vector.shape_cast %229 : vector<1x1x128xf32> to vector<1x128xf32>
    %c0_98 = arith.constant 0 : index
    %c0_99 = arith.constant 0 : index
    %c0_100 = arith.constant 0 : index
    %231 = vector.load %arg21[%c0_98, %c0_99, %c0_100] : memref<2x1x128xf32, #tpu.memory_space<vmem>>, vector<1x1x128xf32>
    %232 = vector.shape_cast %231 : vector<1x1x128xf32> to vector<1x128xf32>
    %cst_101 = arith.constant dense<0.000000e+00> : vector<16xf32>
    %233 = vector.multi_reduction <add>, %228, %cst_101 [1] : vector<16x128xf32> to vector<16xf32>
    %234 = vector.shape_cast %233 : vector<16xf32> to vector<16x1xf32>
    %cst_102 = arith.constant 3.125000e-02 : f32
    %235 = vector.broadcast %cst_102 : f32 to vector<16x1xf32>
    %236 = arith.mulf %234, %235 : vector<16x1xf32>
    %237 = vector.broadcast %236 : vector<16x1xf32> to vector<16x128xf32>
    %238 = arith.subf %228, %237 : vector<16x128xf32>
    %239 = vector.broadcast %4 : vector<1x128xf32> to vector<16x128xf32>
    %240 = arith.mulf %238, %239 : vector<16x128xf32>
    %241 = arith.mulf %240, %240 : vector<16x128xf32>
    %cst_103 = arith.constant dense<0.000000e+00> : vector<16xf32>
    %242 = vector.multi_reduction <add>, %241, %cst_103 [1] : vector<16x128xf32> to vector<16xf32>
    %243 = vector.shape_cast %242 : vector<16xf32> to vector<16x1xf32>
    %cst_104 = arith.constant 3.125000e-02 : f32
    %244 = vector.broadcast %cst_104 : f32 to vector<16x1xf32>
    %245 = arith.mulf %243, %244 : vector<16x1xf32>
    %cst_105 = arith.constant 9.99999974E-6 : f32
    %246 = vector.broadcast %cst_105 : f32 to vector<16x1xf32>
    %247 = arith.addf %245, %246 : vector<16x1xf32>
    %248 = math.rsqrt %247 : vector<16x1xf32>
    %249 = vector.broadcast %248 : vector<16x1xf32> to vector<16x128xf32>
    %250 = arith.mulf %240, %249 : vector<16x128xf32>
    %251 = vector.broadcast %230 : vector<1x128xf32> to vector<16x128xf32>
    %252 = arith.mulf %250, %251 : vector<16x128xf32>
    %253 = vector.broadcast %232 : vector<1x128xf32> to vector<16x128xf32>
    %254 = arith.addf %252, %253 : vector<16x128xf32>
    %255 = arith.truncf %254 : vector<16x128xf32> to vector<16x128xbf16>
    %c1 = arith.constant 1 : index
    %c0_106 = arith.constant 0 : index
    %c0_107 = arith.constant 0 : index
    %256 = vector.load %arg6[%c1, %c0_106, %c0_107] : memref<2x128x128xbf16, #tpu.memory_space<vmem>>, vector<1x128x128xbf16>
    %257 = vector.shape_cast %256 : vector<1x128x128xbf16> to vector<128x128xbf16>
    %cst_108 = arith.constant dense<0.000000e+00> : vector<16x128xf32>
    %258 = tpu.matmul %255, %257, %cst_108 {dimension_numbers = #tpu.dot_dimension_numbers<[1], [0], [0], [1], [0, 0, 1, 1], [], []>} : vector<16x128xbf16>, vector<128x128xbf16>, vector<16x128xf32> -> vector<16x128xf32>
    %c1_109 = arith.constant 1 : index
    %c0_110 = arith.constant 0 : index
    %c0_111 = arith.constant 0 : index
    %259 = vector.load %arg7[%c1_109, %c0_110, %c0_111] : memref<2x1x128xf32, #tpu.memory_space<vmem>>, vector<1x1x128xf32>
    %260 = vector.shape_cast %259 : vector<1x1x128xf32> to vector<1x128xf32>
    %261 = vector.broadcast %260 : vector<1x128xf32> to vector<16x128xf32>
    %262 = arith.addf %258, %261 : vector<16x128xf32>
    %c1_112 = arith.constant 1 : index
    %c0_113 = arith.constant 0 : index
    %c0_114 = arith.constant 0 : index
    %263 = vector.load %arg8[%c1_112, %c0_113, %c0_114] : memref<2x128x128xbf16, #tpu.memory_space<vmem>>, vector<1x128x128xbf16>
    %264 = vector.shape_cast %263 : vector<1x128x128xbf16> to vector<128x128xbf16>
    %cst_115 = arith.constant dense<0.000000e+00> : vector<16x128xf32>
    %265 = tpu.matmul %255, %264, %cst_115 {dimension_numbers = #tpu.dot_dimension_numbers<[1], [0], [0], [1], [0, 0, 1, 1], [], []>} : vector<16x128xbf16>, vector<128x128xbf16>, vector<16x128xf32> -> vector<16x128xf32>
    %c1_116 = arith.constant 1 : index
    %c0_117 = arith.constant 0 : index
    %c0_118 = arith.constant 0 : index
    %266 = vector.load %arg9[%c1_116, %c0_117, %c0_118] : memref<2x1x128xf32, #tpu.memory_space<vmem>>, vector<1x1x128xf32>
    %267 = vector.shape_cast %266 : vector<1x1x128xf32> to vector<1x128xf32>
    %268 = vector.broadcast %267 : vector<1x128xf32> to vector<16x128xf32>
    %269 = arith.addf %265, %268 : vector<16x128xf32>
    %c1_119 = arith.constant 1 : index
    %c0_120 = arith.constant 0 : index
    %c0_121 = arith.constant 0 : index
    %270 = vector.load %arg10[%c1_119, %c0_120, %c0_121] : memref<2x128x128xbf16, #tpu.memory_space<vmem>>, vector<1x128x128xbf16>
    %271 = vector.shape_cast %270 : vector<1x128x128xbf16> to vector<128x128xbf16>
    %cst_122 = arith.constant dense<0.000000e+00> : vector<16x128xf32>
    %272 = tpu.matmul %255, %271, %cst_122 {dimension_numbers = #tpu.dot_dimension_numbers<[1], [0], [0], [1], [0, 0, 1, 1], [], []>} : vector<16x128xbf16>, vector<128x128xbf16>, vector<16x128xf32> -> vector<16x128xf32>
    %c1_123 = arith.constant 1 : index
    %c0_124 = arith.constant 0 : index
    %c0_125 = arith.constant 0 : index
    %273 = vector.load %arg11[%c1_123, %c0_124, %c0_125] : memref<2x1x128xf32, #tpu.memory_space<vmem>>, vector<1x1x128xf32>
    %274 = vector.shape_cast %273 : vector<1x1x128xf32> to vector<1x128xf32>
    %275 = vector.broadcast %274 : vector<1x128xf32> to vector<16x128xf32>
    %276 = arith.addf %272, %275 : vector<16x128xf32>
    %277 = vector.shape_cast %262 : vector<16x128xf32> to vector<2x8x128xf32>
    %278 = vector.shape_cast %269 : vector<16x128xf32> to vector<2x8x128xf32>
    %279 = vector.shape_cast %276 : vector<16x128xf32> to vector<2x8x128xf32>
    %280 = vector.extract_strided_slice %277 {offsets = [0, 0, 0], sizes = [2, 8, 32], strides = [1, 1, 1]} : vector<2x8x128xf32> to vector<2x8x32xf32>
    %281 = arith.truncf %280 : vector<2x8x32xf32> to vector<2x8x32xbf16>
    %282 = vector.extract_strided_slice %278 {offsets = [0, 0, 0], sizes = [2, 8, 32], strides = [1, 1, 1]} : vector<2x8x128xf32> to vector<2x8x32xf32>
    %283 = arith.truncf %282 : vector<2x8x32xf32> to vector<2x8x32xbf16>
    %284 = vector.extract_strided_slice %279 {offsets = [0, 0, 0], sizes = [2, 8, 32], strides = [1, 1, 1]} : vector<2x8x128xf32> to vector<2x8x32xf32>
    %285 = arith.truncf %284 : vector<2x8x32xf32> to vector<2x8x32xbf16>
    "tpu.trace_start"() <{level = 10 : i32, message = "bqd,bkd->bqk"}> : () -> ()
    %cst_126 = arith.constant dense<0.000000e+00> : vector<2x8x8xf32>
    %286 = tpu.matmul %281, %283, %cst_126 {dimension_numbers = #tpu.dot_dimension_numbers<[2], [2], [1], [1], [0, 0, 0, 1, 1, 1], [0], [0]>} : vector<2x8x32xbf16>, vector<2x8x32xbf16>, vector<2x8x8xf32> -> vector<2x8x8xf32>
    "tpu.trace_stop"() : () -> ()
    %cst_127 = arith.constant 0.353553385 : f32
    %287 = vector.broadcast %cst_127 : f32 to vector<2x8x8xf32>
    %288 = arith.mulf %286, %287 : vector<2x8x8xf32>
    %289 = vector.broadcast %44 : vector<2x1x8xf32> to vector<2x8x8xf32>
    %290 = arith.addf %288, %289 : vector<2x8x8xf32>
    %cst_128 = arith.constant dense<0xFF800000> : vector<2x8xf32>
    %291 = vector.multi_reduction <maximumf>, %290, %cst_128 [2] : vector<2x8x8xf32> to vector<2x8xf32>
    %292 = vector.shape_cast %291 : vector<2x8xf32> to vector<2x8x1xf32>
    %293 = vector.broadcast %292 : vector<2x8x1xf32> to vector<2x8x8xf32>
    %294 = arith.subf %290, %293 : vector<2x8x8xf32>
    %295 = math.exp %294 : vector<2x8x8xf32>
    %cst_129 = arith.constant dense<0.000000e+00> : vector<2x8xf32>
    %296 = vector.multi_reduction <add>, %295, %cst_129 [2] : vector<2x8x8xf32> to vector<2x8xf32>
    %297 = vector.shape_cast %296 : vector<2x8xf32> to vector<2x8x1xf32>
    %298 = tpu.reciprocal %297 {approx = true} : vector<2x8x1xf32> -> vector<2x8x1xf32>
    %299 = vector.broadcast %298 : vector<2x8x1xf32> to vector<2x8x8xf32>
    %300 = arith.mulf %295, %299 : vector<2x8x8xf32>
    %301 = arith.truncf %300 : vector<2x8x8xf32> to vector<2x8x8xbf16>
    "tpu.trace_start"() <{level = 10 : i32, message = "bqk,bkd->bqd"}> : () -> ()
    %cst_130 = arith.constant dense<0.000000e+00> : vector<2x8x32xf32>
    %302 = tpu.matmul %301, %285, %cst_130 {dimension_numbers = #tpu.dot_dimension_numbers<[2], [1], [1], [2], [0, 0, 0, 1, 1, 2], [0], [0]>} : vector<2x8x8xbf16>, vector<2x8x32xbf16>, vector<2x8x32xf32> -> vector<2x8x32xf32>
    "tpu.trace_stop"() : () -> ()
    %303 = vector.extract_strided_slice %277 {offsets = [0, 0, 32], sizes = [2, 8, 32], strides = [1, 1, 1]} : vector<2x8x128xf32> to vector<2x8x32xf32>
    %304 = arith.truncf %303 : vector<2x8x32xf32> to vector<2x8x32xbf16>
    %305 = vector.extract_strided_slice %278 {offsets = [0, 0, 32], sizes = [2, 8, 32], strides = [1, 1, 1]} : vector<2x8x128xf32> to vector<2x8x32xf32>
    %306 = arith.truncf %305 : vector<2x8x32xf32> to vector<2x8x32xbf16>
    %307 = vector.extract_strided_slice %279 {offsets = [0, 0, 32], sizes = [2, 8, 32], strides = [1, 1, 1]} : vector<2x8x128xf32> to vector<2x8x32xf32>
    %308 = arith.truncf %307 : vector<2x8x32xf32> to vector<2x8x32xbf16>
    "tpu.trace_start"() <{level = 10 : i32, message = "bqd,bkd->bqk"}> : () -> ()
    %cst_131 = arith.constant dense<0.000000e+00> : vector<2x8x8xf32>
    %309 = tpu.matmul %304, %306, %cst_131 {dimension_numbers = #tpu.dot_dimension_numbers<[2], [2], [1], [1], [0, 0, 0, 1, 1, 1], [0], [0]>} : vector<2x8x32xbf16>, vector<2x8x32xbf16>, vector<2x8x8xf32> -> vector<2x8x8xf32>
    "tpu.trace_stop"() : () -> ()
    %cst_132 = arith.constant 0.353553385 : f32
    %310 = vector.broadcast %cst_132 : f32 to vector<2x8x8xf32>
    %311 = arith.mulf %309, %310 : vector<2x8x8xf32>
    %312 = vector.broadcast %44 : vector<2x1x8xf32> to vector<2x8x8xf32>
    %313 = arith.addf %311, %312 : vector<2x8x8xf32>
    %cst_133 = arith.constant dense<0xFF800000> : vector<2x8xf32>
    %314 = vector.multi_reduction <maximumf>, %313, %cst_133 [2] : vector<2x8x8xf32> to vector<2x8xf32>
    %315 = vector.shape_cast %314 : vector<2x8xf32> to vector<2x8x1xf32>
    %316 = vector.broadcast %315 : vector<2x8x1xf32> to vector<2x8x8xf32>
    %317 = arith.subf %313, %316 : vector<2x8x8xf32>
    %318 = math.exp %317 : vector<2x8x8xf32>
    %cst_134 = arith.constant dense<0.000000e+00> : vector<2x8xf32>
    %319 = vector.multi_reduction <add>, %318, %cst_134 [2] : vector<2x8x8xf32> to vector<2x8xf32>
    %320 = vector.shape_cast %319 : vector<2x8xf32> to vector<2x8x1xf32>
    %321 = tpu.reciprocal %320 {approx = true} : vector<2x8x1xf32> -> vector<2x8x1xf32>
    %322 = vector.broadcast %321 : vector<2x8x1xf32> to vector<2x8x8xf32>
    %323 = arith.mulf %318, %322 : vector<2x8x8xf32>
    %324 = arith.truncf %323 : vector<2x8x8xf32> to vector<2x8x8xbf16>
    "tpu.trace_start"() <{level = 10 : i32, message = "bqk,bkd->bqd"}> : () -> ()
    %cst_135 = arith.constant dense<0.000000e+00> : vector<2x8x32xf32>
    %325 = tpu.matmul %324, %308, %cst_135 {dimension_numbers = #tpu.dot_dimension_numbers<[2], [1], [1], [2], [0, 0, 0, 1, 1, 2], [0], [0]>} : vector<2x8x8xbf16>, vector<2x8x32xbf16>, vector<2x8x32xf32> -> vector<2x8x32xf32>
    "tpu.trace_stop"() : () -> ()
    %326 = vector.extract_strided_slice %277 {offsets = [0, 0, 64], sizes = [2, 8, 32], strides = [1, 1, 1]} : vector<2x8x128xf32> to vector<2x8x32xf32>
    %327 = arith.truncf %326 : vector<2x8x32xf32> to vector<2x8x32xbf16>
    %328 = vector.extract_strided_slice %278 {offsets = [0, 0, 64], sizes = [2, 8, 32], strides = [1, 1, 1]} : vector<2x8x128xf32> to vector<2x8x32xf32>
    %329 = arith.truncf %328 : vector<2x8x32xf32> to vector<2x8x32xbf16>
    %330 = vector.extract_strided_slice %279 {offsets = [0, 0, 64], sizes = [2, 8, 32], strides = [1, 1, 1]} : vector<2x8x128xf32> to vector<2x8x32xf32>
    %331 = arith.truncf %330 : vector<2x8x32xf32> to vector<2x8x32xbf16>
    "tpu.trace_start"() <{level = 10 : i32, message = "bqd,bkd->bqk"}> : () -> ()
    %cst_136 = arith.constant dense<0.000000e+00> : vector<2x8x8xf32>
    %332 = tpu.matmul %327, %329, %cst_136 {dimension_numbers = #tpu.dot_dimension_numbers<[2], [2], [1], [1], [0, 0, 0, 1, 1, 1], [0], [0]>} : vector<2x8x32xbf16>, vector<2x8x32xbf16>, vector<2x8x8xf32> -> vector<2x8x8xf32>
    "tpu.trace_stop"() : () -> ()
    %cst_137 = arith.constant 0.353553385 : f32
    %333 = vector.broadcast %cst_137 : f32 to vector<2x8x8xf32>
    %334 = arith.mulf %332, %333 : vector<2x8x8xf32>
    %335 = vector.broadcast %44 : vector<2x1x8xf32> to vector<2x8x8xf32>
    %336 = arith.addf %334, %335 : vector<2x8x8xf32>
    %cst_138 = arith.constant dense<0xFF800000> : vector<2x8xf32>
    %337 = vector.multi_reduction <maximumf>, %336, %cst_138 [2] : vector<2x8x8xf32> to vector<2x8xf32>
    %338 = vector.shape_cast %337 : vector<2x8xf32> to vector<2x8x1xf32>
    %339 = vector.broadcast %338 : vector<2x8x1xf32> to vector<2x8x8xf32>
    %340 = arith.subf %336, %339 : vector<2x8x8xf32>
    %341 = math.exp %340 : vector<2x8x8xf32>
    %cst_139 = arith.constant dense<0.000000e+00> : vector<2x8xf32>
    %342 = vector.multi_reduction <add>, %341, %cst_139 [2] : vector<2x8x8xf32> to vector<2x8xf32>
    %343 = vector.shape_cast %342 : vector<2x8xf32> to vector<2x8x1xf32>
    %344 = tpu.reciprocal %343 {approx = true} : vector<2x8x1xf32> -> vector<2x8x1xf32>
    %345 = vector.broadcast %344 : vector<2x8x1xf32> to vector<2x8x8xf32>
    %346 = arith.mulf %341, %345 : vector<2x8x8xf32>
    %347 = arith.truncf %346 : vector<2x8x8xf32> to vector<2x8x8xbf16>
    "tpu.trace_start"() <{level = 10 : i32, message = "bqk,bkd->bqd"}> : () -> ()
    %cst_140 = arith.constant dense<0.000000e+00> : vector<2x8x32xf32>
    %348 = tpu.matmul %347, %331, %cst_140 {dimension_numbers = #tpu.dot_dimension_numbers<[2], [1], [1], [2], [0, 0, 0, 1, 1, 2], [0], [0]>} : vector<2x8x8xbf16>, vector<2x8x32xbf16>, vector<2x8x32xf32> -> vector<2x8x32xf32>
    "tpu.trace_stop"() : () -> ()
    %349 = vector.extract_strided_slice %277 {offsets = [0, 0, 96], sizes = [2, 8, 32], strides = [1, 1, 1]} : vector<2x8x128xf32> to vector<2x8x32xf32>
    %350 = arith.truncf %349 : vector<2x8x32xf32> to vector<2x8x32xbf16>
    %351 = vector.extract_strided_slice %278 {offsets = [0, 0, 96], sizes = [2, 8, 32], strides = [1, 1, 1]} : vector<2x8x128xf32> to vector<2x8x32xf32>
    %352 = arith.truncf %351 : vector<2x8x32xf32> to vector<2x8x32xbf16>
    %353 = vector.extract_strided_slice %279 {offsets = [0, 0, 96], sizes = [2, 8, 32], strides = [1, 1, 1]} : vector<2x8x128xf32> to vector<2x8x32xf32>
    %354 = arith.truncf %353 : vector<2x8x32xf32> to vector<2x8x32xbf16>
    "tpu.trace_start"() <{level = 10 : i32, message = "bqd,bkd->bqk"}> : () -> ()
    %cst_141 = arith.constant dense<0.000000e+00> : vector<2x8x8xf32>
    %355 = tpu.matmul %350, %352, %cst_141 {dimension_numbers = #tpu.dot_dimension_numbers<[2], [2], [1], [1], [0, 0, 0, 1, 1, 1], [0], [0]>} : vector<2x8x32xbf16>, vector<2x8x32xbf16>, vector<2x8x8xf32> -> vector<2x8x8xf32>
    "tpu.trace_stop"() : () -> ()
    %cst_142 = arith.constant 0.353553385 : f32
    %356 = vector.broadcast %cst_142 : f32 to vector<2x8x8xf32>
    %357 = arith.mulf %355, %356 : vector<2x8x8xf32>
    %358 = vector.broadcast %44 : vector<2x1x8xf32> to vector<2x8x8xf32>
    %359 = arith.addf %357, %358 : vector<2x8x8xf32>
    %cst_143 = arith.constant dense<0xFF800000> : vector<2x8xf32>
    %360 = vector.multi_reduction <maximumf>, %359, %cst_143 [2] : vector<2x8x8xf32> to vector<2x8xf32>
    %361 = vector.shape_cast %360 : vector<2x8xf32> to vector<2x8x1xf32>
    %362 = vector.broadcast %361 : vector<2x8x1xf32> to vector<2x8x8xf32>
    %363 = arith.subf %359, %362 : vector<2x8x8xf32>
    %364 = math.exp %363 : vector<2x8x8xf32>
    %cst_144 = arith.constant dense<0.000000e+00> : vector<2x8xf32>
    %365 = vector.multi_reduction <add>, %364, %cst_144 [2] : vector<2x8x8xf32> to vector<2x8xf32>
    %366 = vector.shape_cast %365 : vector<2x8xf32> to vector<2x8x1xf32>
    %367 = tpu.reciprocal %366 {approx = true} : vector<2x8x1xf32> -> vector<2x8x1xf32>
    %368 = vector.broadcast %367 : vector<2x8x1xf32> to vector<2x8x8xf32>
    %369 = arith.mulf %364, %368 : vector<2x8x8xf32>
    %370 = arith.truncf %369 : vector<2x8x8xf32> to vector<2x8x8xbf16>
    "tpu.trace_start"() <{level = 10 : i32, message = "bqk,bkd->bqd"}> : () -> ()
    %cst_145 = arith.constant dense<0.000000e+00> : vector<2x8x32xf32>
    %371 = tpu.matmul %370, %354, %cst_145 {dimension_numbers = #tpu.dot_dimension_numbers<[2], [1], [1], [2], [0, 0, 0, 1, 1, 2], [0], [0]>} : vector<2x8x8xbf16>, vector<2x8x32xbf16>, vector<2x8x32xf32> -> vector<2x8x32xf32>
    "tpu.trace_stop"() : () -> ()
    %372 = tpu.concatenate %302, %325, %348, %371 in 2 : vector<2x8x32xf32>, vector<2x8x32xf32>, vector<2x8x32xf32>, vector<2x8x32xf32> -> vector<2x8x128xf32>
    %373 = vector.shape_cast %372 : vector<2x8x128xf32> to vector<16x128xf32>
    %374 = arith.truncf %373 : vector<16x128xf32> to vector<16x128xbf16>
    %c1_146 = arith.constant 1 : index
    %c0_147 = arith.constant 0 : index
    %c0_148 = arith.constant 0 : index
    %375 = vector.load %arg12[%c1_146, %c0_147, %c0_148] : memref<2x128x128xbf16, #tpu.memory_space<vmem>>, vector<1x128x128xbf16>
    %376 = vector.shape_cast %375 : vector<1x128x128xbf16> to vector<128x128xbf16>
    %cst_149 = arith.constant dense<0.000000e+00> : vector<16x128xf32>
    %377 = tpu.matmul %374, %376, %cst_149 {dimension_numbers = #tpu.dot_dimension_numbers<[1], [0], [0], [1], [0, 0, 1, 1], [], []>} : vector<16x128xbf16>, vector<128x128xbf16>, vector<16x128xf32> -> vector<16x128xf32>
    %c1_150 = arith.constant 1 : index
    %c0_151 = arith.constant 0 : index
    %c0_152 = arith.constant 0 : index
    %378 = vector.load %arg13[%c1_150, %c0_151, %c0_152] : memref<2x1x128xf32, #tpu.memory_space<vmem>>, vector<1x1x128xf32>
    %379 = vector.shape_cast %378 : vector<1x1x128xf32> to vector<1x128xf32>
    %380 = vector.broadcast %379 : vector<1x128xf32> to vector<16x128xf32>
    %381 = arith.addf %377, %380 : vector<16x128xf32>
    %382 = arith.addf %254, %381 : vector<16x128xf32>
    %c1_153 = arith.constant 1 : index
    %c0_154 = arith.constant 0 : index
    %c0_155 = arith.constant 0 : index
    %383 = vector.load %arg14[%c1_153, %c0_154, %c0_155] : memref<2x1x128xf32, #tpu.memory_space<vmem>>, vector<1x1x128xf32>
    %384 = vector.shape_cast %383 : vector<1x1x128xf32> to vector<1x128xf32>
    %c1_156 = arith.constant 1 : index
    %c0_157 = arith.constant 0 : index
    %c0_158 = arith.constant 0 : index
    %385 = vector.load %arg15[%c1_156, %c0_157, %c0_158] : memref<2x1x128xf32, #tpu.memory_space<vmem>>, vector<1x1x128xf32>
    %386 = vector.shape_cast %385 : vector<1x1x128xf32> to vector<1x128xf32>
    %cst_159 = arith.constant dense<0.000000e+00> : vector<16xf32>
    %387 = vector.multi_reduction <add>, %382, %cst_159 [1] : vector<16x128xf32> to vector<16xf32>
    %388 = vector.shape_cast %387 : vector<16xf32> to vector<16x1xf32>
    %cst_160 = arith.constant 3.125000e-02 : f32
    %389 = vector.broadcast %cst_160 : f32 to vector<16x1xf32>
    %390 = arith.mulf %388, %389 : vector<16x1xf32>
    %391 = vector.broadcast %390 : vector<16x1xf32> to vector<16x128xf32>
    %392 = arith.subf %382, %391 : vector<16x128xf32>
    %393 = vector.broadcast %4 : vector<1x128xf32> to vector<16x128xf32>
    %394 = arith.mulf %392, %393 : vector<16x128xf32>
    %395 = arith.mulf %394, %394 : vector<16x128xf32>
    %cst_161 = arith.constant dense<0.000000e+00> : vector<16xf32>
    %396 = vector.multi_reduction <add>, %395, %cst_161 [1] : vector<16x128xf32> to vector<16xf32>
    %397 = vector.shape_cast %396 : vector<16xf32> to vector<16x1xf32>
    %cst_162 = arith.constant 3.125000e-02 : f32
    %398 = vector.broadcast %cst_162 : f32 to vector<16x1xf32>
    %399 = arith.mulf %397, %398 : vector<16x1xf32>
    %cst_163 = arith.constant 9.99999974E-6 : f32
    %400 = vector.broadcast %cst_163 : f32 to vector<16x1xf32>
    %401 = arith.addf %399, %400 : vector<16x1xf32>
    %402 = math.rsqrt %401 : vector<16x1xf32>
    %403 = vector.broadcast %402 : vector<16x1xf32> to vector<16x128xf32>
    %404 = arith.mulf %394, %403 : vector<16x128xf32>
    %405 = vector.broadcast %384 : vector<1x128xf32> to vector<16x128xf32>
    %406 = arith.mulf %404, %405 : vector<16x128xf32>
    %407 = vector.broadcast %386 : vector<1x128xf32> to vector<16x128xf32>
    %408 = arith.addf %406, %407 : vector<16x128xf32>
    %409 = arith.truncf %408 : vector<16x128xf32> to vector<16x128xbf16>
    %c1_164 = arith.constant 1 : index
    %c0_165 = arith.constant 0 : index
    %c0_166 = arith.constant 0 : index
    %410 = vector.load %arg16[%c1_164, %c0_165, %c0_166] : memref<2x128x128xbf16, #tpu.memory_space<vmem>>, vector<1x128x128xbf16>
    %411 = vector.shape_cast %410 : vector<1x128x128xbf16> to vector<128x128xbf16>
    %cst_167 = arith.constant dense<0.000000e+00> : vector<16x128xf32>
    %412 = tpu.matmul %409, %411, %cst_167 {dimension_numbers = #tpu.dot_dimension_numbers<[1], [0], [0], [1], [0, 0, 1, 1], [], []>} : vector<16x128xbf16>, vector<128x128xbf16>, vector<16x128xf32> -> vector<16x128xf32>
    %c1_168 = arith.constant 1 : index
    %c0_169 = arith.constant 0 : index
    %c0_170 = arith.constant 0 : index
    %413 = vector.load %arg17[%c1_168, %c0_169, %c0_170] : memref<2x1x128xf32, #tpu.memory_space<vmem>>, vector<1x1x128xf32>
    %414 = vector.shape_cast %413 : vector<1x1x128xf32> to vector<1x128xf32>
    %415 = vector.broadcast %414 : vector<1x128xf32> to vector<16x128xf32>
    %416 = arith.addf %412, %415 : vector<16x128xf32>
    %cst_171 = arith.constant 5.000000e-01 : f32
    %417 = vector.broadcast %cst_171 : f32 to vector<16x128xf32>
    %418 = arith.mulf %417, %416 : vector<16x128xf32>
    %cst_172 = arith.constant 4.471500e-02 : f32
    %419 = vector.broadcast %cst_172 : f32 to vector<16x128xf32>
    %420 = arith.mulf %419, %416 : vector<16x128xf32>
    %421 = arith.mulf %420, %416 : vector<16x128xf32>
    %422 = arith.mulf %421, %416 : vector<16x128xf32>
    %423 = arith.addf %416, %422 : vector<16x128xf32>
    %cst_173 = arith.constant 0.797884583 : f32
    %424 = vector.broadcast %cst_173 : f32 to vector<16x128xf32>
    %425 = arith.mulf %424, %423 : vector<16x128xf32>
    %426 = math.tanh %425 : vector<16x128xf32>
    %cst_174 = arith.constant 1.000000e+00 : f32
    %427 = vector.broadcast %cst_174 : f32 to vector<16x128xf32>
    %428 = arith.addf %427, %426 : vector<16x128xf32>
    %429 = arith.mulf %418, %428 : vector<16x128xf32>
    %430 = arith.truncf %429 : vector<16x128xf32> to vector<16x128xbf16>
    %c1_175 = arith.constant 1 : index
    %c0_176 = arith.constant 0 : index
    %c0_177 = arith.constant 0 : index
    %431 = vector.load %arg18[%c1_175, %c0_176, %c0_177] : memref<2x128x128xbf16, #tpu.memory_space<vmem>>, vector<1x128x128xbf16>
    %432 = vector.shape_cast %431 : vector<1x128x128xbf16> to vector<128x128xbf16>
    %cst_178 = arith.constant dense<0.000000e+00> : vector<16x128xf32>
    %433 = tpu.matmul %430, %432, %cst_178 {dimension_numbers = #tpu.dot_dimension_numbers<[1], [0], [0], [1], [0, 0, 1, 1], [], []>} : vector<16x128xbf16>, vector<128x128xbf16>, vector<16x128xf32> -> vector<16x128xf32>
    %c1_179 = arith.constant 1 : index
    %c0_180 = arith.constant 0 : index
    %c0_181 = arith.constant 0 : index
    %434 = vector.load %arg19[%c1_179, %c0_180, %c0_181] : memref<2x1x128xf32, #tpu.memory_space<vmem>>, vector<1x1x128xf32>
    %435 = vector.shape_cast %434 : vector<1x1x128xf32> to vector<1x128xf32>
    %436 = vector.broadcast %435 : vector<1x128xf32> to vector<16x128xf32>
    %437 = arith.addf %433, %436 : vector<16x128xf32>
    %438 = arith.addf %408, %437 : vector<16x128xf32>
    %c1_182 = arith.constant 1 : index
    %c0_183 = arith.constant 0 : index
    %c0_184 = arith.constant 0 : index
    %439 = vector.load %arg20[%c1_182, %c0_183, %c0_184] : memref<2x1x128xf32, #tpu.memory_space<vmem>>, vector<1x1x128xf32>
    %440 = vector.shape_cast %439 : vector<1x1x128xf32> to vector<1x128xf32>
    %c1_185 = arith.constant 1 : index
    %c0_186 = arith.constant 0 : index
    %c0_187 = arith.constant 0 : index
    %441 = vector.load %arg21[%c1_185, %c0_186, %c0_187] : memref<2x1x128xf32, #tpu.memory_space<vmem>>, vector<1x1x128xf32>
    %442 = vector.shape_cast %441 : vector<1x1x128xf32> to vector<1x128xf32>
    %cst_188 = arith.constant dense<0.000000e+00> : vector<16xf32>
    %443 = vector.multi_reduction <add>, %438, %cst_188 [1] : vector<16x128xf32> to vector<16xf32>
    %444 = vector.shape_cast %443 : vector<16xf32> to vector<16x1xf32>
    %cst_189 = arith.constant 3.125000e-02 : f32
    %445 = vector.broadcast %cst_189 : f32 to vector<16x1xf32>
    %446 = arith.mulf %444, %445 : vector<16x1xf32>
    %447 = vector.broadcast %446 : vector<16x1xf32> to vector<16x128xf32>
    %448 = arith.subf %438, %447 : vector<16x128xf32>
    %449 = vector.broadcast %4 : vector<1x128xf32> to vector<16x128xf32>
    %450 = arith.mulf %448, %449 : vector<16x128xf32>
    %451 = arith.mulf %450, %450 : vector<16x128xf32>
    %cst_190 = arith.constant dense<0.000000e+00> : vector<16xf32>
    %452 = vector.multi_reduction <add>, %451, %cst_190 [1] : vector<16x128xf32> to vector<16xf32>
    %453 = vector.shape_cast %452 : vector<16xf32> to vector<16x1xf32>
    %cst_191 = arith.constant 3.125000e-02 : f32
    %454 = vector.broadcast %cst_191 : f32 to vector<16x1xf32>
    %455 = arith.mulf %453, %454 : vector<16x1xf32>
    %cst_192 = arith.constant 9.99999974E-6 : f32
    %456 = vector.broadcast %cst_192 : f32 to vector<16x1xf32>
    %457 = arith.addf %455, %456 : vector<16x1xf32>
    %458 = math.rsqrt %457 : vector<16x1xf32>
    %459 = vector.broadcast %458 : vector<16x1xf32> to vector<16x128xf32>
    %460 = arith.mulf %450, %459 : vector<16x128xf32>
    %461 = vector.broadcast %440 : vector<1x128xf32> to vector<16x128xf32>
    %462 = arith.mulf %460, %461 : vector<16x128xf32>
    %463 = vector.broadcast %442 : vector<1x128xf32> to vector<16x128xf32>
    %464 = arith.addf %462, %463 : vector<16x128xf32>
    %465 = vector.shape_cast %464 : vector<16x128xf32> to vector<2x8x128xf32>
    %466 = vector.extract_strided_slice %465 {offsets = [0, 0, 0], sizes = [2, 1, 128], strides = [1, 1, 1]} : vector<2x8x128xf32> to vector<2x1x128xf32>
    %467 = vector.shape_cast %466 : vector<2x1x128xf32> to vector<2x128xf32>
    %468 = arith.truncf %467 : vector<2x128xf32> to vector<2x128xbf16>
    %c0_193 = arith.constant 0 : index
    %c0_194 = arith.constant 0 : index
    %469 = vector.load %arg22[%c0_193, %c0_194] : memref<128x128xbf16, #tpu.memory_space<vmem>>, vector<128x128xbf16>
    %cst_195 = arith.constant dense<0.000000e+00> : vector<2x128xf32>
    %470 = tpu.matmul %468, %469, %cst_195 {dimension_numbers = #tpu.dot_dimension_numbers<[1], [0], [0], [1], [0, 0, 1, 1], [], []>} : vector<2x128xbf16>, vector<128x128xbf16>, vector<2x128xf32> -> vector<2x128xf32>
    %c0_196 = arith.constant 0 : index
    %c0_197 = arith.constant 0 : index
    %471 = vector.load %arg23[%c0_196, %c0_197] : memref<1x128xf32, #tpu.memory_space<vmem>>, vector<1x128xf32>
    %472 = vector.broadcast %471 : vector<1x128xf32> to vector<2x128xf32>
    %473 = arith.addf %470, %472 : vector<2x128xf32>
    %474 = math.tanh %473 : vector<2x128xf32>
    %475 = arith.truncf %474 : vector<2x128xf32> to vector<2x128xbf16>
    %c0_198 = arith.constant 0 : index
    %c0_199 = arith.constant 0 : index
    %476 = vector.load %arg24[%c0_198, %c0_199] : memref<128x128xbf16, #tpu.memory_space<vmem>>, vector<128x128xbf16>
    %cst_200 = arith.constant dense<0.000000e+00> : vector<2x128xf32>
    %477 = tpu.matmul %475, %476, %cst_200 {dimension_numbers = #tpu.dot_dimension_numbers<[1], [0], [0], [1], [0, 0, 1, 1], [], []>} : vector<2x128xbf16>, vector<128x128xbf16>, vector<2x128xf32> -> vector<2x128xf32>
    %c0_201 = arith.constant 0 : index
    %c0_202 = arith.constant 0 : index
    %478 = vector.load %arg25[%c0_201, %c0_202] : memref<1x128xf32, #tpu.memory_space<vmem>>, vector<1x128xf32>
    %479 = vector.broadcast %478 : vector<1x128xf32> to vector<2x128xf32>
    %480 = arith.addf %477, %479 : vector<2x128xf32>
    %481 = tpu.iota {dimensions = array<i32: 1>} : vector<2x128xi32>
    %c3_i32 = arith.constant 3 : i32
    %482 = vector.broadcast %c3_i32 : i32 to vector<2x128xi32>
    %483 = arith.cmpi slt, %481, %482 : vector<2x128xi32>
    %cst_203 = arith.constant -1.000000e+30 : f32
    %484 = vector.broadcast %cst_203 : f32 to vector<2x128xf32>
    %485 = arith.select %483, %480, %484 : vector<2x128xi1>, vector<2x128xf32>
    %cst_204 = arith.constant dense<0xFF800000> : vector<2xf32>
    %486 = vector.multi_reduction <maximumf>, %485, %cst_204 [1] : vector<2x128xf32> to vector<2xf32>
    %487 = vector.shape_cast %486 : vector<2xf32> to vector<2x1xf32>
    %488 = vector.broadcast %487 : vector<2x1xf32> to vector<2x128xf32>
    %489 = arith.subf %485, %488 : vector<2x128xf32>
    %490 = math.exp %489 : vector<2x128xf32>
    %cst_205 = arith.constant dense<0.000000e+00> : vector<2xf32>
    %491 = vector.multi_reduction <add>, %490, %cst_205 [1] : vector<2x128xf32> to vector<2xf32>
    %492 = vector.shape_cast %491 : vector<2xf32> to vector<2x1xf32>
    %493 = vector.broadcast %492 : vector<2x1xf32> to vector<2x128xf32>
    %494 = arith.divf %490, %493 : vector<2x128xf32>
    %c0_206 = arith.constant 0 : index
    %c0_207 = arith.constant 0 : index
    %495 = vector.load %arg26[%c0_206, %c0_207] : memref<2x128xf32, #tpu.memory_space<vmem>>, vector<2x128xf32>
    tpu.vector_store %arg26[%c0_206, %c0_207], %494 {strides = array<i32>} : memref<2x128xf32, #tpu.memory_space<vmem>>, vector<2x128xf32>,
    return
  }
}

</mosaic_0001>

<llo_original>
// kernel: tpu_custom_call.1
$region0: #{tpu_custom_call.1}
  #allocation0 [shape = 'u32[]', space=smem, size = 0x4, offset = 0x4, fixed_abs, tag = 'smem constant byte address 0x4 - core index']
  #allocation1 [shape = 'u32[72,128]{1,0:T(1,128)}', space=vmem, size = 0x9000, scoped, tag = 'internal scratch']
  %s0 = inlined_call_operand.vmem [shape: s32[16,1], index: 0, kind: input, shape index: {}]
  %s1 = inlined_call_operand.vmem [shape: f32[2,8], index: 1, kind: input, shape index: {}]
  %s2 = inlined_call_operand.hbm [shape: f32[128,128], index: 2, kind: input, shape index: {}]
  %s3 = inlined_call_operand.vmem [shape: f32[16,128], index: 3, kind: input, shape index: {}]
  %s4 = inlined_call_operand.hbm [shape: f32[1,128], index: 4, kind: input, shape index: {}]
  %s5 = inlined_call_operand.hbm [shape: f32[1,128], index: 5, kind: input, shape index: {}]
  %s6 = inlined_call_operand.hbm [shape: bf16[2,128,128], index: 6, kind: input, shape index: {}]
  %s7 = inlined_call_operand.vmem [shape: f32[2,1,128], index: 7, kind: input, shape index: {}]
  %s8 = inlined_call_operand.hbm [shape: bf16[2,128,128], index: 8, kind: input, shape index: {}]
  %s9 = inlined_call_operand.vmem [shape: f32[2,1,128], index: 9, kind: input, shape index: {}]
  %s10 = inlined_call_operand.hbm [shape: bf16[2,128,128], index: 10, kind: input, shape index: {}]
  %s11 = inlined_call_operand.vmem [shape: f32[2,1,128], index: 11, kind: input, shape index: {}]
  %s12 = inlined_call_operand.hbm [shape: bf16[2,128,128], index: 12, kind: input, shape index: {}]
  %s13 = inlined_call_operand.vmem [shape: f32[2,1,128], index: 13, kind: input, shape index: {}]
  %s14 = inlined_call_operand.vmem [shape: f32[2,1,128], index: 14, kind: input, shape index: {}]
  %s15 = inlined_call_operand.vmem [shape: f32[2,1,128], index: 15, kind: input, shape index: {}]
  %s16 = inlined_call_operand.hbm [shape: bf16[2,128,128], index: 16, kind: input, shape index: {}]
  %s17 = inlined_call_operand.vmem [shape: f32[2,1,128], index: 17, kind: input, shape index: {}]
  %s18 = inlined_call_operand.hbm [shape: bf16[2,128,128], index: 18, kind: input, shape index: {}]
  %s19 = inlined_call_operand.vmem [shape: f32[2,1,128], index: 19, kind: input, shape index: {}]
  %s20 = inlined_call_operand.vmem [shape: f32[2,1,128], index: 20, kind: input, shape index: {}]
  %s21 = inlined_call_operand.hbm [shape: f32[2,1,128], index: 21, kind: input, shape index: {}]
  %s22 = inlined_call_operand.hbm [shape: bf16[128,128], index: 22, kind: input, shape index: {}]
  %s23 = inlined_call_operand.vmem [shape: f32[1,128], index: 23, kind: input, shape index: {}]
  %s24 = inlined_call_operand.hbm [shape: bf16[128,128], index: 24, kind: input, shape index: {}]
  %s25 = inlined_call_operand.vmem [shape: f32[1,128], index: 25, kind: input, shape index: {}]
  %s26 = inlined_call_operand.hbm [shape: f32[2,128], index: 26, kind: output, shape index: {}]
  %s27 = sld [smem:[#allocation0]]
  $region162: #{tpu_custom_call.1} parent=0
    _
  %s29 = ssub.s32 1, %s27
  %s30 = scalar_select 0, %s29, %s27
  $region1: #{tpu_custom_call.1} parent=0
    #allocation2 [shape = 'u8[65536]{0}', space=vmem, size = 0x10000, scoped, tag = 'input window, operand 2, single buffered']
    #allocation3 [shape = 's32[1]{0}', space=sflag, size = 0x4, scoped, tag = 'scoped memory for tpu_custom_call.1']
    #allocation4 [shape = 's32[1]{0}', space=sflag, size = 0x4, scoped, tag = 'scoped memory for tpu_custom_call.1']
    #allocation5 [shape = 'u8[512]{0}', space=vmem, size = 0x400, scoped, tag = 'input window, operand 4, single buffered']
    #allocation6 [shape = 's32[1]{0}', space=sflag, size = 0x4, scoped, tag = 'scoped memory for tpu_custom_call.1']
    #allocation7 [shape = 'u8[512]{0}', space=vmem, size = 0x400, scoped, tag = 'input window, operand 5, single buffered']
    #allocation8 [shape = 'u8[65536]{0}', space=vmem, size = 0x10000, scoped, tag = 'input window, operand 6, single buffered']
    #allocation9 [shape = 's32[1]{0}', space=sflag, size = 0x4, scoped, tag = 'scoped memory for tpu_custom_call.1']
    #allocation10 [shape = 'u8[65536]{0}', space=vmem, size = 0x10000, scoped, tag = 'input window, operand 8, single buffered']
    #allocation11 [shape = 'u8[65536]{0}', space=vmem, size = 0x10000, scoped, tag = 'input window, operand 10, single buffered']
    #allocation12 [shape = 's32[1]{0}', space=sflag, size = 0x4, scoped, tag = 'scoped memory for tpu_custom_call.1']
    #allocation13 [shape = 'u8[65536]{0}', space=vmem, size = 0x10000, scoped, tag = 'input window, operand 12, single buffered']
    #allocation14 [shape = 'u8[65536]{0}', space=vmem, size = 0x10000, scoped, tag = 'input window, operand 16, single buffered']
    #allocation15 [shape = 's32[1]{0}', space=sflag, size = 0x4, scoped, tag = 'scoped memory for tpu_custom_call.1']
    #allocation16 [shape = 'u8[65536]{0}', space=vmem, size = 0x10000, scoped, tag = 'input window, operand 18, single buffered']
    #allocation17 [shape = 'u8[1024]{0}', space=vmem, size = 0x400, scoped, tag = 'input window, operand 21, single buffered']
    #allocation18 [shape = 's32[1]{0}', space=sflag, size = 0x4, scoped, tag = 'scoped memory for tpu_custom_call.1']
    #allocation19 [shape = 'u8[32768]{0}', space=vmem, size = 0x8000, scoped, tag = 'input window, operand 22, single buffered']
    #allocation20 [shape = 'u8[32768]{0}', space=vmem, size = 0x8000, scoped, tag = 'input window, operand 24, single buffered']
    #allocation21 [shape = 's32[1]{0}', space=sflag, size = 0x4, scoped, tag = 'scoped memory for tpu_custom_call.1']
    #allocation22 [shape = 'u8[1024]{0}', space=vmem, size = 0x400, scoped, tag = 'output window, operand 0, single buffered']
    %31 = vsyncpa [#allocation3], 0
    %32 = vsyncpa [#allocation6], 0
    %33 = vsyncpa [#allocation9], 0
    %34 = vsyncpa [#allocation12], 0
    %35 = vsyncpa [#allocation15], 0
    %36 = vsyncpa [#allocation18], 0
    %37 = vsyncpa [#allocation21], 0
    %38 = vsyncpa [#allocation4], 0
    // Predicated region
    $region2: #{tpu_custom_call.1} parent=1 // pred_check
      _
    $region3: #{tpu_custom_call.1} parent=1 // pred_check_branch
      %40 = sbr.rel (0) target = $region5
    $region4: #{tpu_custom_call.1} parent=1 // pred_region
      _
    $region5: #{tpu_custom_call.1} parent=1 // pred_fallthru
      _
    // Predicated region
    $region6: #{tpu_custom_call.1} parent=1 // pred_check
      _
    $region7: #{tpu_custom_call.1} parent=1 // pred_check_branch
      %42 = sbr.rel (0) target = $region9
    $region8: #{tpu_custom_call.1} parent=1 // pred_region
      _
    $region9: #{tpu_custom_call.1} parent=1 // pred_fallthru
      _
    // Predicated region
    $region10: #{tpu_custom_call.1} parent=1 // pred_check
      _
    $region11: #{tpu_custom_call.1} parent=1 // pred_check_branch
      %44 = sbr.rel (0) target = $region13
    $region12: #{tpu_custom_call.1} parent=1 // pred_region
      %46 = vsyncadd [#allocation3], 0
      %s47 = sshll.u32 %s2, 4
      %s48 = int_to_ptr.hbm [resolvable:$true] %s47
      %s49 = sshll.u32 [#allocation2], 4
      %s50 = int_to_ptr.vmem [resolvable:$true] %s49
      %55 = dma.hbm_to_vmem [thread:$0]  %s48, 2048, %s50, [#allocation3], 128, 128, 8
    $region13: #{tpu_custom_call.1} parent=1 // pred_fallthru
      _
    // Predicated region
    $region14: #{tpu_custom_call.1} parent=1 // pred_check
      _
    $region15: #{tpu_custom_call.1} parent=1 // pred_check_branch
      %57 = sbr.rel (0) target = $region17
    $region16: #{tpu_custom_call.1} parent=1 // pred_region
      _
    $region17: #{tpu_custom_call.1} parent=1 // pred_fallthru
      _
    // Predicated region
    $region18: #{tpu_custom_call.1} parent=1 // pred_check
      _
    $region19: #{tpu_custom_call.1} parent=1 // pred_check_branch
      %59 = sbr.rel (0) target = $region21
    $region20: #{tpu_custom_call.1} parent=1 // pred_region
      %61 = vsyncadd [#allocation6], 0
      %s63 = sshll.u32 %s4, 4
      %s64 = int_to_ptr.hbm [resolvable:$true] %s63
      %s65 = sshll.u32 [#allocation5], 4
      %s66 = int_to_ptr.vmem [resolvable:$true] %s65
      %68 = dma.hbm_to_vmem [thread:$0]  %s64, 16, %s66, [#allocation6]
    $region21: #{tpu_custom_call.1} parent=1 // pred_fallthru
      _
    // Predicated region
    $region22: #{tpu_custom_call.1} parent=1 // pred_check
      _
    $region23: #{tpu_custom_call.1} parent=1 // pred_check_branch
      %70 = sbr.rel (0) target = $region25
    $region24: #{tpu_custom_call.1} parent=1 // pred_region
      %72 = vsyncadd [#allocation6], 0
      %s74 = sshll.u32 %s5, 4
      %s75 = int_to_ptr.hbm [resolvable:$true] %s74
      %s76 = sshll.u32 [#allocation7], 4
      %s77 = int_to_ptr.vmem [resolvable:$true] %s76
      %79 = dma.hbm_to_vmem [thread:$0]  %s75, 16, %s77, [#allocation6]
    $region25: #{tpu_custom_call.1} parent=1 // pred_fallthru
      _
    // Predicated region
    $region26: #{tpu_custom_call.1} parent=1 // pred_check
      _
    $region27: #{tpu_custom_call.1} parent=1 // pred_check_branch
      %81 = sbr.rel (0) target = $region29
    $region28: #{tpu_custom_call.1} parent=1 // pred_region
      %83 = vsyncadd [#allocation9], 0
      %s84 = sshll.u32 %s6, 4
      %s85 = int_to_ptr.hbm [resolvable:$true] %s84
      %s86 = sshll.u32 [#allocation8], 4
      %s87 = int_to_ptr.vmem [resolvable:$true] %s86
      %92 = dma.hbm_to_vmem [thread:$0]  %s85, 2048, %s87, [#allocation9], 64, 64, 4
    $region29: #{tpu_custom_call.1} parent=1 // pred_fallthru
      _
    // Predicated region
    $region30: #{tpu_custom_call.1} parent=1 // pred_check
      _
    $region31: #{tpu_custom_call.1} parent=1 // pred_check_branch
      %94 = sbr.rel (0) target = $region33
    $region32: #{tpu_custom_call.1} parent=1 // pred_region
      _
    $region33: #{tpu_custom_call.1} parent=1 // pred_fallthru
      _
    // Predicated region
    $region34: #{tpu_custom_call.1} parent=1 // pred_check
      _
    $region35: #{tpu_custom_call.1} parent=1 // pred_check_branch
      %96 = sbr.rel (0) target = $region37
    $region36: #{tpu_custom_call.1} parent=1 // pred_region
      %98 = vsyncadd [#allocation9], 0
      %s99 = sshll.u32 %s8, 4
      %s100 = int_to_ptr.hbm [resolvable:$true] %s99
      %s101 = sshll.u32 [#allocation10], 4
      %s102 = int_to_ptr.vmem [resolvable:$true] %s101
      %107 = dma.hbm_to_vmem [thread:$0]  %s100, 2048, %s102, [#allocation9], 64, 64, 4
    $region37: #{tpu_custom_call.1} parent=1 // pred_fallthru
      _
    // Predicated region
    $region38: #{tpu_custom_call.1} parent=1 // pred_check
      _
    $region39: #{tpu_custom_call.1} parent=1 // pred_check_branch
      %109 = sbr.rel (0) target = $region41
    $region40: #{tpu_custom_call.1} parent=1 // pred_region
      _
    $region41: #{tpu_custom_call.1} parent=1 // pred_fallthru
      _
    // Predicated region
    $region42: #{tpu_custom_call.1} parent=1 // pred_check
      _
    $region43: #{tpu_custom_call.1} parent=1 // pred_check_branch
      %111 = sbr.rel (0) target = $region45
    $region44: #{tpu_custom_call.1} parent=1 // pred_region
      %113 = vsyncadd [#allocation12], 0
      %s114 = sshll.u32 %s10, 4
      %s115 = int_to_ptr.hbm [resolvable:$true] %s114
      %s116 = sshll.u32 [#allocation11], 4
      %s117 = int_to_ptr.vmem [resolvable:$true] %s116
      %122 = dma.hbm_to_vmem [thread:$0]  %s115, 2048, %s117, [#allocation12], 64, 64, 4
    $region45: #{tpu_custom_call.1} parent=1 // pred_fallthru
      _
    // Predicated region
    $region46: #{tpu_custom_call.1} parent=1 // pred_check
      _
    $region47: #{tpu_custom_call.1} parent=1 // pred_check_branch
      %124 = sbr.rel (0) target = $region49
    $region48: #{tpu_custom_call.1} parent=1 // pred_region
      _
    $region49: #{tpu_custom_call.1} parent=1 // pred_fallthru
      _
    // Predicated region
    $region50: #{tpu_custom_call.1} parent=1 // pred_check
      _
    $region51: #{tpu_custom_call.1} parent=1 // pred_check_branch
      %126 = sbr.rel (0) target = $region53
    $region52: #{tpu_custom_call.1} parent=1 // pred_region
      %128 = vsyncadd [#allocation12], 0
      %s129 = sshll.u32 %s12, 4
      %s130 = int_to_ptr.hbm [resolvable:$true] %s129
      %s131 = sshll.u32 [#allocation13], 4
      %s132 = int_to_ptr.vmem [resolvable:$true] %s131
      %137 = dma.hbm_to_vmem [thread:$0]  %s130, 2048, %s132, [#allocation12], 64, 64, 4
    $region53: #{tpu_custom_call.1} parent=1 // pred_fallthru
      _
    // Predicated region
    $region54: #{tpu_custom_call.1} parent=1 // pred_check
      _
    $region55: #{tpu_custom_call.1} parent=1 // pred_check_branch
      %139 = sbr.rel (0) target = $region57
    $region56: #{tpu_custom_call.1} parent=1 // pred_region
      _
    $region57: #{tpu_custom_call.1} parent=1 // pred_fallthru
      _
    // Predicated region
    $region58: #{tpu_custom_call.1} parent=1 // pred_check
      _
    $region59: #{tpu_custom_call.1} parent=1 // pred_check_branch
      %141 = sbr.rel (0) target = $region61
    $region60: #{tpu_custom_call.1} parent=1 // pred_region
      _
    $region61: #{tpu_custom_call.1} parent=1 // pred_fallthru
      _
    // Predicated region
    $region62: #{tpu_custom_call.1} parent=1 // pred_check
      _
    $region63: #{tpu_custom_call.1} parent=1 // pred_check_branch
      %143 = sbr.rel (0) target = $region65
    $region64: #{tpu_custom_call.1} parent=1 // pred_region
      _
    $region65: #{tpu_custom_call.1} parent=1 // pred_fallthru
      _
    // Predicated region
    $region66: #{tpu_custom_call.1} parent=1 // pred_check
      _
    $region67: #{tpu_custom_call.1} parent=1 // pred_check_branch
      %145 = sbr.rel (0) target = $region69
    $region68: #{tpu_custom_call.1} parent=1 // pred_region
      %147 = vsyncadd [#allocation15], 0
      %s148 = sshll.u32 %s16, 4
      %s149 = int_to_ptr.hbm [resolvable:$true] %s148
      %s150 = sshll.u32 [#allocation14], 4
      %s151 = int_to_ptr.vmem [resolvable:$true] %s150
      %156 = dma.hbm_to_vmem [thread:$0]  %s149, 2048, %s151, [#allocation15], 64, 64, 4
    $region69: #{tpu_custom_call.1} parent=1 // pred_fallthru
      _
    // Predicated region
    $region70: #{tpu_custom_call.1} parent=1 // pred_check
      _
    $region71: #{tpu_custom_call.1} parent=1 // pred_check_branch
      %158 = sbr.rel (0) target = $region73
    $region72: #{tpu_custom_call.1} parent=1 // pred_region
      _
    $region73: #{tpu_custom_call.1} parent=1 // pred_fallthru
      _
    // Predicated region
    $region74: #{tpu_custom_call.1} parent=1 // pred_check
      _
    $region75: #{tpu_custom_call.1} parent=1 // pred_check_branch
      %160 = sbr.rel (0) target = $region77
    $region76: #{tpu_custom_call.1} parent=1 // pred_region
      %162 = vsyncadd [#allocation15], 0
      %s163 = sshll.u32 %s18, 4
      %s164 = int_to_ptr.hbm [resolvable:$true] %s163
      %s165 = sshll.u32 [#allocation16], 4
      %s166 = int_to_ptr.vmem [resolvable:$true] %s165
      %171 = dma.hbm_to_vmem [thread:$0]  %s164, 2048, %s166, [#allocation15], 64, 64, 4
    $region77: #{tpu_custom_call.1} parent=1 // pred_fallthru
      _
    // Predicated region
    $region78: #{tpu_custom_call.1} parent=1 // pred_check
      _
    $region79: #{tpu_custom_call.1} parent=1 // pred_check_branch
      %173 = sbr.rel (0) target = $region81
    $region80: #{tpu_custom_call.1} parent=1 // pred_region
      _
    $region81: #{tpu_custom_call.1} parent=1 // pred_fallthru
      _
    // Predicated region
    $region82: #{tpu_custom_call.1} parent=1 // pred_check
      _
    $region83: #{tpu_custom_call.1} parent=1 // pred_check_branch
      %175 = sbr.rel (0) target = $region85
    $region84: #{tpu_custom_call.1} parent=1 // pred_region
      _
    $region85: #{tpu_custom_call.1} parent=1 // pred_fallthru
      _
    // Predicated region
    $region86: #{tpu_custom_call.1} parent=1 // pred_check
      _
    $region87: #{tpu_custom_call.1} parent=1 // pred_check_branch
      %177 = sbr.rel (0) target = $region89
    $region88: #{tpu_custom_call.1} parent=1 // pred_region
      %179 = vsyncadd [#allocation18], 0
      %s180 = sshll.u32 %s21, 4
      %s181 = int_to_ptr.hbm [resolvable:$true] %s180
      %s182 = sshll.u32 [#allocation17], 4
      %s183 = int_to_ptr.vmem [resolvable:$true] %s182
      %188 = dma.hbm_to_vmem [thread:$0]  %s181, 32, %s183, [#allocation18], 16, 16, 1
    $region89: #{tpu_custom_call.1} parent=1 // pred_fallthru
      _
    // Predicated region
    $region90: #{tpu_custom_call.1} parent=1 // pred_check
      _
    $region91: #{tpu_custom_call.1} parent=1 // pred_check_branch
      %190 = sbr.rel (0) target = $region93
    $region92: #{tpu_custom_call.1} parent=1 // pred_region
      %192 = vsyncadd [#allocation18], 0
      %s193 = sshll.u32 %s22, 4
      %s194 = int_to_ptr.hbm [resolvable:$true] %s193
      %s195 = sshll.u32 [#allocation19], 4
      %s196 = int_to_ptr.vmem [resolvable:$true] %s195
      %201 = dma.hbm_to_vmem [thread:$0]  %s194, 1024, %s196, [#allocation18], 64, 64, 4
    $region93: #{tpu_custom_call.1} parent=1 // pred_fallthru
      _
    // Predicated region
    $region94: #{tpu_custom_call.1} parent=1 // pred_check
      _
    $region95: #{tpu_custom_call.1} parent=1 // pred_check_branch
      %203 = sbr.rel (0) target = $region97
    $region96: #{tpu_custom_call.1} parent=1 // pred_region
      _
    $region97: #{tpu_custom_call.1} parent=1 // pred_fallthru
      _
    // Predicated region
    $region98: #{tpu_custom_call.1} parent=1 // pred_check
      _
    $region99: #{tpu_custom_call.1} parent=1 // pred_check_branch
      %205 = sbr.rel (0) target = $region101
    $region100: #{tpu_custom_call.1} parent=1 // pred_region
      %207 = vsyncadd [#allocation21], 0
      %s208 = sshll.u32 %s24, 4
      %s209 = int_to_ptr.hbm [resolvable:$true] %s208
      %s210 = sshll.u32 [#allocation20], 4
      %s211 = int_to_ptr.vmem [resolvable:$true] %s210
      %216 = dma.hbm_to_vmem [thread:$0]  %s209, 1024, %s211, [#allocation21], 64, 64, 4
    $region101: #{tpu_custom_call.1} parent=1 // pred_fallthru
      _
    // Predicated region
    $region102: #{tpu_custom_call.1} parent=1 // pred_check
      _
    $region103: #{tpu_custom_call.1} parent=1 // pred_check_branch
      %218 = sbr.rel (0) target = $region105
    $region104: #{tpu_custom_call.1} parent=1 // pred_region
      _
    $region105: #{tpu_custom_call.1} parent=1 // pred_fallthru
      _
    // Predicated region
    $region106: #{tpu_custom_call.1} parent=1 // pred_check
      _
    $region107: #{tpu_custom_call.1} parent=1 // pred_check_branch
      %220 = sbr.rel (0) target = $region109
    $region108: #{tpu_custom_call.1} parent=1 // pred_region
      %222 = dma.done [#allocation3], 2048
    $region109: #{tpu_custom_call.1} parent=1 // pred_fallthru
      _
    // Predicated region
    $region110: #{tpu_custom_call.1} parent=1 // pred_check
      _
    $region111: #{tpu_custom_call.1} parent=1 // pred_check_branch
      %224 = sbr.rel (0) target = $region113
    $region112: #{tpu_custom_call.1} parent=1 // pred_region
      %226 = dma.done [#allocation6], 16
    $region113: #{tpu_custom_call.1} parent=1 // pred_fallthru
      _
    // Predicated region
    $region114: #{tpu_custom_call.1} parent=1 // pred_check
      _
    $region115: #{tpu_custom_call.1} parent=1 // pred_check_branch
      %228 = sbr.rel (0) target = $region117
    $region116: #{tpu_custom_call.1} parent=1 // pred_region
      %230 = dma.done [#allocation6], 16
    $region117: #{tpu_custom_call.1} parent=1 // pred_fallthru
      _
    // Predicated region
    $region118: #{tpu_custom_call.1} parent=1 // pred_check
      _
    $region119: #{tpu_custom_call.1} parent=1 // pred_check_branch
      %232 = sbr.rel (0) target = $region121
    $region120: #{tpu_custom_call.1} parent=1 // pred_region
      %234 = dma.done [#allocation9], 2048
    $region121: #{tpu_custom_call.1} parent=1 // pred_fallthru
      _
    // Predicated region
    $region122: #{tpu_custom_call.1} parent=1 // pred_check
      _
    $region123: #{tpu_custom_call.1} parent=1 // pred_check_branch
      %236 = sbr.rel (0) target = $region125
    $region124: #{tpu_custom_call.1} parent=1 // pred_region
      %238 = dma.done [#allocation9], 2048
    $region125: #{tpu_custom_call.1} parent=1 // pred_fallthru
      _
    // Predicated region
    $region126: #{tpu_custom_call.1} parent=1 // pred_check
      _
    $region127: #{tpu_custom_call.1} parent=1 // pred_check_branch
      %240 = sbr.rel (0) target = $region129
    $region128: #{tpu_custom_call.1} parent=1 // pred_region
      %242 = dma.done [#allocation12], 2048
    $region129: #{tpu_custom_call.1} parent=1 // pred_fallthru
      _
    // Predicated region
    $region130: #{tpu_custom_call.1} parent=1 // pred_check
      _
    $region131: #{tpu_custom_call.1} parent=1 // pred_check_branch
      %244 = sbr.rel (0) target = $region133
    $region132: #{tpu_custom_call.1} parent=1 // pred_region
      %246 = dma.done [#allocation12], 2048
    $region133: #{tpu_custom_call.1} parent=1 // pred_fallthru
      _
    // Predicated region
    $region134: #{tpu_custom_call.1} parent=1 // pred_check
      _
    $region135: #{tpu_custom_call.1} parent=1 // pred_check_branch
      %248 = sbr.rel (0) target = $region137
    $region136: #{tpu_custom_call.1} parent=1 // pred_region
      %250 = dma.done [#allocation15], 2048
    $region137: #{tpu_custom_call.1} parent=1 // pred_fallthru
      _
    // Predicated region
    $region138: #{tpu_custom_call.1} parent=1 // pred_check
      _
    $region139: #{tpu_custom_call.1} parent=1 // pred_check_branch
      %252 = sbr.rel (0) target = $region141
    $region140: #{tpu_custom_call.1} parent=1 // pred_region
      %254 = dma.done [#allocation15], 2048
    $region141: #{tpu_custom_call.1} parent=1 // pred_fallthru
      _
    // Predicated region
    $region142: #{tpu_custom_call.1} parent=1 // pred_check
      _
    $region143: #{tpu_custom_call.1} parent=1 // pred_check_branch
      %256 = sbr.rel (0) target = $region145
    $region144: #{tpu_custom_call.1} parent=1 // pred_region
      %258 = dma.done [#allocation18], 32
    $region145: #{tpu_custom_call.1} parent=1 // pred_fallthru
      _
    // Predicated region
    $region146: #{tpu_custom_call.1} parent=1 // pred_check
      _
    $region147: #{tpu_custom_call.1} parent=1 // pred_check_branch
      %260 = sbr.rel (0) target = $region149
    $region148: #{tpu_custom_call.1} parent=1 // pred_region
      %262 = dma.done [#allocation18], 1024
    $region149: #{tpu_custom_call.1} parent=1 // pred_fallthru
      _
    // Predicated region
    $region150: #{tpu_custom_call.1} parent=1 // pred_check
      _
    $region151: #{tpu_custom_call.1} parent=1 // pred_check_branch
      %264 = sbr.rel (0) target = $region153
    $region152: #{tpu_custom_call.1} parent=1 // pred_region
      %266 = dma.done [#allocation21], 1024
    $region153: #{tpu_custom_call.1} parent=1 // pred_fallthru
      _
    %v268 = vlaneseq
    %v269 = vand.u32 %v268, 127
    %vm270 = vcmp.lt.s32.totalorder %v269, 32
    %v271 = vsel %vm270, 1, 0
    %v272 = vcvt.s32.f32 %v271
    %v273 = vld [vmem:[%s0] sm:$0xff]
    %v274 = vld [vmem:[%s0 + $0x8] sm:$0xff]
    %275 = vset.pattern.permute.xlu0 0
    %276 = vperm.xlu0 %275, %v273
    %v277 = vpop.permute.xlu0 %276
    %278 = vset.pattern.permute.xlu0 0
    %279 = vperm.xlu0 %278, %v274
    %v280 = vpop.permute.xlu0 %279
    %vm281 = vcmp.eq.s32.totalorder %v269, %v277
    %vm282 = vcmp.eq.s32.totalorder %v269, %v280
    %v283 = vsel %vm281, 1, 0
    %v284 = vsel %vm282, 1, 0
    %v285 = vcvt.s32.f32 %v283
    %v286 = vcvt.s32.f32 %v284
    %v287 = vld [vmem:[#allocation2] sm:$0xff]
    %v288 = vld [vmem:[#allocation2 + $0x8] sm:$0xff]
    %v289 = vld [vmem:[#allocation2 + $0x10] sm:$0xff]
    %v290 = vld [vmem:[#allocation2 + $0x18] sm:$0xff]
    %v291 = vld [vmem:[#allocation2 + $0x20] sm:$0xff]
    %v292 = vld [vmem:[#allocation2 + $0x28] sm:$0xff]
    %v293 = vld [vmem:[#allocation2 + $0x30] sm:$0xff]
    %v294 = vld [vmem:[#allocation2 + $0x38] sm:$0xff]
    %v295 = vld [vmem:[#allocation2 + $0x40] sm:$0xff]
    %v296 = vld [vmem:[#allocation2 + $0x48] sm:$0xff]
    %v297 = vld [vmem:[#allocation2 + $0x50] sm:$0xff]
    %v298 = vld [vmem:[#allocation2 + $0x58] sm:$0xff]
    %v299 = vld [vmem:[#allocation2 + $0x60] sm:$0xff]
    %v300 = vld [vmem:[#allocation2 + $0x68] sm:$0xff]
    %v301 = vld [vmem:[#allocation2 + $0x70] sm:$0xff]
    %v302 = vld [vmem:[#allocation2 + $0x78] sm:$0xff]
    %v303 = vld [vmem:[%s3] sm:$0xff]
    %v304 = vld [vmem:[%s3 + $0x8] sm:$0xff]
    %305 = vmatpush.msra.mxu0 %v302
    %306 = vmatpush.msra.mxu0 %v301
    %307 = vmatpush.msra.mxu0 %v300
    %308 = vmatpush.msra.mxu0 %v299
    %309 = vmatpush.msra.mxu0 %v298
    %310 = vmatpush.msra.mxu0 %v297
    %311 = vmatpush.msra.mxu0 %v296
    %312 = vmatpush.msra.mxu0 %v295
    %313 = vmatpush.msra.mxu0 %v294
    %314 = vmatpush.msra.mxu0 %v293
    %315 = vmatpush.msra.mxu0 %v292
    %316 = vmatpush.msra.mxu0 %v291
    %317 = vmatpush.msra.mxu0 %v290
    %318 = vmatpush.msra.mxu0 %v289
    %319 = vmatpush.msra.mxu0 %v288
    %320 = vmatpush.msra.mxu0 %v287
    %321 = vmatmul.f32.gmra.mxu0 %v285
    %v322 = vpop.f32.mrf.mxu0
    %v323 = vadd.f32 %v303, %v322
    %324 = vmatmul.f32.gmra.mxu0 %v286
    %v325 = vpop.f32.mrf.mxu0
    %v326 = vadd.f32 %v304, %v325
    %327 = vdwg.mxu0
    %v328 = vld [vmem:[#allocation5] sm:$0x1]
    %v329 = vld [vmem:[#allocation7] sm:$0x1]
    %330 = vadd.xlane.f32.xlu0 %v323
    %v331 = vpop.xlane.xlu0 %330
    %332 = vadd.xlane.f32.xlu0 %v326
    %v333 = vpop.xlane.xlu0 %332
    %v334 = vmul.f32 %v331, 0.03125
    %v335 = vmul.f32 %v333, 0.03125
    %v336 = vsub.f32 %v323, %v334
    %v337 = vsub.f32 %v326, %v335
    %v338 = vmul.f32 %v336, %v272
    %v339 = vmul.f32 %v337, %v272
    %v340 = vmul.f32 %v338, %v338
    %v341 = vmul.f32 %v339, %v339
    %342 = vadd.xlane.f32.xlu0 %v340
    %v343 = vpop.xlane.xlu0 %342
    %344 = vadd.xlane.f32.xlu0 %v341
    %v345 = vpop.xlane.xlu0 %344
    %v346 = vmul.f32 %v343, 0.03125
    %v347 = vmul.f32 %v345, 0.03125
    %v348 = vadd.f32 %v346, 1e-05
    %v349 = vadd.f32 %v347, 1e-05
    %v350 = vrsqrt.pop %v348
    %v351 = vmul.f32 %v350, %v348
    %v352 = vmul.f32 %v351, %v350
    %v353 = vmul.f32 0.5, %v352
    %v354 = vsub.f32 1.5, %v353
    %v355 = vmul.f32 %v350, %v354
    %vm356 = vweird.f32 %v348
    %vm357 = vweird.f32 %v350
    %vm358 = vmor %vm356, %vm357
    %v359 = vsel %vm358, %v350, %v355
    %v360 = vrsqrt.pop %v349
    %v361 = vmul.f32 %v360, %v349
    %v362 = vmul.f32 %v361, %v360
    %v363 = vmul.f32 0.5, %v362
    %v364 = vsub.f32 1.5, %v363
    %v365 = vmul.f32 %v360, %v364
    %vm366 = vweird.f32 %v349
    %vm367 = vweird.f32 %v360
    %vm368 = vmor %vm366, %vm367
    %v369 = vsel %vm368, %v360, %v365
    %v370 = vmul.f32 %v338, %v359
    %v371 = vmul.f32 %v339, %v369
    %v373 = vperm.slane %v328, 0
    %v375 = vmul.f32 %v370, %v373
    %v376 = vmul.f32 %v371, %v373
    %v378 = vperm.slane %v329, 0
    %v380 = vadd.f32 %v375, %v378
    %v381 = vadd.f32 %v376, %v378
    %v382 = vld [vmem:[%s1] sm:$0x3]
    %v383 = vsub.f32 1.0, %v382
    %v385 = vrot.slane %v383, 1
    %v387 = vmul.f32 %v383, -1e+09
    %v388 = vmul.f32 %v385, -1e+09
    %v389 = vpack.c.bf16 %v381, %v380
    %v390 = vld [vmem:[#allocation8] sm:$0xf]
    %v391 = vld [vmem:[#allocation8 + $0x4] sm:$0xf]
    %v392 = vld [vmem:[#allocation8 + $0x8] sm:$0xf]
    %v393 = vld [vmem:[#allocation8 + $0xc] sm:$0xf]
    %v394 = vld [vmem:[#allocation8 + $0x10] sm:$0xf]
    %v395 = vld [vmem:[#allocation8 + $0x14] sm:$0xf]
    %v396 = vld [vmem:[#allocation8 + $0x18] sm:$0xf]
    %v397 = vld [vmem:[#allocation8 + $0x1c] sm:$0xf]
    %v398 = vld [vmem:[#allocation8 + $0x20] sm:$0xf]
    %v399 = vld [vmem:[#allocation8 + $0x24] sm:$0xf]
    %v400 = vld [vmem:[#allocation8 + $0x28] sm:$0xf]
    %v401 = vld [vmem:[#allocation8 + $0x2c] sm:$0xf]
    %v402 = vld [vmem:[#allocation8 + $0x30] sm:$0xf]
    %v403 = vld [vmem:[#allocation8 + $0x34] sm:$0xf]
    %v404 = vld [vmem:[#allocation8 + $0x38] sm:$0xf]
    %v405 = vld [vmem:[#allocation8 + $0x3c] sm:$0xf]
    %v406 = vld [vmem:[%s7] sm:$0x1]
    %v408 = vperm.slane %v406, 0
    %v426 = vunpack.c.l.b16 %v390
    %v427 = vunpack.c.l.b16 %v391
    %v428 = vunpack.c.l.b16 %v392
    %v429 = vunpack.c.l.b16 %v393
    %v430 = vunpack.c.l.b16 %v394
    %v431 = vunpack.c.l.b16 %v395
    %v432 = vunpack.c.l.b16 %v396
    %v433 = vunpack.c.l.b16 %v397
    %v434 = vunpack.c.l.b16 %v398
    %v435 = vunpack.c.l.b16 %v399
    %v436 = vunpack.c.l.b16 %v400
    %v437 = vunpack.c.l.b16 %v401
    %v438 = vunpack.c.l.b16 %v402
    %v439 = vunpack.c.l.b16 %v403
    %v440 = vunpack.c.l.b16 %v404
    %v441 = vunpack.c.l.b16 %v405
    %v442 = vpack.c.b16 %v427, %v426
    %v443 = vpack.c.b16 %v429, %v428
    %v444 = vpack.c.b16 %v431, %v430
    %v445 = vpack.c.b16 %v433, %v432
    %v446 = vpack.c.b16 %v435, %v434
    %v447 = vpack.c.b16 %v437, %v436
    %v448 = vpack.c.b16 %v439, %v438
    %v449 = vpack.c.b16 %v441, %v440
    %458 = vmatpush.bf16.msra.mxu0 %v449
    %459 = vmatpush.bf16.msra.mxu0 %v448
    %460 = vmatpush.bf16.msra.mxu0 %v447
    %461 = vmatpush.bf16.msra.mxu0 %v446
    %462 = vmatpush.bf16.msra.mxu0 %v445
    %463 = vmatpush.bf16.msra.mxu0 %v444
    %464 = vmatpush.bf16.msra.mxu0 %v443
    %465 = vmatpush.bf16.msra.mxu0 %v442
    %466 = vmatmul.bf16.gmra.mxu0 %v389
    %v467 = vpop.f32.mrf.mxu0
    %v468 = vadd.f32 %v408, %v467
    %v469 = vpop.f32.mrf.mxu0
    %v470 = vadd.f32 %v408, %v469
    %471 = vdwg.mxu0
    %v472 = vld [vmem:[#allocation10] sm:$0xf]
    %v473 = vld [vmem:[#allocation10 + $0x4] sm:$0xf]
    %v474 = vld [vmem:[#allocation10 + $0x8] sm:$0xf]
    %v475 = vld [vmem:[#allocation10 + $0xc] sm:$0xf]
    %v476 = vld [vmem:[#allocation10 + $0x10] sm:$0xf]
    %v477 = vld [vmem:[#allocation10 + $0x14] sm:$0xf]
    %v478 = vld [vmem:[#allocation10 + $0x18] sm:$0xf]
    %v479 = vld [vmem:[#allocation10 + $0x1c] sm:$0xf]
    %v480 = vld [vmem:[#allocation10 + $0x20] sm:$0xf]
    %v481 = vld [vmem:[#allocation10 + $0x24] sm:$0xf]
    %v482 = vld [vmem:[#allocation10 + $0x28] sm:$0xf]
    %v483 = vld [vmem:[#allocation10 + $0x2c] sm:$0xf]
    %v484 = vld [vmem:[#allocation10 + $0x30] sm:$0xf]
    %v485 = vld [vmem:[#allocation10 + $0x34] sm:$0xf]
    %v486 = vld [vmem:[#allocation10 + $0x38] sm:$0xf]
    %v487 = vld [vmem:[#allocation10 + $0x3c] sm:$0xf]
    %v488 = vld [vmem:[%s9] sm:$0x1]
    %v490 = vperm.slane %v488, 0
    %v508 = vunpack.c.l.b16 %v472
    %v509 = vunpack.c.l.b16 %v473
    %v510 = vunpack.c.l.b16 %v474
    %v511 = vunpack.c.l.b16 %v475
    %v512 = vunpack.c.l.b16 %v476
    %v513 = vunpack.c.l.b16 %v477
    %v514 = vunpack.c.l.b16 %v478
    %v515 = vunpack.c.l.b16 %v479
    %v516 = vunpack.c.l.b16 %v480
    %v517 = vunpack.c.l.b16 %v481
    %v518 = vunpack.c.l.b16 %v482
    %v519 = vunpack.c.l.b16 %v483
    %v520 = vunpack.c.l.b16 %v484
    %v521 = vunpack.c.l.b16 %v485
    %v522 = vunpack.c.l.b16 %v486
    %v523 = vunpack.c.l.b16 %v487
    %v524 = vpack.c.b16 %v509, %v508
    %v525 = vpack.c.b16 %v511, %v510
    %v526 = vpack.c.b16 %v513, %v512
    %v527 = vpack.c.b16 %v515, %v514
    %v528 = vpack.c.b16 %v517, %v516
    %v529 = vpack.c.b16 %v519, %v518
    %v530 = vpack.c.b16 %v521, %v520
    %v531 = vpack.c.b16 %v523, %v522
    %540 = vmatpush.bf16.msra.mxu0 %v531
    %541 = vmatpush.bf16.msra.mxu0 %v530
    %542 = vmatpush.bf16.msra.mxu0 %v529
    %543 = vmatpush.bf16.msra.mxu0 %v528
    %544 = vmatpush.bf16.msra.mxu0 %v527
    %545 = vmatpush.bf16.msra.mxu0 %v526
    %546 = vmatpush.bf16.msra.mxu0 %v525
    %547 = vmatpush.bf16.msra.mxu0 %v524
    %548 = vmatmul.bf16.gmra.mxu0 %v389
    %v549 = vpop.f32.mrf.mxu0
    %v550 = vadd.f32 %v490, %v549
    %v551 = vpop.f32.mrf.mxu0
    %v552 = vadd.f32 %v490, %v551
    %553 = vdwg.mxu0
    %v554 = vld [vmem:[#allocation11] sm:$0xf]
    %v555 = vld [vmem:[#allocation11 + $0x4] sm:$0xf]
    %v556 = vld [vmem:[#allocation11 + $0x8] sm:$0xf]
    %v557 = vld [vmem:[#allocation11 + $0xc] sm:$0xf]
    %v558 = vld [vmem:[#allocation11 + $0x10] sm:$0xf]
    %v559 = vld [vmem:[#allocation11 + $0x14] sm:$0xf]
    %v560 = vld [vmem:[#allocation11 + $0x18] sm:$0xf]
    %v561 = vld [vmem:[#allocation11 + $0x1c] sm:$0xf]
    %v562 = vld [vmem:[#allocation11 + $0x20] sm:$0xf]
    %v563 = vld [vmem:[#allocation11 + $0x24] sm:$0xf]
    %v564 = vld [vmem:[#allocation11 + $0x28] sm:$0xf]
    %v565 = vld [vmem:[#allocation11 + $0x2c] sm:$0xf]
    %v566 = vld [vmem:[#allocation11 + $0x30] sm:$0xf]
    %v567 = vld [vmem:[#allocation11 + $0x34] sm:$0xf]
    %v568 = vld [vmem:[#allocation11 + $0x38] sm:$0xf]
    %v569 = vld [vmem:[#allocation11 + $0x3c] sm:$0xf]
    %v570 = vld [vmem:[%s11] sm:$0x1]
    %v572 = vperm.slane %v570, 0
    %v590 = vunpack.c.l.b16 %v554
    %v591 = vunpack.c.l.b16 %v555
    %v592 = vunpack.c.l.b16 %v556
    %v593 = vunpack.c.l.b16 %v557
    %v594 = vunpack.c.l.b16 %v558
    %v595 = vunpack.c.l.b16 %v559
    %v596 = vunpack.c.l.b16 %v560
    %v597 = vunpack.c.l.b16 %v561
    %v598 = vunpack.c.l.b16 %v562
    %v599 = vunpack.c.l.b16 %v563
    %v600 = vunpack.c.l.b16 %v564
    %v601 = vunpack.c.l.b16 %v565
    %v602 = vunpack.c.l.b16 %v566
    %v603 = vunpack.c.l.b16 %v567
    %v604 = vunpack.c.l.b16 %v568
    %v605 = vunpack.c.l.b16 %v569
    %v606 = vpack.c.b16 %v591, %v590
    %v607 = vpack.c.b16 %v593, %v592
    %v608 = vpack.c.b16 %v595, %v594
    %v609 = vpack.c.b16 %v597, %v596
    %v610 = vpack.c.b16 %v599, %v598
    %v611 = vpack.c.b16 %v601, %v600
    %v612 = vpack.c.b16 %v603, %v602
    %v613 = vpack.c.b16 %v605, %v604
    %622 = vmatpush.bf16.msra.mxu0 %v613
    %623 = vmatpush.bf16.msra.mxu0 %v612
    %624 = vmatpush.bf16.msra.mxu0 %v611
    %625 = vmatpush.bf16.msra.mxu0 %v610
    %626 = vmatpush.bf16.msra.mxu0 %v609
    %627 = vmatpush.bf16.msra.mxu0 %v608
    %628 = vmatpush.bf16.msra.mxu0 %v607
    %629 = vmatpush.bf16.msra.mxu0 %v606
    %630 = vmatmul.bf16.gmra.mxu0 %v389
    %v631 = vpop.f32.mrf.mxu0
    %v632 = vadd.f32 %v572, %v631
    %v633 = vpop.f32.mrf.mxu0
    %v634 = vadd.f32 %v572, %v633
    %635 = vdwg.mxu0
    %v636 = vpack.c.bf16 %v468, %v468
    %v637 = vpack.c.bf16 %v470, %v470
    %v638 = vpack.c.bf16 %v550, %v550
    %v639 = vpack.c.bf16 %v552, %v552
    %v640 = vpack.c.bf16 %v632, %v632
    %v641 = vpack.c.bf16 %v634, %v634
    %vm642 = vcmask 261120
    %v644 = vsel %vm642, %v636, 0
    %v647 = vsel %vm642, %v638, 0
    %649 = vmatpush.bf16.xpose.msra.mxu0 0
    %650 = vmatpush.bf16.xpose.msra.mxu0 0
    %651 = vmatpush.bf16.xpose.msra.mxu0 0
    %652 = vmatpush.bf16.xpose.msra.mxu0 0
    %653 = vmatpush.bf16.xpose.msra.mxu0 0
    %654 = vmatpush.bf16.xpose.msra.mxu0 0
    %655 = vmatpush.bf16.xpose.msra.mxu0 0
    %656 = vmatpush.bf16.xpose.msra.mxu0 %v647
    %657 = vmatmul.bf16.gmra.mxu0 %v644
    %v658 = vpop.f32.mrf.mxu0
    %v659 = vadd.f32 0.0, %v658
    %v660 = vpop.f32.mrf.mxu0
    %661 = vdwg.mxu0
    %v663 = vsel %vm642, %v637, 0
    %v666 = vsel %vm642, %v639, 0
    %668 = vmatpush.bf16.xpose.msra.mxu0 0
    %669 = vmatpush.bf16.xpose.msra.mxu0 0
    %670 = vmatpush.bf16.xpose.msra.mxu0 0
    %671 = vmatpush.bf16.xpose.msra.mxu0 0
    %672 = vmatpush.bf16.xpose.msra.mxu0 0
    %673 = vmatpush.bf16.xpose.msra.mxu0 0
    %674 = vmatpush.bf16.xpose.msra.mxu0 0
    %675 = vmatpush.bf16.xpose.msra.mxu0 %v666
    %676 = vmatmul.bf16.gmra.mxu0 %v663
    %v677 = vpop.f32.mrf.mxu0
    %v678 = vadd.f32 0.0, %v677
    %v679 = vpop.f32.mrf.mxu0
    %680 = vdwg.mxu0
    %v681 = vmul.f32 %v659, 0.35355338
    %v682 = vmul.f32 %v678, 0.35355338
    %v685 = vperm.slane %v387, 0
    %v686 = vperm.slane %v388, 0
    %v689 = vadd.f32 %v681, %v685
    %v690 = vadd.f32 %v682, %v686
    %vm691 = vcmask 64512
    %v692 = vsel %vm691, %v689, -inf
    %693 = vmax.xlane.f32.xlu0 %v692
    %v694 = vpop.xlane.xlu0 %693
    %v695 = vsel %vm691, %v690, -inf
    %696 = vmax.xlane.f32.xlu0 %v695
    %v697 = vpop.xlane.xlu0 %696
    %v698 = vsub.f32 %v689, %v694
    %v699 = vsub.f32 %v690, %v697
    %v700 = vmul.f32 %v698, 1.442695
    %v701 = vpow.pop %v700
    %v702 = vmul.f32 %v699, 1.442695
    %v703 = vpow.pop %v702
    %v704 = vsel %vm691, %v701, 0.0
    %705 = vadd.xlane.f32.xlu0 %v704
    %v706 = vpop.xlane.xlu0 %705
    %v707 = vsel %vm691, %v703, 0.0
    %708 = vadd.xlane.f32.xlu0 %v707
    %v709 = vpop.xlane.xlu0 %708
    %v710 = vrcp.pop %v706
    %v711 = vrcp.pop %v709
    %v712 = vmul.f32 %v701, %v710
    %v713 = vmul.f32 %v703, %v711
    %v714 = vpack.c.bf16 %v712, %v712
    %v715 = vpack.c.bf16 %v713, %v713
    %v717 = vsel %vm691, %v714, 0
    %vm719 = vcmask 1043456
    %v721 = vsel %vm719, %v640, 0
    %723 = vmatpush.bf16.msra.mxu0 0
    %724 = vmatpush.bf16.msra.mxu0 0
    %725 = vmatpush.bf16.msra.mxu0 0
    %726 = vmatpush.bf16.msra.mxu0 0
    %727 = vmatpush.bf16.msra.mxu0 0
    %728 = vmatpush.bf16.msra.mxu0 0
    %729 = vmatpush.bf16.msra.mxu0 0
    %730 = vmatpush.bf16.msra.mxu0 %v721
    %731 = vmatmul.bf16.gmra.mxu0 %v717
    %v732 = vpop.f32.mrf.mxu0
    %v733 = vadd.f32 0.0, %v732
    %v734 = vpop.f32.mrf.mxu0
    %735 = vdwg.mxu0
    %v737 = vsel %vm691, %v715, 0
    %v740 = vsel %vm719, %v641, 0
    %742 = vmatpush.bf16.msra.mxu0 0
    %743 = vmatpush.bf16.msra.mxu0 0
    %744 = vmatpush.bf16.msra.mxu0 0
    %745 = vmatpush.bf16.msra.mxu0 0
    %746 = vmatpush.bf16.msra.mxu0 0
    %747 = vmatpush.bf16.msra.mxu0 0
    %748 = vmatpush.bf16.msra.mxu0 0
    %749 = vmatpush.bf16.msra.mxu0 %v740
    %750 = vmatmul.bf16.gmra.mxu0 %v737
    %v751 = vpop.f32.mrf.mxu0
    %v752 = vadd.f32 0.0, %v751
    %v753 = vpop.f32.mrf.mxu0
    %754 = vdwg.mxu0
    %v756 = vunpack.c.l.b16 %v636
    %v757 = vpack.c.b16 %v756, %v756
    %758 = vrot.lane.b32.xlu0 %v757, 96
    %v759 = vpop.permute.xlu0 %758
    %v761 = vunpack.c.l.b16 %v638
    %v762 = vpack.c.b16 %v761, %v761
    %763 = vrot.lane.b32.xlu0 %v762, 96
    %v764 = vpop.permute.xlu0 %763
    %v766 = vsel %vm642, %v759, 0
    %v769 = vsel %vm642, %v764, 0
    %771 = vmatpush.bf16.xpose.msra.mxu0 0
    %772 = vmatpush.bf16.xpose.msra.mxu0 0
    %773 = vmatpush.bf16.xpose.msra.mxu0 0
    %774 = vmatpush.bf16.xpose.msra.mxu0 0
    %775 = vmatpush.bf16.xpose.msra.mxu0 0
    %776 = vmatpush.bf16.xpose.msra.mxu0 0
    %777 = vmatpush.bf16.xpose.msra.mxu0 0
    %778 = vmatpush.bf16.xpose.msra.mxu0 %v769
    %779 = vmatmul.bf16.gmra.mxu0 %v766
    %v780 = vpop.f32.mrf.mxu0
    %v781 = vadd.f32 0.0, %v780
    %v782 = vpop.f32.mrf.mxu0
    %783 = vdwg.mxu0
    %v785 = vunpack.c.l.b16 %v637
    %v786 = vpack.c.b16 %v785, %v785
    %787 = vrot.lane.b32.xlu0 %v786, 96
    %v788 = vpop.permute.xlu0 %787
    %v790 = vunpack.c.l.b16 %v639
    %v791 = vpack.c.b16 %v790, %v790
    %792 = vrot.lane.b32.xlu0 %v791, 96
    %v793 = vpop.permute.xlu0 %792
    %v795 = vsel %vm642, %v788, 0
    %v798 = vsel %vm642, %v793, 0
    %800 = vmatpush.bf16.xpose.msra.mxu0 0
    %801 = vmatpush.bf16.xpose.msra.mxu0 0
    %802 = vmatpush.bf16.xpose.msra.mxu0 0
    %803 = vmatpush.bf16.xpose.msra.mxu0 0
    %804 = vmatpush.bf16.xpose.msra.mxu0 0
    %805 = vmatpush.bf16.xpose.msra.mxu0 0
    %806 = vmatpush.bf16.xpose.msra.mxu0 0
    %807 = vmatpush.bf16.xpose.msra.mxu0 %v798
    %808 = vmatmul.bf16.gmra.mxu0 %v795
    %v809 = vpop.f32.mrf.mxu0
    %v810 = vadd.f32 0.0, %v809
    %v811 = vpop.f32.mrf.mxu0
    %812 = vdwg.mxu0
    %v813 = vmul.f32 %v781, 0.35355338
    %v814 = vmul.f32 %v810, 0.35355338
    %v815 = vadd.f32 %v813, %v685
    %v816 = vadd.f32 %v814, %v686
    %v817 = vsel %vm691, %v815, -inf
    %818 = vmax.xlane.f32.xlu0 %v817
    %v819 = vpop.xlane.xlu0 %818
    %v820 = vsel %vm691, %v816, -inf
    %821 = vmax.xlane.f32.xlu0 %v820
    %v822 = vpop.xlane.xlu0 %821
    %v823 = vsub.f32 %v815, %v819
    %v824 = vsub.f32 %v816, %v822
    %v825 = vmul.f32 %v823, 1.442695
    %v826 = vpow.pop %v825
    %v827 = vmul.f32 %v824, 1.442695
    %v828 = vpow.pop %v827
    %v829 = vsel %vm691, %v826, 0.0
    %830 = vadd.xlane.f32.xlu0 %v829
    %v831 = vpop.xlane.xlu0 %830
    %v832 = vsel %vm691, %v828, 0.0
    %833 = vadd.xlane.f32.xlu0 %v832
    %v834 = vpop.xlane.xlu0 %833
    %v835 = vrcp.pop %v831
    %v836 = vrcp.pop %v834
    %v837 = vmul.f32 %v826, %v835
    %v838 = vmul.f32 %v828, %v836
    %v839 = vpack.c.bf16 %v837, %v837
    %v840 = vpack.c.bf16 %v838, %v838
    %v842 = vunpack.c.l.b16 %v640
    %v843 = vpack.c.b16 %v842, %v842
    %844 = vrot.lane.b32.xlu0 %v843, 96
    %v845 = vpop.permute.xlu0 %844
    %v847 = vsel %vm691, %v839, 0
    %v850 = vsel %vm719, %v845, 0
    %852 = vmatpush.bf16.msra.mxu0 0
    %853 = vmatpush.bf16.msra.mxu0 0
    %854 = vmatpush.bf16.msra.mxu0 0
    %855 = vmatpush.bf16.msra.mxu0 0
    %856 = vmatpush.bf16.msra.mxu0 0
    %857 = vmatpush.bf16.msra.mxu0 0
    %858 = vmatpush.bf16.msra.mxu0 0
    %859 = vmatpush.bf16.msra.mxu0 %v850
    %860 = vmatmul.bf16.gmra.mxu0 %v847
    %v861 = vpop.f32.mrf.mxu0
    %v862 = vadd.f32 0.0, %v861
    %v863 = vpop.f32.mrf.mxu0
    %864 = vdwg.mxu0
    %v866 = vunpack.c.l.b16 %v641
    %v867 = vpack.c.b16 %v866, %v866
    %868 = vrot.lane.b32.xlu0 %v867, 96
    %v869 = vpop.permute.xlu0 %868
    %v871 = vsel %vm691, %v840, 0
    %v874 = vsel %vm719, %v869, 0
    %876 = vmatpush.bf16.msra.mxu0 0
    %877 = vmatpush.bf16.msra.mxu0 0
    %878 = vmatpush.bf16.msra.mxu0 0
    %879 = vmatpush.bf16.msra.mxu0 0
    %880 = vmatpush.bf16.msra.mxu0 0
    %881 = vmatpush.bf16.msra.mxu0 0
    %882 = vmatpush.bf16.msra.mxu0 0
    %883 = vmatpush.bf16.msra.mxu0 %v874
    %884 = vmatmul.bf16.gmra.mxu0 %v871
    %v885 = vpop.f32.mrf.mxu0
    %v886 = vadd.f32 0.0, %v885
    %v887 = vpop.f32.mrf.mxu0
    %888 = vdwg.mxu0
    %889 = vrot.lane.b32.xlu0 %v757, 64
    %v890 = vpop.permute.xlu0 %889
    %891 = vrot.lane.b32.xlu0 %v762, 64
    %v892 = vpop.permute.xlu0 %891
    %v894 = vsel %vm642, %v890, 0
    %v897 = vsel %vm642, %v892, 0
    %899 = vmatpush.bf16.xpose.msra.mxu0 0
    %900 = vmatpush.bf16.xpose.msra.mxu0 0
    %901 = vmatpush.bf16.xpose.msra.mxu0 0
    %902 = vmatpush.bf16.xpose.msra.mxu0 0
    %903 = vmatpush.bf16.xpose.msra.mxu0 0
    %904 = vmatpush.bf16.xpose.msra.mxu0 0
    %905 = vmatpush.bf16.xpose.msra.mxu0 0
    %906 = vmatpush.bf16.xpose.msra.mxu0 %v897
    %907 = vmatmul.bf16.gmra.mxu0 %v894
    %v908 = vpop.f32.mrf.mxu0
    %v909 = vadd.f32 0.0, %v908
    %v910 = vpop.f32.mrf.mxu0
    %911 = vdwg.mxu0
    %912 = vrot.lane.b32.xlu0 %v786, 64
    %v913 = vpop.permute.xlu0 %912
    %914 = vrot.lane.b32.xlu0 %v791, 64
    %v915 = vpop.permute.xlu0 %914
    %v917 = vsel %vm642, %v913, 0
    %v920 = vsel %vm642, %v915, 0
    %922 = vmatpush.bf16.xpose.msra.mxu0 0
    %923 = vmatpush.bf16.xpose.msra.mxu0 0
    %924 = vmatpush.bf16.xpose.msra.mxu0 0
    %925 = vmatpush.bf16.xpose.msra.mxu0 0
    %926 = vmatpush.bf16.xpose.msra.mxu0 0
    %927 = vmatpush.bf16.xpose.msra.mxu0 0
    %928 = vmatpush.bf16.xpose.msra.mxu0 0
    %929 = vmatpush.bf16.xpose.msra.mxu0 %v920
    %930 = vmatmul.bf16.gmra.mxu0 %v917
    %v931 = vpop.f32.mrf.mxu0
    %v932 = vadd.f32 0.0, %v931
    %v933 = vpop.f32.mrf.mxu0
    %934 = vdwg.mxu0
    %v935 = vmul.f32 %v909, 0.35355338
    %v936 = vmul.f32 %v932, 0.35355338
    %v937 = vadd.f32 %v935, %v685
    %v938 = vadd.f32 %v936, %v686
    %v939 = vsel %vm691, %v937, -inf
    %940 = vmax.xlane.f32.xlu0 %v939
    %v941 = vpop.xlane.xlu0 %940
    %v942 = vsel %vm691, %v938, -inf
    %943 = vmax.xlane.f32.xlu0 %v942
    %v944 = vpop.xlane.xlu0 %943
    %v945 = vsub.f32 %v937, %v941
    %v946 = vsub.f32 %v938, %v944
    %v947 = vmul.f32 %v945, 1.442695
    %v948 = vpow.pop %v947
    %v949 = vmul.f32 %v946, 1.442695
    %v950 = vpow.pop %v949
    %v951 = vsel %vm691, %v948, 0.0
    %952 = vadd.xlane.f32.xlu0 %v951
    %v953 = vpop.xlane.xlu0 %952
    %v954 = vsel %vm691, %v950, 0.0
    %955 = vadd.xlane.f32.xlu0 %v954
    %v956 = vpop.xlane.xlu0 %955
    %v957 = vrcp.pop %v953
    %v958 = vrcp.pop %v956
    %v959 = vmul.f32 %v948, %v957
    %v960 = vmul.f32 %v950, %v958
    %v961 = vpack.c.bf16 %v959, %v959
    %v962 = vpack.c.bf16 %v960, %v960
    %963 = vrot.lane.b32.xlu0 %v843, 64
    %v964 = vpop.permute.xlu0 %963
    %v966 = vsel %vm691, %v961, 0
    %v969 = vsel %vm719, %v964, 0
    %971 = vmatpush.bf16.msra.mxu0 0
    %972 = vmatpush.bf16.msra.mxu0 0
    %973 = vmatpush.bf16.msra.mxu0 0
    %974 = vmatpush.bf16.msra.mxu0 0
    %975 = vmatpush.bf16.msra.mxu0 0
    %976 = vmatpush.bf16.msra.mxu0 0
    %977 = vmatpush.bf16.msra.mxu0 0
    %978 = vmatpush.bf16.msra.mxu0 %v969
    %979 = vmatmul.bf16.gmra.mxu0 %v966
    %v980 = vpop.f32.mrf.mxu0
    %v981 = vadd.f32 0.0, %v980
    %v982 = vpop.f32.mrf.mxu0
    %983 = vdwg.mxu0
    %984 = vrot.lane.b32.xlu0 %v867, 64
    %v985 = vpop.permute.xlu0 %984
    %v987 = vsel %vm691, %v962, 0
    %v990 = vsel %vm719, %v985, 0
    %992 = vmatpush.bf16.msra.mxu0 0
    %993 = vmatpush.bf16.msra.mxu0 0
    %994 = vmatpush.bf16.msra.mxu0 0
    %995 = vmatpush.bf16.msra.mxu0 0
    %996 = vmatpush.bf16.msra.mxu0 0
    %997 = vmatpush.bf16.msra.mxu0 0
    %998 = vmatpush.bf16.msra.mxu0 0
    %999 = vmatpush.bf16.msra.mxu0 %v990
    %1000 = vmatmul.bf16.gmra.mxu0 %v987
    %v1001 = vpop.f32.mrf.mxu0
    %v1002 = vadd.f32 0.0, %v1001
    %v1003 = vpop.f32.mrf.mxu0
    %1004 = vdwg.mxu0
    %1005 = vrot.lane.b32.xlu0 %v757, 32
    %v1006 = vpop.permute.xlu0 %1005
    %1007 = vrot.lane.b32.xlu0 %v762, 32
    %v1008 = vpop.permute.xlu0 %1007
    %v1010 = vsel %vm642, %v1006, 0
    %v1013 = vsel %vm642, %v1008, 0
    %1015 = vmatpush.bf16.xpose.msra.mxu0 0
    %1016 = vmatpush.bf16.xpose.msra.mxu0 0
    %1017 = vmatpush.bf16.xpose.msra.mxu0 0
    %1018 = vmatpush.bf16.xpose.msra.mxu0 0
    %1019 = vmatpush.bf16.xpose.msra.mxu0 0
    %1020 = vmatpush.bf16.xpose.msra.mxu0 0
    %1021 = vmatpush.bf16.xpose.msra.mxu0 0
    %1022 = vmatpush.bf16.xpose.msra.mxu0 %v1013
    %1023 = vmatmul.bf16.gmra.mxu0 %v1010
    %v1024 = vpop.f32.mrf.mxu0
    %v1025 = vadd.f32 0.0, %v1024
    %v1026 = vpop.f32.mrf.mxu0
    %1027 = vdwg.mxu0
    %1028 = vrot.lane.b32.xlu0 %v786, 32
    %v1029 = vpop.permute.xlu0 %1028
    %1030 = vrot.lane.b32.xlu0 %v791, 32
    %v1031 = vpop.permute.xlu0 %1030
    %v1033 = vsel %vm642, %v1029, 0
    %v1036 = vsel %vm642, %v1031, 0
    %1038 = vmatpush.bf16.xpose.msra.mxu0 0
    %1039 = vmatpush.bf16.xpose.msra.mxu0 0
    %1040 = vmatpush.bf16.xpose.msra.mxu0 0
    %1041 = vmatpush.bf16.xpose.msra.mxu0 0
    %1042 = vmatpush.bf16.xpose.msra.mxu0 0
    %1043 = vmatpush.bf16.xpose.msra.mxu0 0
    %1044 = vmatpush.bf16.xpose.msra.mxu0 0
    %1045 = vmatpush.bf16.xpose.msra.mxu0 %v1036
    %1046 = vmatmul.bf16.gmra.mxu0 %v1033
    %v1047 = vpop.f32.mrf.mxu0
    %v1048 = vadd.f32 0.0, %v1047
    %v1049 = vpop.f32.mrf.mxu0
    %1050 = vdwg.mxu0
    %v1051 = vmul.f32 %v1025, 0.35355338
    %v1052 = vmul.f32 %v1048, 0.35355338
    %v1053 = vadd.f32 %v1051, %v685
    %v1054 = vadd.f32 %v1052, %v686
    %v1055 = vsel %vm691, %v1053, -inf
    %1056 = vmax.xlane.f32.xlu0 %v1055
    %v1057 = vpop.xlane.xlu0 %1056
    %v1058 = vsel %vm691, %v1054, -inf
    %1059 = vmax.xlane.f32.xlu0 %v1058
    %v1060 = vpop.xlane.xlu0 %1059
    %v1061 = vsub.f32 %v1053, %v1057
    %v1062 = vsub.f32 %v1054, %v1060
    %v1063 = vmul.f32 %v1061, 1.442695
    %v1064 = vpow.pop %v1063
    %v1065 = vmul.f32 %v1062, 1.442695
    %v1066 = vpow.pop %v1065
    %v1067 = vsel %vm691, %v1064, 0.0
    %1068 = vadd.xlane.f32.xlu0 %v1067
    %v1069 = vpop.xlane.xlu0 %1068
    %v1070 = vsel %vm691, %v1066, 0.0
    %1071 = vadd.xlane.f32.xlu0 %v1070
    %v1072 = vpop.xlane.xlu0 %1071
    %v1073 = vrcp.pop %v1069
    %v1074 = vrcp.pop %v1072
    %v1075 = vmul.f32 %v1064, %v1073
    %v1076 = vmul.f32 %v1066, %v1074
    %v1077 = vpack.c.bf16 %v1075, %v1075
    %v1078 = vpack.c.bf16 %v1076, %v1076
    %1079 = vrot.lane.b32.xlu0 %v843, 32
    %v1080 = vpop.permute.xlu0 %1079
    %v1082 = vsel %vm691, %v1077, 0
    %v1085 = vsel %vm719, %v1080, 0
    %1087 = vmatpush.bf16.msra.mxu0 0
    %1088 = vmatpush.bf16.msra.mxu0 0
    %1089 = vmatpush.bf16.msra.mxu0 0
    %1090 = vmatpush.bf16.msra.mxu0 0
    %1091 = vmatpush.bf16.msra.mxu0 0
    %1092 = vmatpush.bf16.msra.mxu0 0
    %1093 = vmatpush.bf16.msra.mxu0 0
    %1094 = vmatpush.bf16.msra.mxu0 %v1085
    %1095 = vmatmul.bf16.gmra.mxu0 %v1082
    %v1096 = vpop.f32.mrf.mxu0
    %v1097 = vadd.f32 0.0, %v1096
    %v1098 = vpop.f32.mrf.mxu0
    %1099 = vdwg.mxu0
    %1100 = vrot.lane.b32.xlu0 %v867, 32
    %v1101 = vpop.permute.xlu0 %1100
    %v1103 = vsel %vm691, %v1078, 0
    %v1106 = vsel %vm719, %v1101, 0
    %1108 = vmatpush.bf16.msra.mxu0 0
    %1109 = vmatpush.bf16.msra.mxu0 0
    %1110 = vmatpush.bf16.msra.mxu0 0
    %1111 = vmatpush.bf16.msra.mxu0 0
    %1112 = vmatpush.bf16.msra.mxu0 0
    %1113 = vmatpush.bf16.msra.mxu0 0
    %1114 = vmatpush.bf16.msra.mxu0 0
    %1115 = vmatpush.bf16.msra.mxu0 %v1106
    %1116 = vmatmul.bf16.gmra.mxu0 %v1103
    %v1117 = vpop.f32.mrf.mxu0
    %v1118 = vadd.f32 0.0, %v1117
    %v1119 = vpop.f32.mrf.mxu0
    %1120 = vdwg.mxu0
    %1123 = vrot.lane.b32.xlu0 %v862, 32
    %v1124 = vpop.permute.xlu0 %1123
    %1125 = vrot.lane.b32.xlu0 %v886, 32
    %v1126 = vpop.permute.xlu0 %1125
    %1131 = vrot.lane.b32.xlu0 %v981, 64
    %v1132 = vpop.permute.xlu0 %1131
    %1133 = vrot.lane.b32.xlu0 %v1002, 64
    %v1134 = vpop.permute.xlu0 %1133
    %1139 = vrot.lane.b32.xlu0 %v1097, 96
    %v1140 = vpop.permute.xlu0 %1139
    %1141 = vrot.lane.b32.xlu0 %v1118, 96
    %v1142 = vpop.permute.xlu0 %1141
    %v1145 = vsel %vm642, %v733, %v1124
    %v1146 = vsel %vm642, %v752, %v1126
    %vm1147 = vcmask 523264
    %v1148 = vsel %vm1147, %v1145, %v1132
    %v1149 = vsel %vm1147, %v1146, %v1134
    %vm1150 = vcmask 785408
    %v1151 = vsel %vm1150, %v1148, %v1140
    %v1152 = vsel %vm1150, %v1149, %v1142
    %v1153 = vpack.c.bf16 %v1152, %v1151
    %v1154 = vld [vmem:[#allocation13] sm:$0xf]
    %v1155 = vld [vmem:[#allocation13 + $0x4] sm:$0xf]
    %v1156 = vld [vmem:[#allocation13 + $0x8] sm:$0xf]
    %v1157 = vld [vmem:[#allocation13 + $0xc] sm:$0xf]
    %v1158 = vld [vmem:[#allocation13 + $0x10] sm:$0xf]
    %v1159 = vld [vmem:[#allocation13 + $0x14] sm:$0xf]
    %v1160 = vld [vmem:[#allocation13 + $0x18] sm:$0xf]
    %v1161 = vld [vmem:[#allocation13 + $0x1c] sm:$0xf]
    %v1162 = vld [vmem:[#allocation13 + $0x20] sm:$0xf]
    %v1163 = vld [vmem:[#allocation13 + $0x24] sm:$0xf]
    %v1164 = vld [vmem:[#allocation13 + $0x28] sm:$0xf]
    %v1165 = vld [vmem:[#allocation13 + $0x2c] sm:$0xf]
    %v1166 = vld [vmem:[#allocation13 + $0x30] sm:$0xf]
    %v1167 = vld [vmem:[#allocation13 + $0x34] sm:$0xf]
    %v1168 = vld [vmem:[#allocation13 + $0x38] sm:$0xf]
    %v1169 = vld [vmem:[#allocation13 + $0x3c] sm:$0xf]
    %v1170 = vld [vmem:[%s13] sm:$0x1]
    %v1172 = vperm.slane %v1170, 0
    %v1190 = vunpack.c.l.b16 %v1154
    %v1191 = vunpack.c.l.b16 %v1155
    %v1192 = vunpack.c.l.b16 %v1156
    %v1193 = vunpack.c.l.b16 %v1157
    %v1194 = vunpack.c.l.b16 %v1158
    %v1195 = vunpack.c.l.b16 %v1159
    %v1196 = vunpack.c.l.b16 %v1160
    %v1197 = vunpack.c.l.b16 %v1161
    %v1198 = vunpack.c.l.b16 %v1162
    %v1199 = vunpack.c.l.b16 %v1163
    %v1200 = vunpack.c.l.b16 %v1164
    %v1201 = vunpack.c.l.b16 %v1165
    %v1202 = vunpack.c.l.b16 %v1166
    %v1203 = vunpack.c.l.b16 %v1167
    %v1204 = vunpack.c.l.b16 %v1168
    %v1205 = vunpack.c.l.b16 %v1169
    %v1206 = vpack.c.b16 %v1191, %v1190
    %v1207 = vpack.c.b16 %v1193, %v1192
    %v1208 = vpack.c.b16 %v1195, %v1194
    %v1209 = vpack.c.b16 %v1197, %v1196
    %v1210 = vpack.c.b16 %v1199, %v1198
    %v1211 = vpack.c.b16 %v1201, %v1200
    %v1212 = vpack.c.b16 %v1203, %v1202
    %v1213 = vpack.c.b16 %v1205, %v1204
    %1222 = vmatpush.bf16.msra.mxu0 %v1213
    %1223 = vmatpush.bf16.msra.mxu0 %v1212
    %1224 = vmatpush.bf16.msra.mxu0 %v1211
    %1225 = vmatpush.bf16.msra.mxu0 %v1210
    %1226 = vmatpush.bf16.msra.mxu0 %v1209
    %1227 = vmatpush.bf16.msra.mxu0 %v1208
    %1228 = vmatpush.bf16.msra.mxu0 %v1207
    %1229 = vmatpush.bf16.msra.mxu0 %v1206
    %1230 = vmatmul.bf16.gmra.mxu0 %v1153
    %v1231 = vpop.f32.mrf.mxu0
    %v1232 = vadd.f32 %v1172, %v1231
    %v1233 = vpop.f32.mrf.mxu0
    %v1234 = vadd.f32 %v1172, %v1233
    %1235 = vdwg.mxu0
    %v1236 = vadd.f32 %v380, %v1232
    %v1237 = vadd.f32 %v381, %v1234
    %v1238 = vld [vmem:[%s14] sm:$0x1]
    %v1239 = vld [vmem:[%s15] sm:$0x1]
    %1240 = vadd.xlane.f32.xlu0 %v1236
    %v1241 = vpop.xlane.xlu0 %1240
    %1242 = vadd.xlane.f32.xlu0 %v1237
    %v1243 = vpop.xlane.xlu0 %1242
    %v1244 = vmul.f32 %v1241, 0.03125
    %v1245 = vmul.f32 %v1243, 0.03125
    %v1246 = vsub.f32 %v1236, %v1244
    %v1247 = vsub.f32 %v1237, %v1245
    %v1248 = vmul.f32 %v1246, %v272
    %v1249 = vmul.f32 %v1247, %v272
    %v1250 = vmul.f32 %v1248, %v1248
    %v1251 = vmul.f32 %v1249, %v1249
    %1252 = vadd.xlane.f32.xlu0 %v1250
    %v1253 = vpop.xlane.xlu0 %1252
    %1254 = vadd.xlane.f32.xlu0 %v1251
    %v1255 = vpop.xlane.xlu0 %1254
    %v1256 = vmul.f32 %v1253, 0.03125
    %v1257 = vmul.f32 %v1255, 0.03125
    %v1258 = vadd.f32 %v1256, 1e-05
    %v1259 = vadd.f32 %v1257, 1e-05
    %v1260 = vrsqrt.pop %v1258
    %v1261 = vmul.f32 %v1260, %v1258
    %v1262 = vmul.f32 %v1261, %v1260
    %v1263 = vmul.f32 0.5, %v1262
    %v1264 = vsub.f32 1.5, %v1263
    %v1265 = vmul.f32 %v1260, %v1264
    %vm1266 = vweird.f32 %v1258
    %vm1267 = vweird.f32 %v1260
    %vm1268 = vmor %vm1266, %vm1267
    %v1269 = vsel %vm1268, %v1260, %v1265
    %v1270 = vrsqrt.pop %v1259
    %v1271 = vmul.f32 %v1270, %v1259
    %v1272 = vmul.f32 %v1271, %v1270
    %v1273 = vmul.f32 0.5, %v1272
    %v1274 = vsub.f32 1.5, %v1273
    %v1275 = vmul.f32 %v1270, %v1274
    %vm1276 = vweird.f32 %v1259
    %vm1277 = vweird.f32 %v1270
    %vm1278 = vmor %vm1276, %vm1277
    %v1279 = vsel %vm1278, %v1270, %v1275
    %v1280 = vmul.f32 %v1248, %v1269
    %v1281 = vmul.f32 %v1249, %v1279
    %v1283 = vperm.slane %v1238, 0
    %v1285 = vmul.f32 %v1280, %v1283
    %v1286 = vmul.f32 %v1281, %v1283
    %v1288 = vperm.slane %v1239, 0
    %v1290 = vadd.f32 %v1285, %v1288
    %v1291 = vadd.f32 %v1286, %v1288
    %v1292 = vpack.c.bf16 %v1291, %v1290
    %v1293 = vld [vmem:[#allocation14] sm:$0xf]
    %v1294 = vld [vmem:[#allocation14 + $0x4] sm:$0xf]
    %v1295 = vld [vmem:[#allocation14 + $0x8] sm:$0xf]
    %v1296 = vld [vmem:[#allocation14 + $0xc] sm:$0xf]
    %v1297 = vld [vmem:[#allocation14 + $0x10] sm:$0xf]
    %v1298 = vld [vmem:[#allocation14 + $0x14] sm:$0xf]
    %v1299 = vld [vmem:[#allocation14 + $0x18] sm:$0xf]
    %v1300 = vld [vmem:[#allocation14 + $0x1c] sm:$0xf]
    %v1301 = vld [vmem:[#allocation14 + $0x20] sm:$0xf]
    %v1302 = vld [vmem:[#allocation14 + $0x24] sm:$0xf]
    %v1303 = vld [vmem:[#allocation14 + $0x28] sm:$0xf]
    %v1304 = vld [vmem:[#allocation14 + $0x2c] sm:$0xf]
    %v1305 = vld [vmem:[#allocation14 + $0x30] sm:$0xf]
    %v1306 = vld [vmem:[#allocation14 + $0x34] sm:$0xf]
    %v1307 = vld [vmem:[#allocation14 + $0x38] sm:$0xf]
    %v1308 = vld [vmem:[#allocation14 + $0x3c] sm:$0xf]
    %v1309 = vld [vmem:[%s17] sm:$0x1]
    %v1311 = vperm.slane %v1309, 0
    %v1329 = vunpack.c.l.b16 %v1293
    %v1330 = vunpack.c.l.b16 %v1294
    %v1331 = vunpack.c.l.b16 %v1295
    %v1332 = vunpack.c.l.b16 %v1296
    %v1333 = vunpack.c.l.b16 %v1297
    %v1334 = vunpack.c.l.b16 %v1298
    %v1335 = vunpack.c.l.b16 %v1299
    %v1336 = vunpack.c.l.b16 %v1300
    %v1337 = vunpack.c.l.b16 %v1301
    %v1338 = vunpack.c.l.b16 %v1302
    %v1339 = vunpack.c.l.b16 %v1303
    %v1340 = vunpack.c.l.b16 %v1304
    %v1341 = vunpack.c.l.b16 %v1305
    %v1342 = vunpack.c.l.b16 %v1306
    %v1343 = vunpack.c.l.b16 %v1307
    %v1344 = vunpack.c.l.b16 %v1308
    %v1345 = vpack.c.b16 %v1330, %v1329
    %v1346 = vpack.c.b16 %v1332, %v1331
    %v1347 = vpack.c.b16 %v1334, %v1333
    %v1348 = vpack.c.b16 %v1336, %v1335
    %v1349 = vpack.c.b16 %v1338, %v1337
    %v1350 = vpack.c.b16 %v1340, %v1339
    %v1351 = vpack.c.b16 %v1342, %v1341
    %v1352 = vpack.c.b16 %v1344, %v1343
    %1361 = vmatpush.bf16.msra.mxu0 %v1352
    %1362 = vmatpush.bf16.msra.mxu0 %v1351
    %1363 = vmatpush.bf16.msra.mxu0 %v1350
    %1364 = vmatpush.bf16.msra.mxu0 %v1349
    %1365 = vmatpush.bf16.msra.mxu0 %v1348
    %1366 = vmatpush.bf16.msra.mxu0 %v1347
    %1367 = vmatpush.bf16.msra.mxu0 %v1346
    %1368 = vmatpush.bf16.msra.mxu0 %v1345
    %1369 = vmatmul.bf16.gmra.mxu0 %v1292
    %v1370 = vpop.f32.mrf.mxu0
    %v1371 = vadd.f32 %v1311, %v1370
    %v1372 = vpop.f32.mrf.mxu0
    %v1373 = vadd.f32 %v1311, %v1372
    %1374 = vdwg.mxu0
    %v1375 = vmul.f32 %v1371, 0.5
    %v1376 = vmul.f32 %v1373, 0.5
    %v1377 = vmul.f32 %v1371, 0.044715
    %v1378 = vmul.f32 %v1373, 0.044715
    %v1379 = vmul.f32 %v1377, %v1371
    %v1380 = vmul.f32 %v1378, %v1373
    %v1381 = vmul.f32 %v1379, %v1371
    %v1382 = vmul.f32 %v1380, %v1373
    %v1383 = vadd.f32 %v1371, %v1381
    %v1384 = vadd.f32 %v1373, %v1382
    %v1385 = vmul.f32 %v1383, 0.7978846
    %v1386 = vmul.f32 %v1384, 0.7978846
    %v1387 = vtanh.pop %v1385
    %v1388 = vtanh.pop %v1386
    %v1389 = vadd.f32 %v1387, 1.0
    %v1390 = vadd.f32 %v1388, 1.0
    %v1391 = vmul.f32 %v1375, %v1389
    %v1392 = vmul.f32 %v1376, %v1390
    %v1393 = vpack.c.bf16 %v1392, %v1391
    %v1394 = vld [vmem:[#allocation16] sm:$0xf]
    %v1395 = vld [vmem:[#allocation16 + $0x4] sm:$0xf]
    %v1396 = vld [vmem:[#allocation16 + $0x8] sm:$0xf]
    %v1397 = vld [vmem:[#allocation16 + $0xc] sm:$0xf]
    %v1398 = vld [vmem:[#allocation16 + $0x10] sm:$0xf]
    %v1399 = vld [vmem:[#allocation16 + $0x14] sm:$0xf]
    %v1400 = vld [vmem:[#allocation16 + $0x18] sm:$0xf]
    %v1401 = vld [vmem:[#allocation16 + $0x1c] sm:$0xf]
    %v1402 = vld [vmem:[#allocation16 + $0x20] sm:$0xf]
    %v1403 = vld [vmem:[#allocation16 + $0x24] sm:$0xf]
    %v1404 = vld [vmem:[#allocation16 + $0x28] sm:$0xf]
    %v1405 = vld [vmem:[#allocation16 + $0x2c] sm:$0xf]
    %v1406 = vld [vmem:[#allocation16 + $0x30] sm:$0xf]
    %v1407 = vld [vmem:[#allocation16 + $0x34] sm:$0xf]
    %v1408 = vld [vmem:[#allocation16 + $0x38] sm:$0xf]
    %v1409 = vld [vmem:[#allocation16 + $0x3c] sm:$0xf]
    %v1410 = vld [vmem:[%s19] sm:$0x1]
    %v1412 = vperm.slane %v1410, 0
    %v1430 = vunpack.c.l.b16 %v1394
    %v1431 = vunpack.c.l.b16 %v1395
    %v1432 = vunpack.c.l.b16 %v1396
    %v1433 = vunpack.c.l.b16 %v1397
    %v1434 = vunpack.c.l.b16 %v1398
    %v1435 = vunpack.c.l.b16 %v1399
    %v1436 = vunpack.c.l.b16 %v1400
    %v1437 = vunpack.c.l.b16 %v1401
    %v1438 = vunpack.c.l.b16 %v1402
    %v1439 = vunpack.c.l.b16 %v1403
    %v1440 = vunpack.c.l.b16 %v1404
    %v1441 = vunpack.c.l.b16 %v1405
    %v1442 = vunpack.c.l.b16 %v1406
    %v1443 = vunpack.c.l.b16 %v1407
    %v1444 = vunpack.c.l.b16 %v1408
    %v1445 = vunpack.c.l.b16 %v1409
    %v1446 = vpack.c.b16 %v1431, %v1430
    %v1447 = vpack.c.b16 %v1433, %v1432
    %v1448 = vpack.c.b16 %v1435, %v1434
    %v1449 = vpack.c.b16 %v1437, %v1436
    %v1450 = vpack.c.b16 %v1439, %v1438
    %v1451 = vpack.c.b16 %v1441, %v1440
    %v1452 = vpack.c.b16 %v1443, %v1442
    %v1453 = vpack.c.b16 %v1445, %v1444
    %1462 = vmatpush.bf16.msra.mxu0 %v1453
    %1463 = vmatpush.bf16.msra.mxu0 %v1452
    %1464 = vmatpush.bf16.msra.mxu0 %v1451
    %1465 = vmatpush.bf16.msra.mxu0 %v1450
    %1466 = vmatpush.bf16.msra.mxu0 %v1449
    %1467 = vmatpush.bf16.msra.mxu0 %v1448
    %1468 = vmatpush.bf16.msra.mxu0 %v1447
    %1469 = vmatpush.bf16.msra.mxu0 %v1446
    %1470 = vmatmul.bf16.gmra.mxu0 %v1393
    %v1471 = vpop.f32.mrf.mxu0
    %v1472 = vadd.f32 %v1412, %v1471
    %v1473 = vpop.f32.mrf.mxu0
    %v1474 = vadd.f32 %v1412, %v1473
    %1475 = vdwg.mxu0
    %v1476 = vadd.f32 %v1290, %v1472
    %v1477 = vadd.f32 %v1291, %v1474
    %v1478 = vld [vmem:[%s20] sm:$0x1]
    %v1479 = vld [vmem:[#allocation17] sm:$0x1]
    %1480 = vadd.xlane.f32.xlu0 %v1476
    %v1481 = vpop.xlane.xlu0 %1480
    %1482 = vadd.xlane.f32.xlu0 %v1477
    %v1483 = vpop.xlane.xlu0 %1482
    %v1484 = vmul.f32 %v1481, 0.03125
    %v1485 = vmul.f32 %v1483, 0.03125
    %v1486 = vsub.f32 %v1476, %v1484
    %v1487 = vsub.f32 %v1477, %v1485
    %v1488 = vmul.f32 %v1486, %v272
    %v1489 = vmul.f32 %v1487, %v272
    %v1490 = vmul.f32 %v1488, %v1488
    %v1491 = vmul.f32 %v1489, %v1489
    %1492 = vadd.xlane.f32.xlu0 %v1490
    %v1493 = vpop.xlane.xlu0 %1492
    %1494 = vadd.xlane.f32.xlu0 %v1491
    %v1495 = vpop.xlane.xlu0 %1494
    %v1496 = vmul.f32 %v1493, 0.03125
    %v1497 = vmul.f32 %v1495, 0.03125
    %v1498 = vadd.f32 %v1496, 1e-05
    %v1499 = vadd.f32 %v1497, 1e-05
    %v1500 = vrsqrt.pop %v1498
    %v1501 = vmul.f32 %v1500, %v1498
    %v1502 = vmul.f32 %v1501, %v1500
    %v1503 = vmul.f32 0.5, %v1502
    %v1504 = vsub.f32 1.5, %v1503
    %v1505 = vmul.f32 %v1500, %v1504
    %vm1506 = vweird.f32 %v1498
    %vm1507 = vweird.f32 %v1500
    %vm1508 = vmor %vm1506, %vm1507
    %v1509 = vsel %vm1508, %v1500, %v1505
    %v1510 = vrsqrt.pop %v1499
    %v1511 = vmul.f32 %v1510, %v1499
    %v1512 = vmul.f32 %v1511, %v1510
    %v1513 = vmul.f32 0.5, %v1512
    %v1514 = vsub.f32 1.5, %v1513
    %v1515 = vmul.f32 %v1510, %v1514
    %vm1516 = vweird.f32 %v1499
    %vm1517 = vweird.f32 %v1510
    %vm1518 = vmor %vm1516, %vm1517
    %v1519 = vsel %vm1518, %v1510, %v1515
    %v1520 = vmul.f32 %v1488, %v1509
    %v1521 = vmul.f32 %v1489, %v1519
    %v1523 = vperm.slane %v1478, 0
    %v1525 = vmul.f32 %v1520, %v1523
    %v1526 = vmul.f32 %v1521, %v1523
    %v1528 = vperm.slane %v1479, 0
    %v1530 = vadd.f32 %v1525, %v1528
    %v1531 = vadd.f32 %v1526, %v1528
    %v1532 = vpack.c.bf16 %v1531, %v1530
    %s1533 = scalar_lea.vmem [#allocation8], 64
    %v1534 = vld [vmem:[%s1533] sm:$0xf]
    %v1535 = vld [vmem:[%s1533 + $0x4] sm:$0xf]
    %v1536 = vld [vmem:[%s1533 + $0x8] sm:$0xf]
    %v1537 = vld [vmem:[%s1533 + $0xc] sm:$0xf]
    %v1538 = vld [vmem:[%s1533 + $0x10] sm:$0xf]
    %v1539 = vld [vmem:[%s1533 + $0x14] sm:$0xf]
    %v1540 = vld [vmem:[%s1533 + $0x18] sm:$0xf]
    %v1541 = vld [vmem:[%s1533 + $0x1c] sm:$0xf]
    %v1542 = vld [vmem:[%s1533 + $0x20] sm:$0xf]
    %v1543 = vld [vmem:[%s1533 + $0x24] sm:$0xf]
    %v1544 = vld [vmem:[%s1533 + $0x28] sm:$0xf]
    %v1545 = vld [vmem:[%s1533 + $0x2c] sm:$0xf]
    %v1546 = vld [vmem:[%s1533 + $0x30] sm:$0xf]
    %v1547 = vld [vmem:[%s1533 + $0x34] sm:$0xf]
    %v1548 = vld [vmem:[%s1533 + $0x38] sm:$0xf]
    %v1549 = vld [vmem:[%s1533 + $0x3c] sm:$0xf]
    %s1550 = scalar_lea.vmem %s7, 1
    %v1551 = vld [vmem:[%s1550] sm:$0x1]
    %v1553 = vperm.slane %v1551, 0
    %v1571 = vunpack.c.l.b16 %v1534
    %v1572 = vunpack.c.l.b16 %v1535
    %v1573 = vunpack.c.l.b16 %v1536
    %v1574 = vunpack.c.l.b16 %v1537
    %v1575 = vunpack.c.l.b16 %v1538
    %v1576 = vunpack.c.l.b16 %v1539
    %v1577 = vunpack.c.l.b16 %v1540
    %v1578 = vunpack.c.l.b16 %v1541
    %v1579 = vunpack.c.l.b16 %v1542
    %v1580 = vunpack.c.l.b16 %v1543
    %v1581 = vunpack.c.l.b16 %v1544
    %v1582 = vunpack.c.l.b16 %v1545
    %v1583 = vunpack.c.l.b16 %v1546
    %v1584 = vunpack.c.l.b16 %v1547
    %v1585 = vunpack.c.l.b16 %v1548
    %v1586 = vunpack.c.l.b16 %v1549
    %v1587 = vpack.c.b16 %v1572, %v1571
    %v1588 = vpack.c.b16 %v1574, %v1573
    %v1589 = vpack.c.b16 %v1576, %v1575
    %v1590 = vpack.c.b16 %v1578, %v1577
    %v1591 = vpack.c.b16 %v1580, %v1579
    %v1592 = vpack.c.b16 %v1582, %v1581
    %v1593 = vpack.c.b16 %v1584, %v1583
    %v1594 = vpack.c.b16 %v1586, %v1585
    %1603 = vmatpush.bf16.msra.mxu0 %v1594
    %1604 = vmatpush.bf16.msra.mxu0 %v1593
    %1605 = vmatpush.bf16.msra.mxu0 %v1592
    %1606 = vmatpush.bf16.msra.mxu0 %v1591
    %1607 = vmatpush.bf16.msra.mxu0 %v1590
    %1608 = vmatpush.bf16.msra.mxu0 %v1589
    %1609 = vmatpush.bf16.msra.mxu0 %v1588
    %1610 = vmatpush.bf16.msra.mxu0 %v1587
    %1611 = vmatmul.bf16.gmra.mxu0 %v1532
    %v1612 = vpop.f32.mrf.mxu0
    %v1613 = vadd.f32 %v1553, %v1612
    %v1614 = vpop.f32.mrf.mxu0
    %v1615 = vadd.f32 %v1553, %v1614
    %1616 = vdwg.mxu0
    %s1617 = scalar_lea.vmem [#allocation10], 64
    %v1618 = vld [vmem:[%s1617] sm:$0xf]
    %v1619 = vld [vmem:[%s1617 + $0x4] sm:$0xf]
    %v1620 = vld [vmem:[%s1617 + $0x8] sm:$0xf]
    %v1621 = vld [vmem:[%s1617 + $0xc] sm:$0xf]
    %v1622 = vld [vmem:[%s1617 + $0x10] sm:$0xf]
    %v1623 = vld [vmem:[%s1617 + $0x14] sm:$0xf]
    %v1624 = vld [vmem:[%s1617 + $0x18] sm:$0xf]
    %v1625 = vld [vmem:[%s1617 + $0x1c] sm:$0xf]
    %v1626 = vld [vmem:[%s1617 + $0x20] sm:$0xf]
    %v1627 = vld [vmem:[%s1617 + $0x24] sm:$0xf]
    %v1628 = vld [vmem:[%s1617 + $0x28] sm:$0xf]
    %v1629 = vld [vmem:[%s1617 + $0x2c] sm:$0xf]
    %v1630 = vld [vmem:[%s1617 + $0x30] sm:$0xf]
    %v1631 = vld [vmem:[%s1617 + $0x34] sm:$0xf]
    %v1632 = vld [vmem:[%s1617 + $0x38] sm:$0xf]
    %v1633 = vld [vmem:[%s1617 + $0x3c] sm:$0xf]
    %s1634 = scalar_lea.vmem %s9, 1
    %v1635 = vld [vmem:[%s1634] sm:$0x1]
    %v1637 = vperm.slane %v1635, 0
    %v1655 = vunpack.c.l.b16 %v1618
    %v1656 = vunpack.c.l.b16 %v1619
    %v1657 = vunpack.c.l.b16 %v1620
    %v1658 = vunpack.c.l.b16 %v1621
    %v1659 = vunpack.c.l.b16 %v1622
    %v1660 = vunpack.c.l.b16 %v1623
    %v1661 = vunpack.c.l.b16 %v1624
    %v1662 = vunpack.c.l.b16 %v1625
    %v1663 = vunpack.c.l.b16 %v1626
    %v1664 = vunpack.c.l.b16 %v1627
    %v1665 = vunpack.c.l.b16 %v1628
    %v1666 = vunpack.c.l.b16 %v1629
    %v1667 = vunpack.c.l.b16 %v1630
    %v1668 = vunpack.c.l.b16 %v1631
    %v1669 = vunpack.c.l.b16 %v1632
    %v1670 = vunpack.c.l.b16 %v1633
    %v1671 = vpack.c.b16 %v1656, %v1655
    %v1672 = vpack.c.b16 %v1658, %v1657
    %v1673 = vpack.c.b16 %v1660, %v1659
    %v1674 = vpack.c.b16 %v1662, %v1661
    %v1675 = vpack.c.b16 %v1664, %v1663
    %v1676 = vpack.c.b16 %v1666, %v1665
    %v1677 = vpack.c.b16 %v1668, %v1667
    %v1678 = vpack.c.b16 %v1670, %v1669
    %1687 = vmatpush.bf16.msra.mxu0 %v1678
    %1688 = vmatpush.bf16.msra.mxu0 %v1677
    %1689 = vmatpush.bf16.msra.mxu0 %v1676
    %1690 = vmatpush.bf16.msra.mxu0 %v1675
    %1691 = vmatpush.bf16.msra.mxu0 %v1674
    %1692 = vmatpush.bf16.msra.mxu0 %v1673
    %1693 = vmatpush.bf16.msra.mxu0 %v1672
    %1694 = vmatpush.bf16.msra.mxu0 %v1671
    %1695 = vmatmul.bf16.gmra.mxu0 %v1532
    %v1696 = vpop.f32.mrf.mxu0
    %v1697 = vadd.f32 %v1637, %v1696
    %v1698 = vpop.f32.mrf.mxu0
    %v1699 = vadd.f32 %v1637, %v1698
    %1700 = vdwg.mxu0
    %s1701 = scalar_lea.vmem [#allocation11], 64
    %v1702 = vld [vmem:[%s1701] sm:$0xf]
    %v1703 = vld [vmem:[%s1701 + $0x4] sm:$0xf]
    %v1704 = vld [vmem:[%s1701 + $0x8] sm:$0xf]
    %v1705 = vld [vmem:[%s1701 + $0xc] sm:$0xf]
    %v1706 = vld [vmem:[%s1701 + $0x10] sm:$0xf]
    %v1707 = vld [vmem:[%s1701 + $0x14] sm:$0xf]
    %v1708 = vld [vmem:[%s1701 + $0x18] sm:$0xf]
    %v1709 = vld [vmem:[%s1701 + $0x1c] sm:$0xf]
    %v1710 = vld [vmem:[%s1701 + $0x20] sm:$0xf]
    %v1711 = vld [vmem:[%s1701 + $0x24] sm:$0xf]
    %v1712 = vld [vmem:[%s1701 + $0x28] sm:$0xf]
    %v1713 = vld [vmem:[%s1701 + $0x2c] sm:$0xf]
    %v1714 = vld [vmem:[%s1701 + $0x30] sm:$0xf]
    %v1715 = vld [vmem:[%s1701 + $0x34] sm:$0xf]
    %v1716 = vld [vmem:[%s1701 + $0x38] sm:$0xf]
    %v1717 = vld [vmem:[%s1701 + $0x3c] sm:$0xf]
    %s1718 = scalar_lea.vmem %s11, 1
    %v1719 = vld [vmem:[%s1718] sm:$0x1]
    %v1721 = vperm.slane %v1719, 0
    %v1739 = vunpack.c.l.b16 %v1702
    %v1740 = vunpack.c.l.b16 %v1703
    %v1741 = vunpack.c.l.b16 %v1704
    %v1742 = vunpack.c.l.b16 %v1705
    %v1743 = vunpack.c.l.b16 %v1706
    %v1744 = vunpack.c.l.b16 %v1707
    %v1745 = vunpack.c.l.b16 %v1708
    %v1746 = vunpack.c.l.b16 %v1709
    %v1747 = vunpack.c.l.b16 %v1710
    %v1748 = vunpack.c.l.b16 %v1711
    %v1749 = vunpack.c.l.b16 %v1712
    %v1750 = vunpack.c.l.b16 %v1713
    %v1751 = vunpack.c.l.b16 %v1714
    %v1752 = vunpack.c.l.b16 %v1715
    %v1753 = vunpack.c.l.b16 %v1716
    %v1754 = vunpack.c.l.b16 %v1717
    %v1755 = vpack.c.b16 %v1740, %v1739
    %v1756 = vpack.c.b16 %v1742, %v1741
    %v1757 = vpack.c.b16 %v1744, %v1743
    %v1758 = vpack.c.b16 %v1746, %v1745
    %v1759 = vpack.c.b16 %v1748, %v1747
    %v1760 = vpack.c.b16 %v1750, %v1749
    %v1761 = vpack.c.b16 %v1752, %v1751
    %v1762 = vpack.c.b16 %v1754, %v1753
    %1771 = vmatpush.bf16.msra.mxu0 %v1762
    %1772 = vmatpush.bf16.msra.mxu0 %v1761
    %1773 = vmatpush.bf16.msra.mxu0 %v1760
    %1774 = vmatpush.bf16.msra.mxu0 %v1759
    %1775 = vmatpush.bf16.msra.mxu0 %v1758
    %1776 = vmatpush.bf16.msra.mxu0 %v1757
    %1777 = vmatpush.bf16.msra.mxu0 %v1756
    %1778 = vmatpush.bf16.msra.mxu0 %v1755
    %1779 = vmatmul.bf16.gmra.mxu0 %v1532
    %v1780 = vpop.f32.mrf.mxu0
    %v1781 = vadd.f32 %v1721, %v1780
    %v1782 = vpop.f32.mrf.mxu0
    %v1783 = vadd.f32 %v1721, %v1782
    %1784 = vdwg.mxu0
    %v1785 = vpack.c.bf16 %v1613, %v1613
    %v1786 = vpack.c.bf16 %v1615, %v1615
    %v1787 = vpack.c.bf16 %v1697, %v1697
    %v1788 = vpack.c.bf16 %v1699, %v1699
    %v1789 = vpack.c.bf16 %v1781, %v1781
    %v1790 = vpack.c.bf16 %v1783, %v1783
    %v1792 = vsel %vm642, %v1785, 0
    %v1795 = vsel %vm642, %v1787, 0
    %1797 = vmatpush.bf16.xpose.msra.mxu0 0
    %1798 = vmatpush.bf16.xpose.msra.mxu0 0
    %1799 = vmatpush.bf16.xpose.msra.mxu0 0
    %1800 = vmatpush.bf16.xpose.msra.mxu0 0
    %1801 = vmatpush.bf16.xpose.msra.mxu0 0
    %1802 = vmatpush.bf16.xpose.msra.mxu0 0
    %1803 = vmatpush.bf16.xpose.msra.mxu0 0
    %1804 = vmatpush.bf16.xpose.msra.mxu0 %v1795
    %1805 = vmatmul.bf16.gmra.mxu0 %v1792
    %v1806 = vpop.f32.mrf.mxu0
    %v1807 = vadd.f32 0.0, %v1806
    %v1808 = vpop.f32.mrf.mxu0
    %1809 = vdwg.mxu0
    %v1811 = vsel %vm642, %v1786, 0
    %v1814 = vsel %vm642, %v1788, 0
    %1816 = vmatpush.bf16.xpose.msra.mxu0 0
    %1817 = vmatpush.bf16.xpose.msra.mxu0 0
    %1818 = vmatpush.bf16.xpose.msra.mxu0 0
    %1819 = vmatpush.bf16.xpose.msra.mxu0 0
    %1820 = vmatpush.bf16.xpose.msra.mxu0 0
    %1821 = vmatpush.bf16.xpose.msra.mxu0 0
    %1822 = vmatpush.bf16.xpose.msra.mxu0 0
    %1823 = vmatpush.bf16.xpose.msra.mxu0 %v1814
    %1824 = vmatmul.bf16.gmra.mxu0 %v1811
    %v1825 = vpop.f32.mrf.mxu0
    %v1826 = vadd.f32 0.0, %v1825
    %v1827 = vpop.f32.mrf.mxu0
    %1828 = vdwg.mxu0
    %v1829 = vmul.f32 %v1807, 0.35355338
    %v1830 = vmul.f32 %v1826, 0.35355338
    %v1831 = vadd.f32 %v1829, %v685
    %v1832 = vadd.f32 %v1830, %v686
    %v1833 = vsel %vm691, %v1831, -inf
    %1834 = vmax.xlane.f32.xlu0 %v1833
    %v1835 = vpop.xlane.xlu0 %1834
    %v1836 = vsel %vm691, %v1832, -inf
    %1837 = vmax.xlane.f32.xlu0 %v1836
    %v1838 = vpop.xlane.xlu0 %1837
    %v1839 = vsub.f32 %v1831, %v1835
    %v1840 = vsub.f32 %v1832, %v1838
    %v1841 = vmul.f32 %v1839, 1.442695
    %v1842 = vpow.pop %v1841
    %v1843 = vmul.f32 %v1840, 1.442695
    %v1844 = vpow.pop %v1843
    %v1845 = vsel %vm691, %v1842, 0.0
    %1846 = vadd.xlane.f32.xlu0 %v1845
    %v1847 = vpop.xlane.xlu0 %1846
    %v1848 = vsel %vm691, %v1844, 0.0
    %1849 = vadd.xlane.f32.xlu0 %v1848
    %v1850 = vpop.xlane.xlu0 %1849
    %v1851 = vrcp.pop %v1847
    %v1852 = vrcp.pop %v1850
    %v1853 = vmul.f32 %v1842, %v1851
    %v1854 = vmul.f32 %v1844, %v1852
    %v1855 = vpack.c.bf16 %v1853, %v1853
    %v1856 = vpack.c.bf16 %v1854, %v1854
    %v1858 = vsel %vm691, %v1855, 0
    %v1861 = vsel %vm719, %v1789, 0
    %1863 = vmatpush.bf16.msra.mxu0 0
    %1864 = vmatpush.bf16.msra.mxu0 0
    %1865 = vmatpush.bf16.msra.mxu0 0
    %1866 = vmatpush.bf16.msra.mxu0 0
    %1867 = vmatpush.bf16.msra.mxu0 0
    %1868 = vmatpush.bf16.msra.mxu0 0
    %1869 = vmatpush.bf16.msra.mxu0 0
    %1870 = vmatpush.bf16.msra.mxu0 %v1861
    %1871 = vmatmul.bf16.gmra.mxu0 %v1858
    %v1872 = vpop.f32.mrf.mxu0
    %v1873 = vadd.f32 0.0, %v1872
    %v1874 = vpop.f32.mrf.mxu0
    %1875 = vdwg.mxu0
    %v1877 = vsel %vm691, %v1856, 0
    %v1880 = vsel %vm719, %v1790, 0
    %1882 = vmatpush.bf16.msra.mxu0 0
    %1883 = vmatpush.bf16.msra.mxu0 0
    %1884 = vmatpush.bf16.msra.mxu0 0
    %1885 = vmatpush.bf16.msra.mxu0 0
    %1886 = vmatpush.bf16.msra.mxu0 0
    %1887 = vmatpush.bf16.msra.mxu0 0
    %1888 = vmatpush.bf16.msra.mxu0 0
    %1889 = vmatpush.bf16.msra.mxu0 %v1880
    %1890 = vmatmul.bf16.gmra.mxu0 %v1877
    %v1891 = vpop.f32.mrf.mxu0
    %v1892 = vadd.f32 0.0, %v1891
    %v1893 = vpop.f32.mrf.mxu0
    %1894 = vdwg.mxu0
    %v1896 = vunpack.c.l.b16 %v1785
    %v1897 = vpack.c.b16 %v1896, %v1896
    %1898 = vrot.lane.b32.xlu0 %v1897, 96
    %v1899 = vpop.permute.xlu0 %1898
    %v1901 = vunpack.c.l.b16 %v1787
    %v1902 = vpack.c.b16 %v1901, %v1901
    %1903 = vrot.lane.b32.xlu0 %v1902, 96
    %v1904 = vpop.permute.xlu0 %1903
    %v1906 = vsel %vm642, %v1899, 0
    %v1909 = vsel %vm642, %v1904, 0
    %1911 = vmatpush.bf16.xpose.msra.mxu0 0
    %1912 = vmatpush.bf16.xpose.msra.mxu0 0
    %1913 = vmatpush.bf16.xpose.msra.mxu0 0
    %1914 = vmatpush.bf16.xpose.msra.mxu0 0
    %1915 = vmatpush.bf16.xpose.msra.mxu0 0
    %1916 = vmatpush.bf16.xpose.msra.mxu0 0
    %1917 = vmatpush.bf16.xpose.msra.mxu0 0
    %1918 = vmatpush.bf16.xpose.msra.mxu0 %v1909
    %1919 = vmatmul.bf16.gmra.mxu0 %v1906
    %v1920 = vpop.f32.mrf.mxu0
    %v1921 = vadd.f32 0.0, %v1920
    %v1922 = vpop.f32.mrf.mxu0
    %1923 = vdwg.mxu0
    %v1925 = vunpack.c.l.b16 %v1786
    %v1926 = vpack.c.b16 %v1925, %v1925
    %1927 = vrot.lane.b32.xlu0 %v1926, 96
    %v1928 = vpop.permute.xlu0 %1927
    %v1930 = vunpack.c.l.b16 %v1788
    %v1931 = vpack.c.b16 %v1930, %v1930
    %1932 = vrot.lane.b32.xlu0 %v1931, 96
    %v1933 = vpop.permute.xlu0 %1932
    %v1935 = vsel %vm642, %v1928, 0
    %v1938 = vsel %vm642, %v1933, 0
    %1940 = vmatpush.bf16.xpose.msra.mxu0 0
    %1941 = vmatpush.bf16.xpose.msra.mxu0 0
    %1942 = vmatpush.bf16.xpose.msra.mxu0 0
    %1943 = vmatpush.bf16.xpose.msra.mxu0 0
    %1944 = vmatpush.bf16.xpose.msra.mxu0 0
    %1945 = vmatpush.bf16.xpose.msra.mxu0 0
    %1946 = vmatpush.bf16.xpose.msra.mxu0 0
    %1947 = vmatpush.bf16.xpose.msra.mxu0 %v1938
    %1948 = vmatmul.bf16.gmra.mxu0 %v1935
    %v1949 = vpop.f32.mrf.mxu0
    %v1950 = vadd.f32 0.0, %v1949
    %v1951 = vpop.f32.mrf.mxu0
    %1952 = vdwg.mxu0
    %v1953 = vmul.f32 %v1921, 0.35355338
    %v1954 = vmul.f32 %v1950, 0.35355338
    %v1955 = vadd.f32 %v1953, %v685
    %v1956 = vadd.f32 %v1954, %v686
    %v1957 = vsel %vm691, %v1955, -inf
    %1958 = vmax.xlane.f32.xlu0 %v1957
    %v1959 = vpop.xlane.xlu0 %1958
    %v1960 = vsel %vm691, %v1956, -inf
    %1961 = vmax.xlane.f32.xlu0 %v1960
    %v1962 = vpop.xlane.xlu0 %1961
    %v1963 = vsub.f32 %v1955, %v1959
    %v1964 = vsub.f32 %v1956, %v1962
    %v1965 = vmul.f32 %v1963, 1.442695
    %v1966 = vpow.pop %v1965
    %v1967 = vmul.f32 %v1964, 1.442695
    %v1968 = vpow.pop %v1967
    %v1969 = vsel %vm691, %v1966, 0.0
    %1970 = vadd.xlane.f32.xlu0 %v1969
    %v1971 = vpop.xlane.xlu0 %1970
    %v1972 = vsel %vm691, %v1968, 0.0
    %1973 = vadd.xlane.f32.xlu0 %v1972
    %v1974 = vpop.xlane.xlu0 %1973
    %v1975 = vrcp.pop %v1971
    %v1976 = vrcp.pop %v1974
    %v1977 = vmul.f32 %v1966, %v1975
    %v1978 = vmul.f32 %v1968, %v1976
    %v1979 = vpack.c.bf16 %v1977, %v1977
    %v1980 = vpack.c.bf16 %v1978, %v1978
    %v1982 = vunpack.c.l.b16 %v1789
    %v1983 = vpack.c.b16 %v1982, %v1982
    %1984 = vrot.lane.b32.xlu0 %v1983, 96
    %v1985 = vpop.permute.xlu0 %1984
    %v1987 = vsel %vm691, %v1979, 0
    %v1990 = vsel %vm719, %v1985, 0
    %1992 = vmatpush.bf16.msra.mxu0 0
    %1993 = vmatpush.bf16.msra.mxu0 0
    %1994 = vmatpush.bf16.msra.mxu0 0
    %1995 = vmatpush.bf16.msra.mxu0 0
    %1996 = vmatpush.bf16.msra.mxu0 0
    %1997 = vmatpush.bf16.msra.mxu0 0
    %1998 = vmatpush.bf16.msra.mxu0 0
    %1999 = vmatpush.bf16.msra.mxu0 %v1990
    %2000 = vmatmul.bf16.gmra.mxu0 %v1987
    %v2001 = vpop.f32.mrf.mxu0
    %v2002 = vadd.f32 0.0, %v2001
    %v2003 = vpop.f32.mrf.mxu0
    %2004 = vdwg.mxu0
    %v2006 = vunpack.c.l.b16 %v1790
    %v2007 = vpack.c.b16 %v2006, %v2006
    %2008 = vrot.lane.b32.xlu0 %v2007, 96
    %v2009 = vpop.permute.xlu0 %2008
    %v2011 = vsel %vm691, %v1980, 0
    %v2014 = vsel %vm719, %v2009, 0
    %2016 = vmatpush.bf16.msra.mxu0 0
    %2017 = vmatpush.bf16.msra.mxu0 0
    %2018 = vmatpush.bf16.msra.mxu0 0
    %2019 = vmatpush.bf16.msra.mxu0 0
    %2020 = vmatpush.bf16.msra.mxu0 0
    %2021 = vmatpush.bf16.msra.mxu0 0
    %2022 = vmatpush.bf16.msra.mxu0 0
    %2023 = vmatpush.bf16.msra.mxu0 %v2014
    %2024 = vmatmul.bf16.gmra.mxu0 %v2011
    %v2025 = vpop.f32.mrf.mxu0
    %v2026 = vadd.f32 0.0, %v2025
    %v2027 = vpop.f32.mrf.mxu0
    %2028 = vdwg.mxu0
    %2029 = vrot.lane.b32.xlu0 %v1897, 64
    %v2030 = vpop.permute.xlu0 %2029
    %2031 = vrot.lane.b32.xlu0 %v1902, 64
    %v2032 = vpop.permute.xlu0 %2031
    %v2034 = vsel %vm642, %v2030, 0
    %v2037 = vsel %vm642, %v2032, 0
    %2039 = vmatpush.bf16.xpose.msra.mxu0 0
    %2040 = vmatpush.bf16.xpose.msra.mxu0 0
    %2041 = vmatpush.bf16.xpose.msra.mxu0 0
    %2042 = vmatpush.bf16.xpose.msra.mxu0 0
    %2043 = vmatpush.bf16.xpose.msra.mxu0 0
    %2044 = vmatpush.bf16.xpose.msra.mxu0 0
    %2045 = vmatpush.bf16.xpose.msra.mxu0 0
    %2046 = vmatpush.bf16.xpose.msra.mxu0 %v2037
    %2047 = vmatmul.bf16.gmra.mxu0 %v2034
    %v2048 = vpop.f32.mrf.mxu0
    %v2049 = vadd.f32 0.0, %v2048
    %v2050 = vpop.f32.mrf.mxu0
    %2051 = vdwg.mxu0
    %2052 = vrot.lane.b32.xlu0 %v1926, 64
    %v2053 = vpop.permute.xlu0 %2052
    %2054 = vrot.lane.b32.xlu0 %v1931, 64
    %v2055 = vpop.permute.xlu0 %2054
    %v2057 = vsel %vm642, %v2053, 0
    %v2060 = vsel %vm642, %v2055, 0
    %2062 = vmatpush.bf16.xpose.msra.mxu0 0
    %2063 = vmatpush.bf16.xpose.msra.mxu0 0
    %2064 = vmatpush.bf16.xpose.msra.mxu0 0
    %2065 = vmatpush.bf16.xpose.msra.mxu0 0
    %2066 = vmatpush.bf16.xpose.msra.mxu0 0
    %2067 = vmatpush.bf16.xpose.msra.mxu0 0
    %2068 = vmatpush.bf16.xpose.msra.mxu0 0
    %2069 = vmatpush.bf16.xpose.msra.mxu0 %v2060
    %2070 = vmatmul.bf16.gmra.mxu0 %v2057
    %v2071 = vpop.f32.mrf.mxu0
    %v2072 = vadd.f32 0.0, %v2071
    %v2073 = vpop.f32.mrf.mxu0
    %2074 = vdwg.mxu0
    %v2075 = vmul.f32 %v2049, 0.35355338
    %v2076 = vmul.f32 %v2072, 0.35355338
    %v2077 = vadd.f32 %v2075, %v685
    %v2078 = vadd.f32 %v2076, %v686
    %v2079 = vsel %vm691, %v2077, -inf
    %2080 = vmax.xlane.f32.xlu0 %v2079
    %v2081 = vpop.xlane.xlu0 %2080
    %v2082 = vsel %vm691, %v2078, -inf
    %2083 = vmax.xlane.f32.xlu0 %v2082
    %v2084 = vpop.xlane.xlu0 %2083
    %v2085 = vsub.f32 %v2077, %v2081
    %v2086 = vsub.f32 %v2078, %v2084
    %v2087 = vmul.f32 %v2085, 1.442695
    %v2088 = vpow.pop %v2087
    %v2089 = vmul.f32 %v2086, 1.442695
    %v2090 = vpow.pop %v2089
    %v2091 = vsel %vm691, %v2088, 0.0
    %2092 = vadd.xlane.f32.xlu0 %v2091
    %v2093 = vpop.xlane.xlu0 %2092
    %v2094 = vsel %vm691, %v2090, 0.0
    %2095 = vadd.xlane.f32.xlu0 %v2094
    %v2096 = vpop.xlane.xlu0 %2095
    %v2097 = vrcp.pop %v2093
    %v2098 = vrcp.pop %v2096
    %v2099 = vmul.f32 %v2088, %v2097
    %v2100 = vmul.f32 %v2090, %v2098
    %v2101 = vpack.c.bf16 %v2099, %v2099
    %v2102 = vpack.c.bf16 %v2100, %v2100
    %2103 = vrot.lane.b32.xlu0 %v1983, 64
    %v2104 = vpop.permute.xlu0 %2103
    %v2106 = vsel %vm691, %v2101, 0
    %v2109 = vsel %vm719, %v2104, 0
    %2111 = vmatpush.bf16.msra.mxu0 0
    %2112 = vmatpush.bf16.msra.mxu0 0
    %2113 = vmatpush.bf16.msra.mxu0 0
    %2114 = vmatpush.bf16.msra.mxu0 0
    %2115 = vmatpush.bf16.msra.mxu0 0
    %2116 = vmatpush.bf16.msra.mxu0 0
    %2117 = vmatpush.bf16.msra.mxu0 0
    %2118 = vmatpush.bf16.msra.mxu0 %v2109
    %2119 = vmatmul.bf16.gmra.mxu0 %v2106
    %v2120 = vpop.f32.mrf.mxu0
    %v2121 = vadd.f32 0.0, %v2120
    %v2122 = vpop.f32.mrf.mxu0
    %2123 = vdwg.mxu0
    %2124 = vrot.lane.b32.xlu0 %v2007, 64
    %v2125 = vpop.permute.xlu0 %2124
    %v2127 = vsel %vm691, %v2102, 0
    %v2130 = vsel %vm719, %v2125, 0
    %2132 = vmatpush.bf16.msra.mxu0 0
    %2133 = vmatpush.bf16.msra.mxu0 0
    %2134 = vmatpush.bf16.msra.mxu0 0
    %2135 = vmatpush.bf16.msra.mxu0 0
    %2136 = vmatpush.bf16.msra.mxu0 0
    %2137 = vmatpush.bf16.msra.mxu0 0
    %2138 = vmatpush.bf16.msra.mxu0 0
    %2139 = vmatpush.bf16.msra.mxu0 %v2130
    %2140 = vmatmul.bf16.gmra.mxu0 %v2127
    %v2141 = vpop.f32.mrf.mxu0
    %v2142 = vadd.f32 0.0, %v2141
    %v2143 = vpop.f32.mrf.mxu0
    %2144 = vdwg.mxu0
    %2145 = vrot.lane.b32.xlu0 %v1897, 32
    %v2146 = vpop.permute.xlu0 %2145
    %2147 = vrot.lane.b32.xlu0 %v1902, 32
    %v2148 = vpop.permute.xlu0 %2147
    %v2150 = vsel %vm642, %v2146, 0
    %v2153 = vsel %vm642, %v2148, 0
    %2155 = vmatpush.bf16.xpose.msra.mxu0 0
    %2156 = vmatpush.bf16.xpose.msra.mxu0 0
    %2157 = vmatpush.bf16.xpose.msra.mxu0 0
    %2158 = vmatpush.bf16.xpose.msra.mxu0 0
    %2159 = vmatpush.bf16.xpose.msra.mxu0 0
    %2160 = vmatpush.bf16.xpose.msra.mxu0 0
    %2161 = vmatpush.bf16.xpose.msra.mxu0 0
    %2162 = vmatpush.bf16.xpose.msra.mxu0 %v2153
    %2163 = vmatmul.bf16.gmra.mxu0 %v2150
    %v2164 = vpop.f32.mrf.mxu0
    %v2165 = vadd.f32 0.0, %v2164
    %v2166 = vpop.f32.mrf.mxu0
    %2167 = vdwg.mxu0
    %2168 = vrot.lane.b32.xlu0 %v1926, 32
    %v2169 = vpop.permute.xlu0 %2168
    %2170 = vrot.lane.b32.xlu0 %v1931, 32
    %v2171 = vpop.permute.xlu0 %2170
    %v2173 = vsel %vm642, %v2169, 0
    %v2176 = vsel %vm642, %v2171, 0
    %2178 = vmatpush.bf16.xpose.msra.mxu0 0
    %2179 = vmatpush.bf16.xpose.msra.mxu0 0
    %2180 = vmatpush.bf16.xpose.msra.mxu0 0
    %2181 = vmatpush.bf16.xpose.msra.mxu0 0
    %2182 = vmatpush.bf16.xpose.msra.mxu0 0
    %2183 = vmatpush.bf16.xpose.msra.mxu0 0
    %2184 = vmatpush.bf16.xpose.msra.mxu0 0
    %2185 = vmatpush.bf16.xpose.msra.mxu0 %v2176
    %2186 = vmatmul.bf16.gmra.mxu0 %v2173
    %v2187 = vpop.f32.mrf.mxu0
    %v2188 = vadd.f32 0.0, %v2187
    %v2189 = vpop.f32.mrf.mxu0
    %2190 = vdwg.mxu0
    %v2191 = vmul.f32 %v2165, 0.35355338
    %v2192 = vmul.f32 %v2188, 0.35355338
    %v2193 = vadd.f32 %v2191, %v685
    %v2194 = vadd.f32 %v2192, %v686
    %v2195 = vsel %vm691, %v2193, -inf
    %2196 = vmax.xlane.f32.xlu0 %v2195
    %v2197 = vpop.xlane.xlu0 %2196
    %v2198 = vsel %vm691, %v2194, -inf
    %2199 = vmax.xlane.f32.xlu0 %v2198
    %v2200 = vpop.xlane.xlu0 %2199
    %v2201 = vsub.f32 %v2193, %v2197
    %v2202 = vsub.f32 %v2194, %v2200
    %v2203 = vmul.f32 %v2201, 1.442695
    %v2204 = vpow.pop %v2203
    %v2205 = vmul.f32 %v2202, 1.442695
    %v2206 = vpow.pop %v2205
    %v2207 = vsel %vm691, %v2204, 0.0
    %2208 = vadd.xlane.f32.xlu0 %v2207
    %v2209 = vpop.xlane.xlu0 %2208
    %v2210 = vsel %vm691, %v2206, 0.0
    %2211 = vadd.xlane.f32.xlu0 %v2210
    %v2212 = vpop.xlane.xlu0 %2211
    %v2213 = vrcp.pop %v2209
    %v2214 = vrcp.pop %v2212
    %v2215 = vmul.f32 %v2204, %v2213
    %v2216 = vmul.f32 %v2206, %v2214
    %v2217 = vpack.c.bf16 %v2215, %v2215
    %v2218 = vpack.c.bf16 %v2216, %v2216
    %2219 = vrot.lane.b32.xlu0 %v1983, 32
    %v2220 = vpop.permute.xlu0 %2219
    %v2222 = vsel %vm691, %v2217, 0
    %v2225 = vsel %vm719, %v2220, 0
    %2227 = vmatpush.bf16.msra.mxu0 0
    %2228 = vmatpush.bf16.msra.mxu0 0
    %2229 = vmatpush.bf16.msra.mxu0 0
    %2230 = vmatpush.bf16.msra.mxu0 0
    %2231 = vmatpush.bf16.msra.mxu0 0
    %2232 = vmatpush.bf16.msra.mxu0 0
    %2233 = vmatpush.bf16.msra.mxu0 0
    %2234 = vmatpush.bf16.msra.mxu0 %v2225
    %2235 = vmatmul.bf16.gmra.mxu0 %v2222
    %v2236 = vpop.f32.mrf.mxu0
    %v2237 = vadd.f32 0.0, %v2236
    %v2238 = vpop.f32.mrf.mxu0
    %2239 = vdwg.mxu0
    %2240 = vrot.lane.b32.xlu0 %v2007, 32
    %v2241 = vpop.permute.xlu0 %2240
    %v2243 = vsel %vm691, %v2218, 0
    %v2246 = vsel %vm719, %v2241, 0
    %2248 = vmatpush.bf16.msra.mxu0 0
    %2249 = vmatpush.bf16.msra.mxu0 0
    %2250 = vmatpush.bf16.msra.mxu0 0
    %2251 = vmatpush.bf16.msra.mxu0 0
    %2252 = vmatpush.bf16.msra.mxu0 0
    %2253 = vmatpush.bf16.msra.mxu0 0
    %2254 = vmatpush.bf16.msra.mxu0 0
    %2255 = vmatpush.bf16.msra.mxu0 %v2246
    %2256 = vmatmul.bf16.gmra.mxu0 %v2243
    %v2257 = vpop.f32.mrf.mxu0
    %v2258 = vadd.f32 0.0, %v2257
    %v2259 = vpop.f32.mrf.mxu0
    %2260 = vdwg.mxu0
    %2263 = vrot.lane.b32.xlu0 %v2002, 32
    %v2264 = vpop.permute.xlu0 %2263
    %2265 = vrot.lane.b32.xlu0 %v2026, 32
    %v2266 = vpop.permute.xlu0 %2265
    %2271 = vrot.lane.b32.xlu0 %v2121, 64
    %v2272 = vpop.permute.xlu0 %2271
    %2273 = vrot.lane.b32.xlu0 %v2142, 64
    %v2274 = vpop.permute.xlu0 %2273
    %2279 = vrot.lane.b32.xlu0 %v2237, 96
    %v2280 = vpop.permute.xlu0 %2279
    %2281 = vrot.lane.b32.xlu0 %v2258, 96
    %v2282 = vpop.permute.xlu0 %2281
    %v2285 = vsel %vm642, %v1873, %v2264
    %v2286 = vsel %vm642, %v1892, %v2266
    %v2287 = vsel %vm1147, %v2285, %v2272
    %v2288 = vsel %vm1147, %v2286, %v2274
    %v2289 = vsel %vm1150, %v2287, %v2280
    %v2290 = vsel %vm1150, %v2288, %v2282
    %v2291 = vpack.c.bf16 %v2290, %v2289
    %s2292 = scalar_lea.vmem [#allocation13], 64
    %v2293 = vld [vmem:[%s2292] sm:$0xf]
    %v2294 = vld [vmem:[%s2292 + $0x4] sm:$0xf]
    %v2295 = vld [vmem:[%s2292 + $0x8] sm:$0xf]
    %v2296 = vld [vmem:[%s2292 + $0xc] sm:$0xf]
    %v2297 = vld [vmem:[%s2292 + $0x10] sm:$0xf]
    %v2298 = vld [vmem:[%s2292 + $0x14] sm:$0xf]
    %v2299 = vld [vmem:[%s2292 + $0x18] sm:$0xf]
    %v2300 = vld [vmem:[%s2292 + $0x1c] sm:$0xf]
    %v2301 = vld [vmem:[%s2292 + $0x20] sm:$0xf]
    %v2302 = vld [vmem:[%s2292 + $0x24] sm:$0xf]
    %v2303 = vld [vmem:[%s2292 + $0x28] sm:$0xf]
    %v2304 = vld [vmem:[%s2292 + $0x2c] sm:$0xf]
    %v2305 = vld [vmem:[%s2292 + $0x30] sm:$0xf]
    %v2306 = vld [vmem:[%s2292 + $0x34] sm:$0xf]
    %v2307 = vld [vmem:[%s2292 + $0x38] sm:$0xf]
    %v2308 = vld [vmem:[%s2292 + $0x3c] sm:$0xf]
    %s2309 = scalar_lea.vmem %s13, 1
    %v2310 = vld [vmem:[%s2309] sm:$0x1]
    %v2312 = vperm.slane %v2310, 0
    %v2330 = vunpack.c.l.b16 %v2293
    %v2331 = vunpack.c.l.b16 %v2294
    %v2332 = vunpack.c.l.b16 %v2295
    %v2333 = vunpack.c.l.b16 %v2296
    %v2334 = vunpack.c.l.b16 %v2297
    %v2335 = vunpack.c.l.b16 %v2298
    %v2336 = vunpack.c.l.b16 %v2299
    %v2337 = vunpack.c.l.b16 %v2300
    %v2338 = vunpack.c.l.b16 %v2301
    %v2339 = vunpack.c.l.b16 %v2302
    %v2340 = vunpack.c.l.b16 %v2303
    %v2341 = vunpack.c.l.b16 %v2304
    %v2342 = vunpack.c.l.b16 %v2305
    %v2343 = vunpack.c.l.b16 %v2306
    %v2344 = vunpack.c.l.b16 %v2307
    %v2345 = vunpack.c.l.b16 %v2308
    %v2346 = vpack.c.b16 %v2331, %v2330
    %v2347 = vpack.c.b16 %v2333, %v2332
    %v2348 = vpack.c.b16 %v2335, %v2334
    %v2349 = vpack.c.b16 %v2337, %v2336
    %v2350 = vpack.c.b16 %v2339, %v2338
    %v2351 = vpack.c.b16 %v2341, %v2340
    %v2352 = vpack.c.b16 %v2343, %v2342
    %v2353 = vpack.c.b16 %v2345, %v2344
    %2362 = vmatpush.bf16.msra.mxu0 %v2353
    %2363 = vmatpush.bf16.msra.mxu0 %v2352
    %2364 = vmatpush.bf16.msra.mxu0 %v2351
    %2365 = vmatpush.bf16.msra.mxu0 %v2350
    %2366 = vmatpush.bf16.msra.mxu0 %v2349
    %2367 = vmatpush.bf16.msra.mxu0 %v2348
    %2368 = vmatpush.bf16.msra.mxu0 %v2347
    %2369 = vmatpush.bf16.msra.mxu0 %v2346
    %2370 = vmatmul.bf16.gmra.mxu0 %v2291
    %v2371 = vpop.f32.mrf.mxu0
    %v2372 = vadd.f32 %v2312, %v2371
    %v2373 = vpop.f32.mrf.mxu0
    %v2374 = vadd.f32 %v2312, %v2373
    %2375 = vdwg.mxu0
    %v2376 = vadd.f32 %v1530, %v2372
    %v2377 = vadd.f32 %v1531, %v2374
    %s2378 = scalar_lea.vmem %s14, 1
    %v2379 = vld [vmem:[%s2378] sm:$0x1]
    %s2380 = scalar_lea.vmem %s15, 1
    %v2381 = vld [vmem:[%s2380] sm:$0x1]
    %2382 = vadd.xlane.f32.xlu0 %v2376
    %v2383 = vpop.xlane.xlu0 %2382
    %2384 = vadd.xlane.f32.xlu0 %v2377
    %v2385 = vpop.xlane.xlu0 %2384
    %v2386 = vmul.f32 %v2383, 0.03125
    %v2387 = vmul.f32 %v2385, 0.03125
    %v2388 = vsub.f32 %v2376, %v2386
    %v2389 = vsub.f32 %v2377, %v2387
    %v2390 = vmul.f32 %v2388, %v272
    %v2391 = vmul.f32 %v2389, %v272
    %v2392 = vmul.f32 %v2390, %v2390
    %v2393 = vmul.f32 %v2391, %v2391
    %2394 = vadd.xlane.f32.xlu0 %v2392
    %v2395 = vpop.xlane.xlu0 %2394
    %2396 = vadd.xlane.f32.xlu0 %v2393
    %v2397 = vpop.xlane.xlu0 %2396
    %v2398 = vmul.f32 %v2395, 0.03125
    %v2399 = vmul.f32 %v2397, 0.03125
    %v2400 = vadd.f32 %v2398, 1e-05
    %v2401 = vadd.f32 %v2399, 1e-05
    %v2402 = vrsqrt.pop %v2400
    %v2403 = vmul.f32 %v2402, %v2400
    %v2404 = vmul.f32 %v2403, %v2402
    %v2405 = vmul.f32 0.5, %v2404
    %v2406 = vsub.f32 1.5, %v2405
    %v2407 = vmul.f32 %v2402, %v2406
    %vm2408 = vweird.f32 %v2400
    %vm2409 = vweird.f32 %v2402
    %vm2410 = vmor %vm2408, %vm2409
    %v2411 = vsel %vm2410, %v2402, %v2407
    %v2412 = vrsqrt.pop %v2401
    %v2413 = vmul.f32 %v2412, %v2401
    %v2414 = vmul.f32 %v2413, %v2412
    %v2415 = vmul.f32 0.5, %v2414
    %v2416 = vsub.f32 1.5, %v2415
    %v2417 = vmul.f32 %v2412, %v2416
    %vm2418 = vweird.f32 %v2401
    %vm2419 = vweird.f32 %v2412
    %vm2420 = vmor %vm2418, %vm2419
    %v2421 = vsel %vm2420, %v2412, %v2417
    %v2422 = vmul.f32 %v2390, %v2411
    %v2423 = vmul.f32 %v2391, %v2421
    %v2425 = vperm.slane %v2379, 0
    %v2427 = vmul.f32 %v2422, %v2425
    %v2428 = vmul.f32 %v2423, %v2425
    %v2430 = vperm.slane %v2381, 0
    %v2432 = vadd.f32 %v2427, %v2430
    %v2433 = vadd.f32 %v2428, %v2430
    %v2434 = vpack.c.bf16 %v2433, %v2432
    %s2435 = scalar_lea.vmem [#allocation14], 64
    %v2436 = vld [vmem:[%s2435] sm:$0xf]
    %v2437 = vld [vmem:[%s2435 + $0x4] sm:$0xf]
    %v2438 = vld [vmem:[%s2435 + $0x8] sm:$0xf]
    %v2439 = vld [vmem:[%s2435 + $0xc] sm:$0xf]
    %v2440 = vld [vmem:[%s2435 + $0x10] sm:$0xf]
    %v2441 = vld [vmem:[%s2435 + $0x14] sm:$0xf]
    %v2442 = vld [vmem:[%s2435 + $0x18] sm:$0xf]
    %v2443 = vld [vmem:[%s2435 + $0x1c] sm:$0xf]
    %v2444 = vld [vmem:[%s2435 + $0x20] sm:$0xf]
    %v2445 = vld [vmem:[%s2435 + $0x24] sm:$0xf]
    %v2446 = vld [vmem:[%s2435 + $0x28] sm:$0xf]
    %v2447 = vld [vmem:[%s2435 + $0x2c] sm:$0xf]
    %v2448 = vld [vmem:[%s2435 + $0x30] sm:$0xf]
    %v2449 = vld [vmem:[%s2435 + $0x34] sm:$0xf]
    %v2450 = vld [vmem:[%s2435 + $0x38] sm:$0xf]
    %v2451 = vld [vmem:[%s2435 + $0x3c] sm:$0xf]
    %s2452 = scalar_lea.vmem %s17, 1
    %v2453 = vld [vmem:[%s2452] sm:$0x1]
    %v2455 = vperm.slane %v2453, 0
    %v2473 = vunpack.c.l.b16 %v2436
    %v2474 = vunpack.c.l.b16 %v2437
    %v2475 = vunpack.c.l.b16 %v2438
    %v2476 = vunpack.c.l.b16 %v2439
    %v2477 = vunpack.c.l.b16 %v2440
    %v2478 = vunpack.c.l.b16 %v2441
    %v2479 = vunpack.c.l.b16 %v2442
    %v2480 = vunpack.c.l.b16 %v2443
    %v2481 = vunpack.c.l.b16 %v2444
    %v2482 = vunpack.c.l.b16 %v2445
    %v2483 = vunpack.c.l.b16 %v2446
    %v2484 = vunpack.c.l.b16 %v2447
    %v2485 = vunpack.c.l.b16 %v2448
    %v2486 = vunpack.c.l.b16 %v2449
    %v2487 = vunpack.c.l.b16 %v2450
    %v2488 = vunpack.c.l.b16 %v2451
    %v2489 = vpack.c.b16 %v2474, %v2473
    %v2490 = vpack.c.b16 %v2476, %v2475
    %v2491 = vpack.c.b16 %v2478, %v2477
    %v2492 = vpack.c.b16 %v2480, %v2479
    %v2493 = vpack.c.b16 %v2482, %v2481
    %v2494 = vpack.c.b16 %v2484, %v2483
    %v2495 = vpack.c.b16 %v2486, %v2485
    %v2496 = vpack.c.b16 %v2488, %v2487
    %2505 = vmatpush.bf16.msra.mxu0 %v2496
    %2506 = vmatpush.bf16.msra.mxu0 %v2495
    %2507 = vmatpush.bf16.msra.mxu0 %v2494
    %2508 = vmatpush.bf16.msra.mxu0 %v2493
    %2509 = vmatpush.bf16.msra.mxu0 %v2492
    %2510 = vmatpush.bf16.msra.mxu0 %v2491
    %2511 = vmatpush.bf16.msra.mxu0 %v2490
    %2512 = vmatpush.bf16.msra.mxu0 %v2489
    %2513 = vmatmul.bf16.gmra.mxu0 %v2434
    %v2514 = vpop.f32.mrf.mxu0
    %v2515 = vadd.f32 %v2455, %v2514
    %v2516 = vpop.f32.mrf.mxu0
    %v2517 = vadd.f32 %v2455, %v2516
    %2518 = vdwg.mxu0
    %v2519 = vmul.f32 %v2515, 0.5
    %v2520 = vmul.f32 %v2517, 0.5
    %v2521 = vmul.f32 %v2515, 0.044715
    %v2522 = vmul.f32 %v2517, 0.044715
    %v2523 = vmul.f32 %v2521, %v2515
    %v2524 = vmul.f32 %v2522, %v2517
    %v2525 = vmul.f32 %v2523, %v2515
    %v2526 = vmul.f32 %v2524, %v2517
    %v2527 = vadd.f32 %v2515, %v2525
    %v2528 = vadd.f32 %v2517, %v2526
    %v2529 = vmul.f32 %v2527, 0.7978846
    %v2530 = vmul.f32 %v2528, 0.7978846
    %v2531 = vtanh.pop %v2529
    %v2532 = vtanh.pop %v2530
    %v2533 = vadd.f32 %v2531, 1.0
    %v2534 = vadd.f32 %v2532, 1.0
    %v2535 = vmul.f32 %v2519, %v2533
    %v2536 = vmul.f32 %v2520, %v2534
    %v2537 = vpack.c.bf16 %v2536, %v2535
    %s2538 = scalar_lea.vmem [#allocation16], 64
    %v2539 = vld [vmem:[%s2538] sm:$0xf]
    %v2540 = vld [vmem:[%s2538 + $0x4] sm:$0xf]
    %v2541 = vld [vmem:[%s2538 + $0x8] sm:$0xf]
    %v2542 = vld [vmem:[%s2538 + $0xc] sm:$0xf]
    %v2543 = vld [vmem:[%s2538 + $0x10] sm:$0xf]
    %v2544 = vld [vmem:[%s2538 + $0x14] sm:$0xf]
    %v2545 = vld [vmem:[%s2538 + $0x18] sm:$0xf]
    %v2546 = vld [vmem:[%s2538 + $0x1c] sm:$0xf]
    %v2547 = vld [vmem:[%s2538 + $0x20] sm:$0xf]
    %v2548 = vld [vmem:[%s2538 + $0x24] sm:$0xf]
    %v2549 = vld [vmem:[%s2538 + $0x28] sm:$0xf]
    %v2550 = vld [vmem:[%s2538 + $0x2c] sm:$0xf]
    %v2551 = vld [vmem:[%s2538 + $0x30] sm:$0xf]
    %v2552 = vld [vmem:[%s2538 + $0x34] sm:$0xf]
    %v2553 = vld [vmem:[%s2538 + $0x38] sm:$0xf]
    %v2554 = vld [vmem:[%s2538 + $0x3c] sm:$0xf]
    %s2555 = scalar_lea.vmem %s19, 1
    %v2556 = vld [vmem:[%s2555] sm:$0x1]
    %v2558 = vperm.slane %v2556, 0
    %v2576 = vunpack.c.l.b16 %v2539
    %v2577 = vunpack.c.l.b16 %v2540
    %v2578 = vunpack.c.l.b16 %v2541
    %v2579 = vunpack.c.l.b16 %v2542
    %v2580 = vunpack.c.l.b16 %v2543
    %v2581 = vunpack.c.l.b16 %v2544
    %v2582 = vunpack.c.l.b16 %v2545
    %v2583 = vunpack.c.l.b16 %v2546
    %v2584 = vunpack.c.l.b16 %v2547
    %v2585 = vunpack.c.l.b16 %v2548
    %v2586 = vunpack.c.l.b16 %v2549
    %v2587 = vunpack.c.l.b16 %v2550
    %v2588 = vunpack.c.l.b16 %v2551
    %v2589 = vunpack.c.l.b16 %v2552
    %v2590 = vunpack.c.l.b16 %v2553
    %v2591 = vunpack.c.l.b16 %v2554
    %v2592 = vpack.c.b16 %v2577, %v2576
    %v2593 = vpack.c.b16 %v2579, %v2578
    %v2594 = vpack.c.b16 %v2581, %v2580
    %v2595 = vpack.c.b16 %v2583, %v2582
    %v2596 = vpack.c.b16 %v2585, %v2584
    %v2597 = vpack.c.b16 %v2587, %v2586
    %v2598 = vpack.c.b16 %v2589, %v2588
    %v2599 = vpack.c.b16 %v2591, %v2590
    %2608 = vmatpush.bf16.msra.mxu0 %v2599
    %2609 = vmatpush.bf16.msra.mxu0 %v2598
    %2610 = vmatpush.bf16.msra.mxu0 %v2597
    %2611 = vmatpush.bf16.msra.mxu0 %v2596
    %2612 = vmatpush.bf16.msra.mxu0 %v2595
    %2613 = vmatpush.bf16.msra.mxu0 %v2594
    %2614 = vmatpush.bf16.msra.mxu0 %v2593
    %2615 = vmatpush.bf16.msra.mxu0 %v2592
    %2616 = vmatmul.bf16.gmra.mxu0 %v2537
    %v2617 = vpop.f32.mrf.mxu0
    %v2618 = vadd.f32 %v2558, %v2617
    %v2619 = vpop.f32.mrf.mxu0
    %v2620 = vadd.f32 %v2558, %v2619
    %2621 = vdwg.mxu0
    %v2622 = vadd.f32 %v2432, %v2618
    %v2623 = vadd.f32 %v2433, %v2620
    %s2624 = scalar_lea.vmem %s20, 1
    %v2625 = vld [vmem:[%s2624] sm:$0x1]
    %s2626 = scalar_lea.vmem [#allocation17], 1
    %v2627 = vld [vmem:[%s2626] sm:$0x1]
    %2628 = vadd.xlane.f32.xlu0 %v2622
    %v2629 = vpop.xlane.xlu0 %2628
    %2630 = vadd.xlane.f32.xlu0 %v2623
    %v2631 = vpop.xlane.xlu0 %2630
    %v2632 = vmul.f32 %v2629, 0.03125
    %v2633 = vmul.f32 %v2631, 0.03125
    %v2634 = vsub.f32 %v2622, %v2632
    %v2635 = vsub.f32 %v2623, %v2633
    %v2636 = vmul.f32 %v2634, %v272
    %v2637 = vmul.f32 %v2635, %v272
    %v2638 = vmul.f32 %v2636, %v2636
    %v2639 = vmul.f32 %v2637, %v2637
    %2640 = vadd.xlane.f32.xlu0 %v2638
    %v2641 = vpop.xlane.xlu0 %2640
    %2642 = vadd.xlane.f32.xlu0 %v2639
    %v2643 = vpop.xlane.xlu0 %2642
    %v2644 = vmul.f32 %v2641, 0.03125
    %v2645 = vmul.f32 %v2643, 0.03125
    %v2646 = vadd.f32 %v2644, 1e-05
    %v2647 = vadd.f32 %v2645, 1e-05
    %v2648 = vrsqrt.pop %v2646
    %v2649 = vmul.f32 %v2648, %v2646
    %v2650 = vmul.f32 %v2649, %v2648
    %v2651 = vmul.f32 0.5, %v2650
    %v2652 = vsub.f32 1.5, %v2651
    %v2653 = vmul.f32 %v2648, %v2652
    %vm2654 = vweird.f32 %v2646
    %vm2655 = vweird.f32 %v2648
    %vm2656 = vmor %vm2654, %vm2655
    %v2657 = vsel %vm2656, %v2648, %v2653
    %v2658 = vrsqrt.pop %v2647
    %v2659 = vmul.f32 %v2658, %v2647
    %v2660 = vmul.f32 %v2659, %v2658
    %v2661 = vmul.f32 0.5, %v2660
    %v2662 = vsub.f32 1.5, %v2661
    %v2663 = vmul.f32 %v2658, %v2662
    %vm2664 = vweird.f32 %v2647
    %vm2665 = vweird.f32 %v2658
    %vm2666 = vmor %vm2664, %vm2665
    %v2667 = vsel %vm2666, %v2658, %v2663
    %v2668 = vmul.f32 %v2636, %v2657
    %v2669 = vmul.f32 %v2637, %v2667
    %v2671 = vperm.slane %v2625, 0
    %v2673 = vmul.f32 %v2668, %v2671
    %v2674 = vmul.f32 %v2669, %v2671
    %v2676 = vperm.slane %v2627, 0
    %v2678 = vadd.f32 %v2673, %v2676
    %v2679 = vadd.f32 %v2674, %v2676
    %v2680 = vpack.c.bf16 %v2678, %v2678
    %v2681 = vpack.c.bf16 %v2679, %v2679
    %v2682 = vld [vmem:[#allocation19] sm:$0xf]
    %v2683 = vld [vmem:[#allocation19 + $0x4] sm:$0xf]
    %v2684 = vld [vmem:[#allocation19 + $0x8] sm:$0xf]
    %v2685 = vld [vmem:[#allocation19 + $0xc] sm:$0xf]
    %v2686 = vld [vmem:[#allocation19 + $0x10] sm:$0xf]
    %v2687 = vld [vmem:[#allocation19 + $0x14] sm:$0xf]
    %v2688 = vld [vmem:[#allocation19 + $0x18] sm:$0xf]
    %v2689 = vld [vmem:[#allocation19 + $0x1c] sm:$0xf]
    %v2690 = vld [vmem:[#allocation19 + $0x20] sm:$0xf]
    %v2691 = vld [vmem:[#allocation19 + $0x24] sm:$0xf]
    %v2692 = vld [vmem:[#allocation19 + $0x28] sm:$0xf]
    %v2693 = vld [vmem:[#allocation19 + $0x2c] sm:$0xf]
    %v2694 = vld [vmem:[#allocation19 + $0x30] sm:$0xf]
    %v2695 = vld [vmem:[#allocation19 + $0x34] sm:$0xf]
    %v2696 = vld [vmem:[#allocation19 + $0x38] sm:$0xf]
    %v2697 = vld [vmem:[#allocation19 + $0x3c] sm:$0xf]
    %v2698 = vld [vmem:[%s23] sm:$0x1]
    %v2700 = vperm.slane %v2698, 0
    %v2704 = vunpack.c.l.b16 %v2680
    %v2705 = vunpack.c.l.b16 %v2681
    %v2706 = vrot.slane %v2705, 7
    %vm2707 = vcmask 1041409
    %v2708 = vsel %vm2707, %v2706, %v2704
    %v2709 = vpack.c.b16 %v2708, %v2708
    %v2727 = vunpack.c.l.b16 %v2682
    %v2728 = vunpack.c.l.b16 %v2683
    %v2729 = vunpack.c.l.b16 %v2684
    %v2730 = vunpack.c.l.b16 %v2685
    %v2731 = vunpack.c.l.b16 %v2686
    %v2732 = vunpack.c.l.b16 %v2687
    %v2733 = vunpack.c.l.b16 %v2688
    %v2734 = vunpack.c.l.b16 %v2689
    %v2735 = vunpack.c.l.b16 %v2690
    %v2736 = vunpack.c.l.b16 %v2691
    %v2737 = vunpack.c.l.b16 %v2692
    %v2738 = vunpack.c.l.b16 %v2693
    %v2739 = vunpack.c.l.b16 %v2694
    %v2740 = vunpack.c.l.b16 %v2695
    %v2741 = vunpack.c.l.b16 %v2696
    %v2742 = vunpack.c.l.b16 %v2697
    %v2743 = vpack.c.b16 %v2728, %v2727
    %v2744 = vpack.c.b16 %v2730, %v2729
    %v2745 = vpack.c.b16 %v2732, %v2731
    %v2746 = vpack.c.b16 %v2734, %v2733
    %v2747 = vpack.c.b16 %v2736, %v2735
    %v2748 = vpack.c.b16 %v2738, %v2737
    %v2749 = vpack.c.b16 %v2740, %v2739
    %v2750 = vpack.c.b16 %v2742, %v2741
    %2759 = vmatpush.bf16.msra.mxu0 %v2750
    %2760 = vmatpush.bf16.msra.mxu0 %v2749
    %2761 = vmatpush.bf16.msra.mxu0 %v2748
    %2762 = vmatpush.bf16.msra.mxu0 %v2747
    %2763 = vmatpush.bf16.msra.mxu0 %v2746
    %2764 = vmatpush.bf16.msra.mxu0 %v2745
    %2765 = vmatpush.bf16.msra.mxu0 %v2744
    %2766 = vmatpush.bf16.msra.mxu0 %v2743
    %2767 = vmatmul.bf16.gmra.mxu0 %v2709
    %v2768 = vpop.f32.mrf.mxu0
    %v2769 = vadd.f32 %v2700, %v2768
    %v2770 = vpop.f32.mrf.mxu0
    %2771 = vdwg.mxu0
    %v2772 = vtanh.pop %v2769
    %v2773 = vpack.c.bf16 %v2772, %v2772
    %v2774 = vld [vmem:[#allocation20] sm:$0xf]
    %v2775 = vld [vmem:[#allocation20 + $0x4] sm:$0xf]
    %v2776 = vld [vmem:[#allocation20 + $0x8] sm:$0xf]
    %v2777 = vld [vmem:[#allocation20 + $0xc] sm:$0xf]
    %v2778 = vld [vmem:[#allocation20 + $0x10] sm:$0xf]
    %v2779 = vld [vmem:[#allocation20 + $0x14] sm:$0xf]
    %v2780 = vld [vmem:[#allocation20 + $0x18] sm:$0xf]
    %v2781 = vld [vmem:[#allocation20 + $0x1c] sm:$0xf]
    %v2782 = vld [vmem:[#allocation20 + $0x20] sm:$0xf]
    %v2783 = vld [vmem:[#allocation20 + $0x24] sm:$0xf]
    %v2784 = vld [vmem:[#allocation20 + $0x28] sm:$0xf]
    %v2785 = vld [vmem:[#allocation20 + $0x2c] sm:$0xf]
    %v2786 = vld [vmem:[#allocation20 + $0x30] sm:$0xf]
    %v2787 = vld [vmem:[#allocation20 + $0x34] sm:$0xf]
    %v2788 = vld [vmem:[#allocation20 + $0x38] sm:$0xf]
    %v2789 = vld [vmem:[#allocation20 + $0x3c] sm:$0xf]
    %v2790 = vld [vmem:[%s25] sm:$0x1]
    %v2792 = vperm.slane %v2790, 0
    %v2810 = vunpack.c.l.b16 %v2774
    %v2811 = vunpack.c.l.b16 %v2775
    %v2812 = vunpack.c.l.b16 %v2776
    %v2813 = vunpack.c.l.b16 %v2777
    %v2814 = vunpack.c.l.b16 %v2778
    %v2815 = vunpack.c.l.b16 %v2779
    %v2816 = vunpack.c.l.b16 %v2780
    %v2817 = vunpack.c.l.b16 %v2781
    %v2818 = vunpack.c.l.b16 %v2782
    %v2819 = vunpack.c.l.b16 %v2783
    %v2820 = vunpack.c.l.b16 %v2784
    %v2821 = vunpack.c.l.b16 %v2785
    %v2822 = vunpack.c.l.b16 %v2786
    %v2823 = vunpack.c.l.b16 %v2787
    %v2824 = vunpack.c.l.b16 %v2788
    %v2825 = vunpack.c.l.b16 %v2789
    %v2826 = vpack.c.b16 %v2811, %v2810
    %v2827 = vpack.c.b16 %v2813, %v2812
    %v2828 = vpack.c.b16 %v2815, %v2814
    %v2829 = vpack.c.b16 %v2817, %v2816
    %v2830 = vpack.c.b16 %v2819, %v2818
    %v2831 = vpack.c.b16 %v2821, %v2820
    %v2832 = vpack.c.b16 %v2823, %v2822
    %v2833 = vpack.c.b16 %v2825, %v2824
    %2842 = vmatpush.bf16.msra.mxu0 %v2833
    %2843 = vmatpush.bf16.msra.mxu0 %v2832
    %2844 = vmatpush.bf16.msra.mxu0 %v2831
    %2845 = vmatpush.bf16.msra.mxu0 %v2830
    %2846 = vmatpush.bf16.msra.mxu0 %v2829
    %2847 = vmatpush.bf16.msra.mxu0 %v2828
    %2848 = vmatpush.bf16.msra.mxu0 %v2827
    %2849 = vmatpush.bf16.msra.mxu0 %v2826
    %2850 = vmatmul.bf16.gmra.mxu0 %v2773
    %v2851 = vpop.f32.mrf.mxu0
    %v2852 = vadd.f32 %v2792, %v2851
    %v2853 = vpop.f32.mrf.mxu0
    %2854 = vdwg.mxu0
    %vm2855 = vcmp.lt.s32.totalorder %v269, 3
    %v2856 = vsel %vm2855, %v2852, -1e+30
    %vm2857 = vcmask 1041408
    %v2858 = vsel %vm2857, %v2856, -inf
    %2859 = vmax.xlane.f32.xlu0 %v2858
    %v2860 = vpop.xlane.xlu0 %2859
    %v2861 = vsub.f32 %v2856, %v2860
    %v2862 = vmul.f32 %v2861, 1.442695
    %v2863 = vpow.pop %v2862
    %v2864 = vsel %vm2857, %v2863, 0.0
    %2865 = vadd.xlane.f32.xlu0 %v2864
    %v2866 = vpop.xlane.xlu0 %2865
    %v2867 = vrcp.pop %v2866
    %v2868 = vmul.f32 %v2866, %v2867
    %v2869 = vsub.f32 1.0, %v2868
    %v2870 = vmul.f32 %v2867, %v2869
    %v2871 = vadd.f32 %v2867, %v2870
    %vm2872 = vweird.f32 %v2866
    %vm2873 = vweird.f32 %v2867
    %vm2874 = vmor %vm2872, %vm2873
    %v2875 = vsel %vm2874, %v2867, %v2871
    %v2876 = vand.u32 2147483647, %v2866
    %vm2877 = vcmp.eq.f32.partialorder %v2876, 8.507059e+37
    %v2878 = vand.u32 %v2866, 2147483648
    %v2879 = vor.u32 1.1754944e-38, %v2878
    %v2880 = vsel %vm2877, %v2879, %v2875
    %v2881 = vmul.f32 %v2863, %v2880
    %2882 = vst [vmem:[#allocation22] sm:$0x3] %v2881
    // Predicated region
    $region154: #{tpu_custom_call.1} parent=1 // pred_check
      _
    $region155: #{tpu_custom_call.1} parent=1 // pred_check_branch
      %2884 = sbr.rel (0) target = $region157
    $region156: #{tpu_custom_call.1} parent=1 // pred_region
      %2886 = vsyncadd [#allocation4], 0
      %s2888 = sshll.u32 [#allocation22], 4
      %s2889 = int_to_ptr.vmem [resolvable:$true] %s2888
      %s2890 = sshll.u32 %s26, 4
      %s2891 = int_to_ptr.hbm [resolvable:$true] %s2890
      %2893 = dma.vmem_to_hbm [thread:$0]  %s2889, 32, %s2891, [#allocation4]
    $region157: #{tpu_custom_call.1} parent=1 // pred_fallthru
      _
    // Predicated region
    $region158: #{tpu_custom_call.1} parent=1 // pred_check
      _
    $region159: #{tpu_custom_call.1} parent=1 // pred_check_branch
      %2895 = sbr.rel (0) target = $region161
    $region160: #{tpu_custom_call.1} parent=1 // pred_region
      %2897 = dma.done [#allocation4], 32
    $region161: #{tpu_custom_call.1} parent=1 // pred_fallthru
      _
    %2898 = vsyncpa [#allocation3], 1
    %2899 = vsyncpa [#allocation6], 1
    %2900 = vsyncpa [#allocation9], 1
    %2901 = vsyncpa [#allocation12], 1
    %2902 = vsyncpa [#allocation15], 1
    %2903 = vsyncpa [#allocation18], 1
    %2904 = vsyncpa [#allocation21], 1
    %2905 = vsyncpa [#allocation4], 1

</llo_original>
